<compile_context>
chip_gen: v6e
topology: v6e:2x2x1
jax: 0.10.0
libtpu: 0.0.40
codegen_flags: <defaults>
</compile_context>

<pallas_src>
import functools

import jax
import jax.numpy as jnp
from jax.experimental import pallas as pl
from jax.experimental.pallas import tpu as pltpu


# ------------------------- in-kernel building blocks -------------------------

def _mha_block(xq, xkv, wq, wk, wv, wo, *, causal, dk):
    """Multi-head attention for one batch element.

    xq: (Sq, D) f32, xkv: (Sk, D) f32.
    wq/wk: (H, D, dk) bf16, wv: (H, D, dv) bf16, wo: (H, dv, D) bf16.
    Heads are a leading batch axis of batched dot_generals (no lane slicing,
    no concat). Softmax math in f32; MXU operands in bf16.
    """
    H = wq.shape[0]
    Sq, D = xq.shape
    Sk = xkv.shape[0]

    kb = jnp.broadcast_to(xkv.astype(jnp.bfloat16)[None], (H, Sk, D))
    if xq is xkv:                                   # self-attention: reuse cast+broadcast
        qb = kb
    else:
        qb = jnp.broadcast_to(xq.astype(jnp.bfloat16)[None], (H, Sq, D))

    q = jnp.einsum('hsd,hdk->hsk', qb, wq, preferred_element_type=jnp.float32)
    k = jnp.einsum('hsd,hdk->hsk', kb, wk, preferred_element_type=jnp.float32)
    v = jnp.einsum('hsd,hdk->hsk', kb, wv, preferred_element_type=jnp.float32)

    # fold 1/sqrt(dk) into Q (smaller tensor than the (H,Sq,Sk) scores)
    q = q * jnp.float32(1.0 / (dk ** 0.5))

    s = jnp.einsum('hqd,hkd->hqk', q.astype(jnp.bfloat16), k.astype(jnp.bfloat16),
                   preferred_element_type=jnp.float32)
    if causal:                                      # in-kernel causal mask, nothing DMA'd
        qi = jax.lax.broadcasted_iota(jnp.int32, s.shape, 1)
        ki = jax.lax.broadcasted_iota(jnp.int32, s.shape, 2)
        s = jnp.where(ki <= qi, s, jnp.float32(-1e9))

    s = s - jnp.max(s, axis=-1, keepdims=True)
    p = jnp.exp(s)
    p = p * pl.reciprocal(jnp.sum(p, axis=-1, keepdims=True), approx=True)

    ctx = jnp.einsum('hqk,hkd->hqd', p.astype(jnp.bfloat16), v.astype(jnp.bfloat16),
                     preferred_element_type=jnp.float32)
    out = jnp.einsum('hqd,hdm->hqm', ctx.astype(jnp.bfloat16), wo,
                     preferred_element_type=jnp.float32)
    return jnp.sum(out, axis=0)                                  # (Sq, D) f32


def _add_layer_norm(x, residual, gamma, beta):
    """(dropout(x) + residual) -> LayerNorm over last dim (drop_rate=0)."""
    y = x + residual
    mean = jnp.mean(y, axis=-1, keepdims=True)
    var = jnp.mean(jnp.square(y - mean), axis=-1, keepdims=True)
    return (y - mean) * jax.lax.rsqrt(var + jnp.float32(1e-5)) * gamma + beta


def _ffn_block(x, w1, b1, w2, b2):
    """Position-wise feed-forward: Linear -> ReLU -> Linear (bf16 MXU, f32 acc)."""
    h = jnp.dot(x.astype(jnp.bfloat16), w1, preferred_element_type=jnp.float32) + b1
    h = jnp.maximum(h, 0.0)
    return jnp.dot(h.astype(jnp.bfloat16), w2, preferred_element_type=jnp.float32) + b2


# ----------------------------- fused Pallas kernel -----------------------------

def _transformer_kernel(src_ref, tgt_ref,
                        e_wq, e_wk, e_wv, e_wo,
                        m_wq, m_wk, m_wv, m_wo,
                        c_wq, c_wk, c_wv, c_wo,
                        e_w1, e_b1, e_w2, e_b2,
                        d_w1, d_b1, d_w2, d_b2,
                        gamma_ref, beta_ref, wvocab_ref,
                        o_ref, *, dk):
    """Whole encoder layer + decoder layer + vocab projection for one batch
    element; every intermediate stays on-chip."""
    gamma = gamma_ref[...]
    beta = beta_ref[...]

    # ---------------- encoder (one layer, no mask) ----------------
    x = src_ref[0]                                               # (Ss, D) f32
    t = _mha_block(x, x, e_wq[...], e_wk[...], e_wv[...], e_wo[...],
                   causal=False, dk=dk)
    x1 = _add_layer_norm(t, x, gamma, beta)
    f = _ffn_block(x1, e_w1[...], e_b1[...], e_w2[...], e_b2[...])
    enc = _add_layer_norm(f, x1, gamma, beta)                    # encoder output

    # ---------------- decoder (one layer) ----------------
    y = tgt_ref[0]                                               # (St, D) f32
    t = _mha_block(y, y, m_wq[...], m_wk[...], m_wv[...], m_wo[...],
                   causal=True, dk=dk)                           # masked self-attn
    y1 = _add_layer_norm(t, y, gamma, beta)
    t = _mha_block(y1, enc, c_wq[...], c_wk[...], c_wv[...], c_wo[...],
                   causal=False, dk=dk)                          # cross-attn (Q=dec, K/V=enc)
    y2 = _add_layer_norm(t, y1, gamma, beta)
    f = _ffn_block(y2, d_w1[...], d_b1[...], d_w2[...], d_b2[...])
    y3 = _add_layer_norm(f, y2, gamma, beta)

    # ---------------- vocab projection (lane-dense output, V multiple of 128) ----
    o_ref[0] = jnp.dot(y3.astype(jnp.bfloat16), wvocab_ref[...],
                       preferred_element_type=jnp.float32)


# ----------------------------- plain-JAX glue -----------------------------

def position_embedding(seq_len, d_model):
    """Standard sinusoidal positional encoding, shape (seq_len, d_model)."""
    pos = jnp.arange(seq_len, dtype=jnp.float32)[:, None]
    i = jnp.arange(d_model, dtype=jnp.float32)[None, :]
    angle = pos / jnp.power(10000.0, (2.0 * jnp.floor(i / 2.0)) / d_model)
    return jnp.where(jnp.mod(jnp.arange(d_model), 2) == 0,
                     jnp.sin(angle), jnp.cos(angle)).astype(jnp.float32)


def init_params(key, src_vocab, tgt_vocab, d_model, dk, dv, heads, ff_size):
    ks = iter(jax.random.split(key, 32))

    def nrm(shape, dtype=jnp.bfloat16, s=0.05):
        return (s * jax.random.normal(next(ks), shape, dtype=jnp.float32)).astype(dtype)

    def emb(vocab):
        e = nrm((vocab, d_model), jnp.float32)
        return e.at[0].set(0.0)                     # padding_idx = 0

    def attn():
        # per-head weight layout: heads on the leading (batch) axis
        return dict(wq=nrm((heads, d_model, dk)), wk=nrm((heads, d_model, dk)),
                    wv=nrm((heads, d_model, dv)), wo=nrm((heads, dv, d_model)))

    def ff():
        return dict(w1=nrm((d_model, ff_size)), b1=jnp.zeros((1, ff_size), jnp.float32),
                    w2=nrm((ff_size, d_model)), b2=jnp.zeros((1, d_model), jnp.float32))

    return dict(
        src_emb=emb(src_vocab), tgt_emb=emb(tgt_vocab),
        enc_attn=attn(), dec_mask_attn=attn(), dec_attn=attn(),
        enc_ff=ff(), dec_ff=ff(),
        ln_gamma=jnp.ones((1, d_model), jnp.float32),   # single shared LayerNorm,
        ln_beta=jnp.zeros((1, d_model), jnp.float32),   # as in the PyTorch module
        w_vocab=nrm((d_model, tgt_vocab)),
    )


def transformer_forward(params, src_ids, tgt_ids, *, d_model, dk, dv, heads):
    B, Ss = src_ids.shape
    _, St = tgt_ids.shape
    D = d_model
    H = heads
    F = params["enc_ff"]["w1"].shape[1]
    V = params["w_vocab"].shape[1]

    # embeddings + sinusoidal positional encoding (dropout p=0 => identity)
    src_x = (params["src_emb"][src_ids] + position_embedding(Ss, D)[None]).astype(jnp.float32)
    tgt_x = (params["tgt_emb"][tgt_ids] + position_embedding(St, D)[None]).astype(jnp.float32)

    def full(shape):
        # constant index map: weight blocks are not re-fetched between grid steps
        return pl.BlockSpec(shape, lambda b: (0,) * len(shape))

    def attn_specs():
        return [full((H, D, dk)), full((H, D, dk)), full((H, D, dv)), full((H, dv, D))]

    def ff_specs():
        return [full((D, F)), full((1, F)), full((F, D)), full((1, D))]

    in_specs = (
        [pl.BlockSpec((1, Ss, D), lambda b: (b, 0, 0)),
         pl.BlockSpec((1, St, D), lambda b: (b, 0, 0))]
        + attn_specs() + attn_specs() + attn_specs()
        + ff_specs() + ff_specs()
        + [full((1, D)), full((1, D)), full((D, V))]
    )

    ae, am, ac = params["enc_attn"], params["dec_mask_attn"], params["dec_attn"]
    fe, fd = params["enc_ff"], params["dec_ff"]
    args = (src_x, tgt_x,
            ae["wq"], ae["wk"], ae["wv"], ae["wo"],
            am["wq"], am["wk"], am["wv"], am["wo"],
            ac["wq"], ac["wk"], ac["wv"], ac["wo"],
            fe["w1"], fe["b1"], fe["w2"], fe["b2"],
            fd["w1"], fd["b1"], fd["w2"], fd["b2"],
            params["ln_gamma"], params["ln_beta"], params["w_vocab"])

    kern = functools.partial(_transformer_kernel, dk=dk)
    return pl.pallas_call(
        kern,
        out_shape=jax.ShapeDtypeStruct((B, St, V), jnp.float32),
        grid=(B,),
        in_specs=in_specs,
        out_specs=pl.BlockSpec((1, St, V), lambda b: (b, 0, 0)),
        compiler_params=pltpu.CompilerParams(
            dimension_semantics=("parallel",)),
    )(*args)
    # TODO(synk): compute_loss (weighted CrossEntropyLoss) is training-only and not part of forward().


# ----------------------------- main -----------------------------

if __name__ == "__main__":
    SRC_VOCAB, TGT_VOCAB = 96, 128
    D_MODEL, DK, DV, HEADS, FF = 32, 8, 8, 4, 64
    B, S_SRC, S_TGT = 2, 8, 8

    key = jax.random.PRNGKey(0)
    kp, ki, ko = jax.random.split(key, 3)
    params = init_params(kp, SRC_VOCAB, TGT_VOCAB, D_MODEL, DK, DV, HEADS, FF)
    src_ids = jax.random.randint(ki, (B, S_SRC), 1, SRC_VOCAB, dtype=jnp.int32)
    tgt_ids = jax.random.randint(ko, (B, S_TGT), 1, TGT_VOCAB, dtype=jnp.int32)

    fwd = jax.jit(functools.partial(transformer_forward,
                                    d_model=D_MODEL, dk=DK, dv=DV, heads=HEADS))
    logits = fwd(params, src_ids, tgt_ids)
    logits = jax.block_until_ready(logits)
    assert logits.shape == (B, S_TGT, TGT_VOCAB), logits.shape
    assert bool(jnp.all(jnp.isfinite(logits)))
    print("KERNEL_OK")
</pallas_src>

<mosaic_0001>
module attributes {stable_mosaic.version = 11 : i64} {
  func.func @_transformer_kernel(%arg0: i32, %arg1: memref<1x8x32xf32, #tpu.memory_space<vmem>>, %arg2: memref<1x8x32xf32, #tpu.memory_space<vmem>>, %arg3: memref<4x32x8xbf16, #tpu.memory_space<vmem>>, %arg4: memref<4x32x8xbf16, #tpu.memory_space<vmem>>, %arg5: memref<4x32x8xbf16, #tpu.memory_space<vmem>>, %arg6: memref<4x8x32xbf16, #tpu.memory_space<vmem>>, %arg7: memref<4x32x8xbf16, #tpu.memory_space<vmem>>, %arg8: memref<4x32x8xbf16, #tpu.memory_space<vmem>>, %arg9: memref<4x32x8xbf16, #tpu.memory_space<vmem>>, %arg10: memref<4x8x32xbf16, #tpu.memory_space<vmem>>, %arg11: memref<4x32x8xbf16, #tpu.memory_space<vmem>>, %arg12: memref<4x32x8xbf16, #tpu.memory_space<vmem>>, %arg13: memref<4x32x8xbf16, #tpu.memory_space<vmem>>, %arg14: memref<4x8x32xbf16, #tpu.memory_space<vmem>>, %arg15: memref<32x64xbf16, #tpu.memory_space<vmem>>, %arg16: memref<1x64xf32, #tpu.memory_space<vmem>>, %arg17: memref<64x32xbf16, #tpu.memory_space<vmem>>, %arg18: memref<1x32xf32, #tpu.memory_space<vmem>>, %arg19: memref<32x64xbf16, #tpu.memory_space<vmem>>, %arg20: memref<1x64xf32, #tpu.memory_space<vmem>>, %arg21: memref<64x32xbf16, #tpu.memory_space<vmem>>, %arg22: memref<1x32xf32, #tpu.memory_space<vmem>>, %arg23: memref<1x32xf32, #tpu.memory_space<vmem>>, %arg24: memref<1x32xf32, #tpu.memory_space<vmem>>, %arg25: memref<32x128xbf16, #tpu.memory_space<vmem>>, %arg26: memref<1x8x128xf32, #tpu.memory_space<vmem>>) attributes {dimension_semantics = [#tpu.dimension_semantics<parallel>], iteration_bounds = array<i64: 2>, scalar_prefetch = 0 : i64, scratch_operands = 0 : i64, tpu.core_type = #tpu.core_type<tc>, window_params = [{transform_indices = @transform_0, window_bounds = array<i64: 1, 8, 32>}, {transform_indices = @transform_1, window_bounds = array<i64: 1, 8, 32>}, {pipeline_mode = #tpu.pipeline_mode<synchronous>, transform_indices = @transform_2, window_bounds = array<i64: 4, 32, 8>}, {pipeline_mode = #tpu.pipeline_mode<synchronous>, transform_indices = @transform_3, window_bounds = array<i64: 4, 32, 8>}, {pipeline_mode = #tpu.pipeline_mode<synchronous>, transform_indices = @transform_4, window_bounds = array<i64: 4, 32, 8>}, {pipeline_mode = #tpu.pipeline_mode<synchronous>, transform_indices = @transform_5, window_bounds = array<i64: 4, 8, 32>}, {pipeline_mode = #tpu.pipeline_mode<synchronous>, transform_indices = @transform_6, window_bounds = array<i64: 4, 32, 8>}, {pipeline_mode = #tpu.pipeline_mode<synchronous>, transform_indices = @transform_7, window_bounds = array<i64: 4, 32, 8>}, {pipeline_mode = #tpu.pipeline_mode<synchronous>, transform_indices = @transform_8, window_bounds = array<i64: 4, 32, 8>}, {pipeline_mode = #tpu.pipeline_mode<synchronous>, transform_indices = @transform_9, window_bounds = array<i64: 4, 8, 32>}, {pipeline_mode = #tpu.pipeline_mode<synchronous>, transform_indices = @transform_10, window_bounds = array<i64: 4, 32, 8>}, {pipeline_mode = #tpu.pipeline_mode<synchronous>, transform_indices = @transform_11, window_bounds = array<i64: 4, 32, 8>}, {pipeline_mode = #tpu.pipeline_mode<synchronous>, transform_indices = @transform_12, window_bounds = array<i64: 4, 32, 8>}, {pipeline_mode = #tpu.pipeline_mode<synchronous>, transform_indices = @transform_13, window_bounds = array<i64: 4, 8, 32>}, {pipeline_mode = #tpu.pipeline_mode<synchronous>, transform_indices = @transform_14, window_bounds = array<i64: 32, 64>}, {pipeline_mode = #tpu.pipeline_mode<synchronous>, transform_indices = @transform_15, window_bounds = array<i64: 1, 64>}, {pipeline_mode = #tpu.pipeline_mode<synchronous>, transform_indices = @transform_16, window_bounds = array<i64: 64, 32>}, {pipeline_mode = #tpu.pipeline_mode<synchronous>, transform_indices = @transform_17, window_bounds = array<i64: 1, 32>}, {pipeline_mode = #tpu.pipeline_mode<synchronous>, transform_indices = @transform_18, window_bounds = array<i64: 32, 64>}, {pipeline_mode = #tpu.pipeline_mode<synchronous>, transform_indices = @transform_19, window_bounds = array<i64: 1, 64>}, {pipeline_mode = #tpu.pipeline_mode<synchronous>, transform_indices = @transform_20, window_bounds = array<i64: 64, 32>}, {pipeline_mode = #tpu.pipeline_mode<synchronous>, transform_indices = @transform_21, window_bounds = array<i64: 1, 32>}, {pipeline_mode = #tpu.pipeline_mode<synchronous>, transform_indices = @transform_22, window_bounds = array<i64: 1, 32>}, {pipeline_mode = #tpu.pipeline_mode<synchronous>, transform_indices = @transform_23, window_bounds = array<i64: 1, 32>}, {pipeline_mode = #tpu.pipeline_mode<synchronous>, transform_indices = @transform_24, window_bounds = array<i64: 32, 128>}, {transform_indices = @transform_25, window_bounds = array<i64: 1, 8, 128>}]} {
    %c0 = arith.constant 0 : index
    %c0_0 = arith.constant 0 : index
    %0 = vector.load %arg23[%c0, %c0_0] : memref<1x32xf32, #tpu.memory_space<vmem>>, vector<1x32xf32>
    %c0_1 = arith.constant 0 : index
    %c0_2 = arith.constant 0 : index
    %1 = vector.load %arg24[%c0_1, %c0_2] : memref<1x32xf32, #tpu.memory_space<vmem>>, vector<1x32xf32>
    %c0_3 = arith.constant 0 : index
    %c0_4 = arith.constant 0 : index
    %c0_5 = arith.constant 0 : index
    %2 = vector.load %arg1[%c0_3, %c0_4, %c0_5] : memref<1x8x32xf32, #tpu.memory_space<vmem>>, vector<1x8x32xf32>
    %3 = vector.shape_cast %2 : vector<1x8x32xf32> to vector<8x32xf32>
    %c0_6 = arith.constant 0 : index
    %c0_7 = arith.constant 0 : index
    %c0_8 = arith.constant 0 : index
    %4 = vector.load %arg3[%c0_6, %c0_7, %c0_8] : memref<4x32x8xbf16, #tpu.memory_space<vmem>>, vector<4x32x8xbf16>
    %c0_9 = arith.constant 0 : index
    %c0_10 = arith.constant 0 : index
    %c0_11 = arith.constant 0 : index
    %5 = vector.load %arg4[%c0_9, %c0_10, %c0_11] : memref<4x32x8xbf16, #tpu.memory_space<vmem>>, vector<4x32x8xbf16>
    %c0_12 = arith.constant 0 : index
    %c0_13 = arith.constant 0 : index
    %c0_14 = arith.constant 0 : index
    %6 = vector.load %arg5[%c0_12, %c0_13, %c0_14] : memref<4x32x8xbf16, #tpu.memory_space<vmem>>, vector<4x32x8xbf16>
    %c0_15 = arith.constant 0 : index
    %c0_16 = arith.constant 0 : index
    %c0_17 = arith.constant 0 : index
    %7 = vector.load %arg6[%c0_15, %c0_16, %c0_17] : memref<4x8x32xbf16, #tpu.memory_space<vmem>>, vector<4x8x32xbf16>
    %8 = arith.truncf %3 : vector<8x32xf32> to vector<8x32xbf16>
    %9 = vector.shape_cast %8 : vector<8x32xbf16> to vector<1x8x32xbf16>
    %10 = vector.shape_cast %9 : vector<1x8x32xbf16> to vector<1x8x32xbf16>
    %11 = vector.broadcast %10 : vector<1x8x32xbf16> to vector<4x8x32xbf16>
    "tpu.trace_start"() <{level = 10 : i32, message = "hsd,hdk->hsk"}> : () -> ()
    %cst = arith.constant dense<0.000000e+00> : vector<4x8x8xf32>
    %12 = tpu.matmul %11, %4, %cst {dimension_numbers = #tpu.dot_dimension_numbers<[2], [1], [1], [2], [0, 0, 0, 1, 1, 2], [0], [0]>} : vector<4x8x32xbf16>, vector<4x32x8xbf16>, vector<4x8x8xf32> -> vector<4x8x8xf32>
    %cst_18 = arith.constant dense<0.000000e+00> : vector<4x8x8xf32>
    %13 = tpu.matmul %11, %5, %cst_18 {dimension_numbers = #tpu.dot_dimension_numbers<[2], [1], [1], [2], [0, 0, 0, 1, 1, 2], [0], [0]>} : vector<4x8x32xbf16>, vector<4x32x8xbf16>, vector<4x8x8xf32> -> vector<4x8x8xf32>
    %cst_19 = arith.constant dense<0.000000e+00> : vector<4x8x8xf32>
    %14 = tpu.matmul %11, %6, %cst_19 {dimension_numbers = #tpu.dot_dimension_numbers<[2], [1], [1], [2], [0, 0, 0, 1, 1, 2], [0], [0]>} : vector<4x8x32xbf16>, vector<4x32x8xbf16>, vector<4x8x8xf32> -> vector<4x8x8xf32>
    "tpu.trace_stop"() : () -> ()
    %cst_20 = arith.constant 0.353553385 : f32
    %15 = vector.broadcast %cst_20 : f32 to vector<4x8x8xf32>
    %16 = arith.mulf %12, %15 : vector<4x8x8xf32>
    %17 = arith.truncf %16 : vector<4x8x8xf32> to vector<4x8x8xbf16>
    %18 = arith.truncf %13 : vector<4x8x8xf32> to vector<4x8x8xbf16>
    "tpu.trace_start"() <{level = 10 : i32, message = "hqd,hkd->hqk"}> : () -> ()
    %cst_21 = arith.constant dense<0.000000e+00> : vector<4x8x8xf32>
    %19 = tpu.matmul %17, %18, %cst_21 {dimension_numbers = #tpu.dot_dimension_numbers<[2], [2], [1], [1], [0, 0, 0, 1, 1, 1], [0], [0]>} : vector<4x8x8xbf16>, vector<4x8x8xbf16>, vector<4x8x8xf32> -> vector<4x8x8xf32>
    "tpu.trace_stop"() : () -> ()
    %cst_22 = arith.constant dense<0xFF800000> : vector<4x8xf32>
    %20 = vector.multi_reduction <maximumf>, %19, %cst_22 [2] : vector<4x8x8xf32> to vector<4x8xf32>
    %21 = vector.shape_cast %20 : vector<4x8xf32> to vector<4x8x1xf32>
    %22 = vector.broadcast %21 : vector<4x8x1xf32> to vector<4x8x8xf32>
    %23 = arith.subf %19, %22 : vector<4x8x8xf32>
    %24 = math.exp %23 : vector<4x8x8xf32>
    %cst_23 = arith.constant dense<0.000000e+00> : vector<4x8xf32>
    %25 = vector.multi_reduction <add>, %24, %cst_23 [2] : vector<4x8x8xf32> to vector<4x8xf32>
    %26 = vector.shape_cast %25 : vector<4x8xf32> to vector<4x8x1xf32>
    %27 = tpu.reciprocal %26 {approx = true} : vector<4x8x1xf32> -> vector<4x8x1xf32>
    %28 = vector.broadcast %27 : vector<4x8x1xf32> to vector<4x8x8xf32>
    %29 = arith.mulf %24, %28 : vector<4x8x8xf32>
    %30 = arith.truncf %29 : vector<4x8x8xf32> to vector<4x8x8xbf16>
    %31 = arith.truncf %14 : vector<4x8x8xf32> to vector<4x8x8xbf16>
    "tpu.trace_start"() <{level = 10 : i32, message = "hqk,hkd->hqd"}> : () -> ()
    %cst_24 = arith.constant dense<0.000000e+00> : vector<4x8x8xf32>
    %32 = tpu.matmul %30, %31, %cst_24 {dimension_numbers = #tpu.dot_dimension_numbers<[2], [1], [1], [2], [0, 0, 0, 1, 1, 2], [0], [0]>} : vector<4x8x8xbf16>, vector<4x8x8xbf16>, vector<4x8x8xf32> -> vector<4x8x8xf32>
    "tpu.trace_stop"() : () -> ()
    %33 = arith.truncf %32 : vector<4x8x8xf32> to vector<4x8x8xbf16>
    "tpu.trace_start"() <{level = 10 : i32, message = "hqd,hdm->hqm"}> : () -> ()
    %cst_25 = arith.constant dense<0.000000e+00> : vector<4x8x32xf32>
    %34 = tpu.matmul %33, %7, %cst_25 {dimension_numbers = #tpu.dot_dimension_numbers<[2], [1], [1], [2], [0, 0, 0, 1, 1, 2], [0], [0]>} : vector<4x8x8xbf16>, vector<4x8x32xbf16>, vector<4x8x32xf32> -> vector<4x8x32xf32>
    "tpu.trace_stop"() : () -> ()
    %cst_26 = arith.constant dense<0.000000e+00> : vector<8x32xf32>
    %35 = vector.multi_reduction <add>, %34, %cst_26 [0] : vector<4x8x32xf32> to vector<8x32xf32>
    %36 = arith.addf %35, %3 : vector<8x32xf32>
    %cst_27 = arith.constant dense<0.000000e+00> : vector<8xf32>
    %37 = vector.multi_reduction <add>, %36, %cst_27 [1] : vector<8x32xf32> to vector<8xf32>
    %38 = vector.shape_cast %37 : vector<8xf32> to vector<8x1xf32>
    %cst_28 = arith.constant 3.200000e+01 : f32
    %39 = vector.broadcast %cst_28 : f32 to vector<8x1xf32>
    %40 = arith.divf %38, %39 : vector<8x1xf32>
    %41 = vector.broadcast %40 : vector<8x1xf32> to vector<8x32xf32>
    %42 = arith.subf %36, %41 : vector<8x32xf32>
    %43 = arith.mulf %42, %42 : vector<8x32xf32>
    %cst_29 = arith.constant dense<0.000000e+00> : vector<8xf32>
    %44 = vector.multi_reduction <add>, %43, %cst_29 [1] : vector<8x32xf32> to vector<8xf32>
    %45 = vector.shape_cast %44 : vector<8xf32> to vector<8x1xf32>
    %cst_30 = arith.constant 3.200000e+01 : f32
    %46 = vector.broadcast %cst_30 : f32 to vector<8x1xf32>
    %47 = arith.divf %45, %46 : vector<8x1xf32>
    %48 = vector.broadcast %40 : vector<8x1xf32> to vector<8x32xf32>
    %49 = arith.subf %36, %48 : vector<8x32xf32>
    %cst_31 = arith.constant 9.99999974E-6 : f32
    %50 = vector.broadcast %cst_31 : f32 to vector<8x1xf32>
    %51 = arith.addf %47, %50 : vector<8x1xf32>
    %52 = math.rsqrt %51 : vector<8x1xf32>
    %53 = vector.broadcast %52 : vector<8x1xf32> to vector<8x32xf32>
    %54 = arith.mulf %49, %53 : vector<8x32xf32>
    %55 = vector.broadcast %0 : vector<1x32xf32> to vector<8x32xf32>
    %56 = arith.mulf %54, %55 : vector<8x32xf32>
    %57 = vector.broadcast %1 : vector<1x32xf32> to vector<8x32xf32>
    %58 = arith.addf %56, %57 : vector<8x32xf32>
    %c0_32 = arith.constant 0 : index
    %c0_33 = arith.constant 0 : index
    %59 = vector.load %arg15[%c0_32, %c0_33] : memref<32x64xbf16, #tpu.memory_space<vmem>>, vector<32x64xbf16>
    %c0_34 = arith.constant 0 : index
    %c0_35 = arith.constant 0 : index
    %60 = vector.load %arg16[%c0_34, %c0_35] : memref<1x64xf32, #tpu.memory_space<vmem>>, vector<1x64xf32>
    %c0_36 = arith.constant 0 : index
    %c0_37 = arith.constant 0 : index
    %61 = vector.load %arg17[%c0_36, %c0_37] : memref<64x32xbf16, #tpu.memory_space<vmem>>, vector<64x32xbf16>
    %c0_38 = arith.constant 0 : index
    %c0_39 = arith.constant 0 : index
    %62 = vector.load %arg18[%c0_38, %c0_39] : memref<1x32xf32, #tpu.memory_space<vmem>>, vector<1x32xf32>
    %63 = arith.truncf %58 : vector<8x32xf32> to vector<8x32xbf16>
    %cst_40 = arith.constant dense<0.000000e+00> : vector<8x64xf32>
    %64 = tpu.matmul %63, %59, %cst_40 {dimension_numbers = #tpu.dot_dimension_numbers<[1], [0], [0], [1], [0, 0, 1, 1], [], []>} : vector<8x32xbf16>, vector<32x64xbf16>, vector<8x64xf32> -> vector<8x64xf32>
    %65 = vector.broadcast %60 : vector<1x64xf32> to vector<8x64xf32>
    %66 = arith.addf %64, %65 : vector<8x64xf32>
    %cst_41 = arith.constant 0.000000e+00 : f32
    %67 = vector.broadcast %cst_41 : f32 to vector<8x64xf32>
    %68 = arith.maximumf %66, %67 : vector<8x64xf32>
    %69 = arith.truncf %68 : vector<8x64xf32> to vector<8x64xbf16>
    %cst_42 = arith.constant dense<0.000000e+00> : vector<8x32xf32>
    %70 = tpu.matmul %69, %61, %cst_42 {dimension_numbers = #tpu.dot_dimension_numbers<[1], [0], [0], [1], [0, 0, 1, 1], [], []>} : vector<8x64xbf16>, vector<64x32xbf16>, vector<8x32xf32> -> vector<8x32xf32>
    %71 = vector.broadcast %62 : vector<1x32xf32> to vector<8x32xf32>
    %72 = arith.addf %70, %71 : vector<8x32xf32>
    %73 = arith.addf %72, %58 : vector<8x32xf32>
    %cst_43 = arith.constant dense<0.000000e+00> : vector<8xf32>
    %74 = vector.multi_reduction <add>, %73, %cst_43 [1] : vector<8x32xf32> to vector<8xf32>
    %75 = vector.shape_cast %74 : vector<8xf32> to vector<8x1xf32>
    %cst_44 = arith.constant 3.200000e+01 : f32
    %76 = vector.broadcast %cst_44 : f32 to vector<8x1xf32>
    %77 = arith.divf %75, %76 : vector<8x1xf32>
    %78 = vector.broadcast %77 : vector<8x1xf32> to vector<8x32xf32>
    %79 = arith.subf %73, %78 : vector<8x32xf32>
    %80 = arith.mulf %79, %79 : vector<8x32xf32>
    %cst_45 = arith.constant dense<0.000000e+00> : vector<8xf32>
    %81 = vector.multi_reduction <add>, %80, %cst_45 [1] : vector<8x32xf32> to vector<8xf32>
    %82 = vector.shape_cast %81 : vector<8xf32> to vector<8x1xf32>
    %cst_46 = arith.constant 3.200000e+01 : f32
    %83 = vector.broadcast %cst_46 : f32 to vector<8x1xf32>
    %84 = arith.divf %82, %83 : vector<8x1xf32>
    %85 = vector.broadcast %77 : vector<8x1xf32> to vector<8x32xf32>
    %86 = arith.subf %73, %85 : vector<8x32xf32>
    %cst_47 = arith.constant 9.99999974E-6 : f32
    %87 = vector.broadcast %cst_47 : f32 to vector<8x1xf32>
    %88 = arith.addf %84, %87 : vector<8x1xf32>
    %89 = math.rsqrt %88 : vector<8x1xf32>
    %90 = vector.broadcast %89 : vector<8x1xf32> to vector<8x32xf32>
    %91 = arith.mulf %86, %90 : vector<8x32xf32>
    %92 = vector.broadcast %0 : vector<1x32xf32> to vector<8x32xf32>
    %93 = arith.mulf %91, %92 : vector<8x32xf32>
    %94 = vector.broadcast %1 : vector<1x32xf32> to vector<8x32xf32>
    %95 = arith.addf %93, %94 : vector<8x32xf32>
    %c0_48 = arith.constant 0 : index
    %c0_49 = arith.constant 0 : index
    %c0_50 = arith.constant 0 : index
    %96 = vector.load %arg2[%c0_48, %c0_49, %c0_50] : memref<1x8x32xf32, #tpu.memory_space<vmem>>, vector<1x8x32xf32>
    %97 = vector.shape_cast %96 : vector<1x8x32xf32> to vector<8x32xf32>
    %c0_51 = arith.constant 0 : index
    %c0_52 = arith.constant 0 : index
    %c0_53 = arith.constant 0 : index
    %98 = vector.load %arg7[%c0_51, %c0_52, %c0_53] : memref<4x32x8xbf16, #tpu.memory_space<vmem>>, vector<4x32x8xbf16>
    %c0_54 = arith.constant 0 : index
    %c0_55 = arith.constant 0 : index
    %c0_56 = arith.constant 0 : index
    %99 = vector.load %arg8[%c0_54, %c0_55, %c0_56] : memref<4x32x8xbf16, #tpu.memory_space<vmem>>, vector<4x32x8xbf16>
    %c0_57 = arith.constant 0 : index
    %c0_58 = arith.constant 0 : index
    %c0_59 = arith.constant 0 : index
    %100 = vector.load %arg9[%c0_57, %c0_58, %c0_59] : memref<4x32x8xbf16, #tpu.memory_space<vmem>>, vector<4x32x8xbf16>
    %c0_60 = arith.constant 0 : index
    %c0_61 = arith.constant 0 : index
    %c0_62 = arith.constant 0 : index
    %101 = vector.load %arg10[%c0_60, %c0_61, %c0_62] : memref<4x8x32xbf16, #tpu.memory_space<vmem>>, vector<4x8x32xbf16>
    %102 = arith.truncf %97 : vector<8x32xf32> to vector<8x32xbf16>
    %103 = vector.shape_cast %102 : vector<8x32xbf16> to vector<1x8x32xbf16>
    %104 = vector.shape_cast %103 : vector<1x8x32xbf16> to vector<1x8x32xbf16>
    %105 = vector.broadcast %104 : vector<1x8x32xbf16> to vector<4x8x32xbf16>
    "tpu.trace_start"() <{level = 10 : i32, message = "hsd,hdk->hsk"}> : () -> ()
    %cst_63 = arith.constant dense<0.000000e+00> : vector<4x8x8xf32>
    %106 = tpu.matmul %105, %98, %cst_63 {dimension_numbers = #tpu.dot_dimension_numbers<[2], [1], [1], [2], [0, 0, 0, 1, 1, 2], [0], [0]>} : vector<4x8x32xbf16>, vector<4x32x8xbf16>, vector<4x8x8xf32> -> vector<4x8x8xf32>
    %cst_64 = arith.constant dense<0.000000e+00> : vector<4x8x8xf32>
    %107 = tpu.matmul %105, %99, %cst_64 {dimension_numbers = #tpu.dot_dimension_numbers<[2], [1], [1], [2], [0, 0, 0, 1, 1, 2], [0], [0]>} : vector<4x8x32xbf16>, vector<4x32x8xbf16>, vector<4x8x8xf32> -> vector<4x8x8xf32>
    %cst_65 = arith.constant dense<0.000000e+00> : vector<4x8x8xf32>
    %108 = tpu.matmul %105, %100, %cst_65 {dimension_numbers = #tpu.dot_dimension_numbers<[2], [1], [1], [2], [0, 0, 0, 1, 1, 2], [0], [0]>} : vector<4x8x32xbf16>, vector<4x32x8xbf16>, vector<4x8x8xf32> -> vector<4x8x8xf32>
    "tpu.trace_stop"() : () -> ()
    %cst_66 = arith.constant 0.353553385 : f32
    %109 = vector.broadcast %cst_66 : f32 to vector<4x8x8xf32>
    %110 = arith.mulf %106, %109 : vector<4x8x8xf32>
    %111 = arith.truncf %110 : vector<4x8x8xf32> to vector<4x8x8xbf16>
    %112 = arith.truncf %107 : vector<4x8x8xf32> to vector<4x8x8xbf16>
    "tpu.trace_start"() <{level = 10 : i32, message = "hqd,hkd->hqk"}> : () -> ()
    %cst_67 = arith.constant dense<0.000000e+00> : vector<4x8x8xf32>
    %113 = tpu.matmul %111, %112, %cst_67 {dimension_numbers = #tpu.dot_dimension_numbers<[2], [2], [1], [1], [0, 0, 0, 1, 1, 1], [0], [0]>} : vector<4x8x8xbf16>, vector<4x8x8xbf16>, vector<4x8x8xf32> -> vector<4x8x8xf32>
    "tpu.trace_stop"() : () -> ()
    %114 = tpu.iota {dimensions = array<i32: 1>} : vector<4x8x8xi32>
    %115 = tpu.iota {dimensions = array<i32: 2>} : vector<4x8x8xi32>
    %116 = arith.cmpi sle, %115, %114 : vector<4x8x8xi32>
    %cst_68 = arith.constant -1.000000e+09 : f32
    %117 = vector.broadcast %cst_68 : f32 to vector<4x8x8xf32>
    %118 = arith.select %116, %113, %117 : vector<4x8x8xi1>, vector<4x8x8xf32>
    %cst_69 = arith.constant dense<0xFF800000> : vector<4x8xf32>
    %119 = vector.multi_reduction <maximumf>, %118, %cst_69 [2] : vector<4x8x8xf32> to vector<4x8xf32>
    %120 = vector.shape_cast %119 : vector<4x8xf32> to vector<4x8x1xf32>
    %121 = vector.broadcast %120 : vector<4x8x1xf32> to vector<4x8x8xf32>
    %122 = arith.subf %118, %121 : vector<4x8x8xf32>
    %123 = math.exp %122 : vector<4x8x8xf32>
    %cst_70 = arith.constant dense<0.000000e+00> : vector<4x8xf32>
    %124 = vector.multi_reduction <add>, %123, %cst_70 [2] : vector<4x8x8xf32> to vector<4x8xf32>
    %125 = vector.shape_cast %124 : vector<4x8xf32> to vector<4x8x1xf32>
    %126 = tpu.reciprocal %125 {approx = true} : vector<4x8x1xf32> -> vector<4x8x1xf32>
    %127 = vector.broadcast %126 : vector<4x8x1xf32> to vector<4x8x8xf32>
    %128 = arith.mulf %123, %127 : vector<4x8x8xf32>
    %129 = arith.truncf %128 : vector<4x8x8xf32> to vector<4x8x8xbf16>
    %130 = arith.truncf %108 : vector<4x8x8xf32> to vector<4x8x8xbf16>
    "tpu.trace_start"() <{level = 10 : i32, message = "hqk,hkd->hqd"}> : () -> ()
    %cst_71 = arith.constant dense<0.000000e+00> : vector<4x8x8xf32>
    %131 = tpu.matmul %129, %130, %cst_71 {dimension_numbers = #tpu.dot_dimension_numbers<[2], [1], [1], [2], [0, 0, 0, 1, 1, 2], [0], [0]>} : vector<4x8x8xbf16>, vector<4x8x8xbf16>, vector<4x8x8xf32> -> vector<4x8x8xf32>
    "tpu.trace_stop"() : () -> ()
    %132 = arith.truncf %131 : vector<4x8x8xf32> to vector<4x8x8xbf16>
    "tpu.trace_start"() <{level = 10 : i32, message = "hqd,hdm->hqm"}> : () -> ()
    %cst_72 = arith.constant dense<0.000000e+00> : vector<4x8x32xf32>
    %133 = tpu.matmul %132, %101, %cst_72 {dimension_numbers = #tpu.dot_dimension_numbers<[2], [1], [1], [2], [0, 0, 0, 1, 1, 2], [0], [0]>} : vector<4x8x8xbf16>, vector<4x8x32xbf16>, vector<4x8x32xf32> -> vector<4x8x32xf32>
    "tpu.trace_stop"() : () -> ()
    %cst_73 = arith.constant dense<0.000000e+00> : vector<8x32xf32>
    %134 = vector.multi_reduction <add>, %133, %cst_73 [0] : vector<4x8x32xf32> to vector<8x32xf32>
    %135 = arith.addf %134, %97 : vector<8x32xf32>
    %cst_74 = arith.constant dense<0.000000e+00> : vector<8xf32>
    %136 = vector.multi_reduction <add>, %135, %cst_74 [1] : vector<8x32xf32> to vector<8xf32>
    %137 = vector.shape_cast %136 : vector<8xf32> to vector<8x1xf32>
    %cst_75 = arith.constant 3.200000e+01 : f32
    %138 = vector.broadcast %cst_75 : f32 to vector<8x1xf32>
    %139 = arith.divf %137, %138 : vector<8x1xf32>
    %140 = vector.broadcast %139 : vector<8x1xf32> to vector<8x32xf32>
    %141 = arith.subf %135, %140 : vector<8x32xf32>
    %142 = arith.mulf %141, %141 : vector<8x32xf32>
    %cst_76 = arith.constant dense<0.000000e+00> : vector<8xf32>
    %143 = vector.multi_reduction <add>, %142, %cst_76 [1] : vector<8x32xf32> to vector<8xf32>
    %144 = vector.shape_cast %143 : vector<8xf32> to vector<8x1xf32>
    %cst_77 = arith.constant 3.200000e+01 : f32
    %145 = vector.broadcast %cst_77 : f32 to vector<8x1xf32>
    %146 = arith.divf %144, %145 : vector<8x1xf32>
    %147 = vector.broadcast %139 : vector<8x1xf32> to vector<8x32xf32>
    %148 = arith.subf %135, %147 : vector<8x32xf32>
    %cst_78 = arith.constant 9.99999974E-6 : f32
    %149 = vector.broadcast %cst_78 : f32 to vector<8x1xf32>
    %150 = arith.addf %146, %149 : vector<8x1xf32>
    %151 = math.rsqrt %150 : vector<8x1xf32>
    %152 = vector.broadcast %151 : vector<8x1xf32> to vector<8x32xf32>
    %153 = arith.mulf %148, %152 : vector<8x32xf32>
    %154 = vector.broadcast %0 : vector<1x32xf32> to vector<8x32xf32>
    %155 = arith.mulf %153, %154 : vector<8x32xf32>
    %156 = vector.broadcast %1 : vector<1x32xf32> to vector<8x32xf32>
    %157 = arith.addf %155, %156 : vector<8x32xf32>
    %c0_79 = arith.constant 0 : index
    %c0_80 = arith.constant 0 : index
    %c0_81 = arith.constant 0 : index
    %158 = vector.load %arg11[%c0_79, %c0_80, %c0_81] : memref<4x32x8xbf16, #tpu.memory_space<vmem>>, vector<4x32x8xbf16>
    %c0_82 = arith.constant 0 : index
    %c0_83 = arith.constant 0 : index
    %c0_84 = arith.constant 0 : index
    %159 = vector.load %arg12[%c0_82, %c0_83, %c0_84] : memref<4x32x8xbf16, #tpu.memory_space<vmem>>, vector<4x32x8xbf16>
    %c0_85 = arith.constant 0 : index
    %c0_86 = arith.constant 0 : index
    %c0_87 = arith.constant 0 : index
    %160 = vector.load %arg13[%c0_85, %c0_86, %c0_87] : memref<4x32x8xbf16, #tpu.memory_space<vmem>>, vector<4x32x8xbf16>
    %c0_88 = arith.constant 0 : index
    %c0_89 = arith.constant 0 : index
    %c0_90 = arith.constant 0 : index
    %161 = vector.load %arg14[%c0_88, %c0_89, %c0_90] : memref<4x8x32xbf16, #tpu.memory_space<vmem>>, vector<4x8x32xbf16>
    %162 = arith.truncf %95 : vector<8x32xf32> to vector<8x32xbf16>
    %163 = vector.shape_cast %162 : vector<8x32xbf16> to vector<1x8x32xbf16>
    %164 = vector.shape_cast %163 : vector<1x8x32xbf16> to vector<1x8x32xbf16>
    %165 = vector.broadcast %164 : vector<1x8x32xbf16> to vector<4x8x32xbf16>
    %166 = arith.truncf %157 : vector<8x32xf32> to vector<8x32xbf16>
    %167 = vector.shape_cast %166 : vector<8x32xbf16> to vector<1x8x32xbf16>
    %168 = vector.shape_cast %167 : vector<1x8x32xbf16> to vector<1x8x32xbf16>
    %169 = vector.broadcast %168 : vector<1x8x32xbf16> to vector<4x8x32xbf16>
    "tpu.trace_start"() <{level = 10 : i32, message = "hsd,hdk->hsk"}> : () -> ()
    %cst_91 = arith.constant dense<0.000000e+00> : vector<4x8x8xf32>
    %170 = tpu.matmul %169, %158, %cst_91 {dimension_numbers = #tpu.dot_dimension_numbers<[2], [1], [1], [2], [0, 0, 0, 1, 1, 2], [0], [0]>} : vector<4x8x32xbf16>, vector<4x32x8xbf16>, vector<4x8x8xf32> -> vector<4x8x8xf32>
    %cst_92 = arith.constant dense<0.000000e+00> : vector<4x8x8xf32>
    %171 = tpu.matmul %165, %159, %cst_92 {dimension_numbers = #tpu.dot_dimension_numbers<[2], [1], [1], [2], [0, 0, 0, 1, 1, 2], [0], [0]>} : vector<4x8x32xbf16>, vector<4x32x8xbf16>, vector<4x8x8xf32> -> vector<4x8x8xf32>
    %cst_93 = arith.constant dense<0.000000e+00> : vector<4x8x8xf32>
    %172 = tpu.matmul %165, %160, %cst_93 {dimension_numbers = #tpu.dot_dimension_numbers<[2], [1], [1], [2], [0, 0, 0, 1, 1, 2], [0], [0]>} : vector<4x8x32xbf16>, vector<4x32x8xbf16>, vector<4x8x8xf32> -> vector<4x8x8xf32>
    "tpu.trace_stop"() : () -> ()
    %cst_94 = arith.constant 0.353553385 : f32
    %173 = vector.broadcast %cst_94 : f32 to vector<4x8x8xf32>
    %174 = arith.mulf %170, %173 : vector<4x8x8xf32>
    %175 = arith.truncf %174 : vector<4x8x8xf32> to vector<4x8x8xbf16>
    %176 = arith.truncf %171 : vector<4x8x8xf32> to vector<4x8x8xbf16>
    "tpu.trace_start"() <{level = 10 : i32, message = "hqd,hkd->hqk"}> : () -> ()
    %cst_95 = arith.constant dense<0.000000e+00> : vector<4x8x8xf32>
    %177 = tpu.matmul %175, %176, %cst_95 {dimension_numbers = #tpu.dot_dimension_numbers<[2], [2], [1], [1], [0, 0, 0, 1, 1, 1], [0], [0]>} : vector<4x8x8xbf16>, vector<4x8x8xbf16>, vector<4x8x8xf32> -> vector<4x8x8xf32>
    "tpu.trace_stop"() : () -> ()
    %cst_96 = arith.constant dense<0xFF800000> : vector<4x8xf32>
    %178 = vector.multi_reduction <maximumf>, %177, %cst_96 [2] : vector<4x8x8xf32> to vector<4x8xf32>
    %179 = vector.shape_cast %178 : vector<4x8xf32> to vector<4x8x1xf32>
    %180 = vector.broadcast %179 : vector<4x8x1xf32> to vector<4x8x8xf32>
    %181 = arith.subf %177, %180 : vector<4x8x8xf32>
    %182 = math.exp %181 : vector<4x8x8xf32>
    %cst_97 = arith.constant dense<0.000000e+00> : vector<4x8xf32>
    %183 = vector.multi_reduction <add>, %182, %cst_97 [2] : vector<4x8x8xf32> to vector<4x8xf32>
    %184 = vector.shape_cast %183 : vector<4x8xf32> to vector<4x8x1xf32>
    %185 = tpu.reciprocal %184 {approx = true} : vector<4x8x1xf32> -> vector<4x8x1xf32>
    %186 = vector.broadcast %185 : vector<4x8x1xf32> to vector<4x8x8xf32>
    %187 = arith.mulf %182, %186 : vector<4x8x8xf32>
    %188 = arith.truncf %187 : vector<4x8x8xf32> to vector<4x8x8xbf16>
    %189 = arith.truncf %172 : vector<4x8x8xf32> to vector<4x8x8xbf16>
    "tpu.trace_start"() <{level = 10 : i32, message = "hqk,hkd->hqd"}> : () -> ()
    %cst_98 = arith.constant dense<0.000000e+00> : vector<4x8x8xf32>
    %190 = tpu.matmul %188, %189, %cst_98 {dimension_numbers = #tpu.dot_dimension_numbers<[2], [1], [1], [2], [0, 0, 0, 1, 1, 2], [0], [0]>} : vector<4x8x8xbf16>, vector<4x8x8xbf16>, vector<4x8x8xf32> -> vector<4x8x8xf32>
    "tpu.trace_stop"() : () -> ()
    %191 = arith.truncf %190 : vector<4x8x8xf32> to vector<4x8x8xbf16>
    "tpu.trace_start"() <{level = 10 : i32, message = "hqd,hdm->hqm"}> : () -> ()
    %cst_99 = arith.constant dense<0.000000e+00> : vector<4x8x32xf32>
    %192 = tpu.matmul %191, %161, %cst_99 {dimension_numbers = #tpu.dot_dimension_numbers<[2], [1], [1], [2], [0, 0, 0, 1, 1, 2], [0], [0]>} : vector<4x8x8xbf16>, vector<4x8x32xbf16>, vector<4x8x32xf32> -> vector<4x8x32xf32>
    "tpu.trace_stop"() : () -> ()
    %cst_100 = arith.constant dense<0.000000e+00> : vector<8x32xf32>
    %193 = vector.multi_reduction <add>, %192, %cst_100 [0] : vector<4x8x32xf32> to vector<8x32xf32>
    %194 = arith.addf %193, %157 : vector<8x32xf32>
    %cst_101 = arith.constant dense<0.000000e+00> : vector<8xf32>
    %195 = vector.multi_reduction <add>, %194, %cst_101 [1] : vector<8x32xf32> to vector<8xf32>
    %196 = vector.shape_cast %195 : vector<8xf32> to vector<8x1xf32>
    %cst_102 = arith.constant 3.200000e+01 : f32
    %197 = vector.broadcast %cst_102 : f32 to vector<8x1xf32>
    %198 = arith.divf %196, %197 : vector<8x1xf32>
    %199 = vector.broadcast %198 : vector<8x1xf32> to vector<8x32xf32>
    %200 = arith.subf %194, %199 : vector<8x32xf32>
    %201 = arith.mulf %200, %200 : vector<8x32xf32>
    %cst_103 = arith.constant dense<0.000000e+00> : vector<8xf32>
    %202 = vector.multi_reduction <add>, %201, %cst_103 [1] : vector<8x32xf32> to vector<8xf32>
    %203 = vector.shape_cast %202 : vector<8xf32> to vector<8x1xf32>
    %cst_104 = arith.constant 3.200000e+01 : f32
    %204 = vector.broadcast %cst_104 : f32 to vector<8x1xf32>
    %205 = arith.divf %203, %204 : vector<8x1xf32>
    %206 = vector.broadcast %198 : vector<8x1xf32> to vector<8x32xf32>
    %207 = arith.subf %194, %206 : vector<8x32xf32>
    %cst_105 = arith.constant 9.99999974E-6 : f32
    %208 = vector.broadcast %cst_105 : f32 to vector<8x1xf32>
    %209 = arith.addf %205, %208 : vector<8x1xf32>
    %210 = math.rsqrt %209 : vector<8x1xf32>
    %211 = vector.broadcast %210 : vector<8x1xf32> to vector<8x32xf32>
    %212 = arith.mulf %207, %211 : vector<8x32xf32>
    %213 = vector.broadcast %0 : vector<1x32xf32> to vector<8x32xf32>
    %214 = arith.mulf %212, %213 : vector<8x32xf32>
    %215 = vector.broadcast %1 : vector<1x32xf32> to vector<8x32xf32>
    %216 = arith.addf %214, %215 : vector<8x32xf32>
    %c0_106 = arith.constant 0 : index
    %c0_107 = arith.constant 0 : index
    %217 = vector.load %arg19[%c0_106, %c0_107] : memref<32x64xbf16, #tpu.memory_space<vmem>>, vector<32x64xbf16>
    %c0_108 = arith.constant 0 : index
    %c0_109 = arith.constant 0 : index
    %218 = vector.load %arg20[%c0_108, %c0_109] : memref<1x64xf32, #tpu.memory_space<vmem>>, vector<1x64xf32>
    %c0_110 = arith.constant 0 : index
    %c0_111 = arith.constant 0 : index
    %219 = vector.load %arg21[%c0_110, %c0_111] : memref<64x32xbf16, #tpu.memory_space<vmem>>, vector<64x32xbf16>
    %c0_112 = arith.constant 0 : index
    %c0_113 = arith.constant 0 : index
    %220 = vector.load %arg22[%c0_112, %c0_113] : memref<1x32xf32, #tpu.memory_space<vmem>>, vector<1x32xf32>
    %221 = arith.truncf %216 : vector<8x32xf32> to vector<8x32xbf16>
    %cst_114 = arith.constant dense<0.000000e+00> : vector<8x64xf32>
    %222 = tpu.matmul %221, %217, %cst_114 {dimension_numbers = #tpu.dot_dimension_numbers<[1], [0], [0], [1], [0, 0, 1, 1], [], []>} : vector<8x32xbf16>, vector<32x64xbf16>, vector<8x64xf32> -> vector<8x64xf32>
    %223 = vector.broadcast %218 : vector<1x64xf32> to vector<8x64xf32>
    %224 = arith.addf %222, %223 : vector<8x64xf32>
    %cst_115 = arith.constant 0.000000e+00 : f32
    %225 = vector.broadcast %cst_115 : f32 to vector<8x64xf32>
    %226 = arith.maximumf %224, %225 : vector<8x64xf32>
    %227 = arith.truncf %226 : vector<8x64xf32> to vector<8x64xbf16>
    %cst_116 = arith.constant dense<0.000000e+00> : vector<8x32xf32>
    %228 = tpu.matmul %227, %219, %cst_116 {dimension_numbers = #tpu.dot_dimension_numbers<[1], [0], [0], [1], [0, 0, 1, 1], [], []>} : vector<8x64xbf16>, vector<64x32xbf16>, vector<8x32xf32> -> vector<8x32xf32>
    %229 = vector.broadcast %220 : vector<1x32xf32> to vector<8x32xf32>
    %230 = arith.addf %228, %229 : vector<8x32xf32>
    %231 = arith.addf %230, %216 : vector<8x32xf32>
    %cst_117 = arith.constant dense<0.000000e+00> : vector<8xf32>
    %232 = vector.multi_reduction <add>, %231, %cst_117 [1] : vector<8x32xf32> to vector<8xf32>
    %233 = vector.shape_cast %232 : vector<8xf32> to vector<8x1xf32>
    %cst_118 = arith.constant 3.200000e+01 : f32
    %234 = vector.broadcast %cst_118 : f32 to vector<8x1xf32>
    %235 = arith.divf %233, %234 : vector<8x1xf32>
    %236 = vector.broadcast %235 : vector<8x1xf32> to vector<8x32xf32>
    %237 = arith.subf %231, %236 : vector<8x32xf32>
    %238 = arith.mulf %237, %237 : vector<8x32xf32>
    %cst_119 = arith.constant dense<0.000000e+00> : vector<8xf32>
    %239 = vector.multi_reduction <add>, %238, %cst_119 [1] : vector<8x32xf32> to vector<8xf32>
    %240 = vector.shape_cast %239 : vector<8xf32> to vector<8x1xf32>
    %cst_120 = arith.constant 3.200000e+01 : f32
    %241 = vector.broadcast %cst_120 : f32 to vector<8x1xf32>
    %242 = arith.divf %240, %241 : vector<8x1xf32>
    %243 = vector.broadcast %235 : vector<8x1xf32> to vector<8x32xf32>
    %244 = arith.subf %231, %243 : vector<8x32xf32>
    %cst_121 = arith.constant 9.99999974E-6 : f32
    %245 = vector.broadcast %cst_121 : f32 to vector<8x1xf32>
    %246 = arith.addf %242, %245 : vector<8x1xf32>
    %247 = math.rsqrt %246 : vector<8x1xf32>
    %248 = vector.broadcast %247 : vector<8x1xf32> to vector<8x32xf32>
    %249 = arith.mulf %244, %248 : vector<8x32xf32>
    %250 = vector.broadcast %0 : vector<1x32xf32> to vector<8x32xf32>
    %251 = arith.mulf %249, %250 : vector<8x32xf32>
    %252 = vector.broadcast %1 : vector<1x32xf32> to vector<8x32xf32>
    %253 = arith.addf %251, %252 : vector<8x32xf32>
    %254 = arith.truncf %253 : vector<8x32xf32> to vector<8x32xbf16>
    %c0_122 = arith.constant 0 : index
    %c0_123 = arith.constant 0 : index
    %255 = vector.load %arg25[%c0_122, %c0_123] : memref<32x128xbf16, #tpu.memory_space<vmem>>, vector<32x128xbf16>
    %cst_124 = arith.constant dense<0.000000e+00> : vector<8x128xf32>
    %256 = tpu.matmul %254, %255, %cst_124 {dimension_numbers = #tpu.dot_dimension_numbers<[1], [0], [0], [1], [0, 0, 1, 1], [], []>} : vector<8x32xbf16>, vector<32x128xbf16>, vector<8x128xf32> -> vector<8x128xf32>
    %c0_125 = arith.constant 0 : index
    %c0_126 = arith.constant 0 : index
    %c0_127 = arith.constant 0 : index
    %257 = vector.load %arg26[%c0_125, %c0_126, %c0_127] : memref<1x8x128xf32, #tpu.memory_space<vmem>>, vector<1x8x128xf32>
    %258 = vector.shape_cast %257 : vector<1x8x128xf32> to vector<8x128xf32>
    %259 = vector.shape_cast %256 : vector<8x128xf32> to vector<1x8x128xf32>
    tpu.vector_store %arg26[%c0_125, %c0_126, %c0_127], %259 {strides = array<i32>} : memref<1x8x128xf32, #tpu.memory_space<vmem>>, vector<1x8x128xf32>,
    return
  }
  func.func @transform_0(%arg0: i32) -> (i32, i32, i32) {
    %c0_i32 = arith.constant 0 : i32
    %c0_i32_0 = arith.constant 0 : i32
    %c0_i32_1 = arith.constant 0 : i32
    return %arg0, %c0_i32, %c0_i32_0 : i32, i32, i32
  }
  func.func @transform_1(%arg0: i32) -> (i32, i32, i32) {
    %c0_i32 = arith.constant 0 : i32
    %c0_i32_0 = arith.constant 0 : i32
    %c0_i32_1 = arith.constant 0 : i32
    return %arg0, %c0_i32, %c0_i32_0 : i32, i32, i32
  }
  func.func @transform_2(%arg0: i32) -> (i32, i32, i32) {
    %c0_i32 = arith.constant 0 : i32
    %c0_i32_0 = arith.constant 0 : i32
    %c0_i32_1 = arith.constant 0 : i32
    %c0_i32_2 = arith.constant 0 : i32
    return %c0_i32, %c0_i32_0, %c0_i32_1 : i32, i32, i32
  }
  func.func @transform_3(%arg0: i32) -> (i32, i32, i32) {
    %c0_i32 = arith.constant 0 : i32
    %c0_i32_0 = arith.constant 0 : i32
    %c0_i32_1 = arith.constant 0 : i32
    %c0_i32_2 = arith.constant 0 : i32
    return %c0_i32, %c0_i32_0, %c0_i32_1 : i32, i32, i32
  }
  func.func @transform_4(%arg0: i32) -> (i32, i32, i32) {
    %c0_i32 = arith.constant 0 : i32
    %c0_i32_0 = arith.constant 0 : i32
    %c0_i32_1 = arith.constant 0 : i32
    %c0_i32_2 = arith.constant 0 : i32
    return %c0_i32, %c0_i32_0, %c0_i32_1 : i32, i32, i32
  }
  func.func @transform_5(%arg0: i32) -> (i32, i32, i32) {
    %c0_i32 = arith.constant 0 : i32
    %c0_i32_0 = arith.constant 0 : i32
    %c0_i32_1 = arith.constant 0 : i32
    %c0_i32_2 = arith.constant 0 : i32
    return %c0_i32, %c0_i32_0, %c0_i32_1 : i32, i32, i32
  }
  func.func @transform_6(%arg0: i32) -> (i32, i32, i32) {
    %c0_i32 = arith.constant 0 : i32
    %c0_i32_0 = arith.constant 0 : i32
    %c0_i32_1 = arith.constant 0 : i32
    %c0_i32_2 = arith.constant 0 : i32
    return %c0_i32, %c0_i32_0, %c0_i32_1 : i32, i32, i32
  }
  func.func @transform_7(%arg0: i32) -> (i32, i32, i32) {
    %c0_i32 = arith.constant 0 : i32
    %c0_i32_0 = arith.constant 0 : i32
    %c0_i32_1 = arith.constant 0 : i32
    %c0_i32_2 = arith.constant 0 : i32
    return %c0_i32, %c0_i32_0, %c0_i32_1 : i32, i32, i32
  }
  func.func @transform_8(%arg0: i32) -> (i32, i32, i32) {
    %c0_i32 = arith.constant 0 : i32
    %c0_i32_0 = arith.constant 0 : i32
    %c0_i32_1 = arith.constant 0 : i32
    %c0_i32_2 = arith.constant 0 : i32
    return %c0_i32, %c0_i32_0, %c0_i32_1 : i32, i32, i32
  }
  func.func @transform_9(%arg0: i32) -> (i32, i32, i32) {
    %c0_i32 = arith.constant 0 : i32
    %c0_i32_0 = arith.constant 0 : i32
    %c0_i32_1 = arith.constant 0 : i32
    %c0_i32_2 = arith.constant 0 : i32
    return %c0_i32, %c0_i32_0, %c0_i32_1 : i32, i32, i32
  }
  func.func @transform_10(%arg0: i32) -> (i32, i32, i32) {
    %c0_i32 = arith.constant 0 : i32
    %c0_i32_0 = arith.constant 0 : i32
    %c0_i32_1 = arith.constant 0 : i32
    %c0_i32_2 = arith.constant 0 : i32
    return %c0_i32, %c0_i32_0, %c0_i32_1 : i32, i32, i32
  }
  func.func @transform_11(%arg0: i32) -> (i32, i32, i32) {
    %c0_i32 = arith.constant 0 : i32
    %c0_i32_0 = arith.constant 0 : i32
    %c0_i32_1 = arith.constant 0 : i32
    %c0_i32_2 = arith.constant 0 : i32
    return %c0_i32, %c0_i32_0, %c0_i32_1 : i32, i32, i32
  }
  func.func @transform_12(%arg0: i32) -> (i32, i32, i32) {
    %c0_i32 = arith.constant 0 : i32
    %c0_i32_0 = arith.constant 0 : i32
    %c0_i32_1 = arith.constant 0 : i32
    %c0_i32_2 = arith.constant 0 : i32
    return %c0_i32, %c0_i32_0, %c0_i32_1 : i32, i32, i32
  }
  func.func @transform_13(%arg0: i32) -> (i32, i32, i32) {
    %c0_i32 = arith.constant 0 : i32
    %c0_i32_0 = arith.constant 0 : i32
    %c0_i32_1 = arith.constant 0 : i32
    %c0_i32_2 = arith.constant 0 : i32
    return %c0_i32, %c0_i32_0, %c0_i32_1 : i32, i32, i32
  }
  func.func @transform_14(%arg0: i32) -> (i32, i32) {
    %c0_i32 = arith.constant 0 : i32
    %c0_i32_0 = arith.constant 0 : i32
    %c0_i32_1 = arith.constant 0 : i32
    return %c0_i32, %c0_i32_0 : i32, i32
  }
  func.func @transform_15(%arg0: i32) -> (i32, i32) {
    %c0_i32 = arith.constant 0 : i32
    %c0_i32_0 = arith.constant 0 : i32
    %c0_i32_1 = arith.constant 0 : i32
    return %c0_i32, %c0_i32_0 : i32, i32
  }
  func.func @transform_16(%arg0: i32) -> (i32, i32) {
    %c0_i32 = arith.constant 0 : i32
    %c0_i32_0 = arith.constant 0 : i32
    %c0_i32_1 = arith.constant 0 : i32
    return %c0_i32, %c0_i32_0 : i32, i32
  }
  func.func @transform_17(%arg0: i32) -> (i32, i32) {
    %c0_i32 = arith.constant 0 : i32
    %c0_i32_0 = arith.constant 0 : i32
    %c0_i32_1 = arith.constant 0 : i32
    return %c0_i32, %c0_i32_0 : i32, i32
  }
  func.func @transform_18(%arg0: i32) -> (i32, i32) {
    %c0_i32 = arith.constant 0 : i32
    %c0_i32_0 = arith.constant 0 : i32
    %c0_i32_1 = arith.constant 0 : i32
    return %c0_i32, %c0_i32_0 : i32, i32
  }
  func.func @transform_19(%arg0: i32) -> (i32, i32) {
    %c0_i32 = arith.constant 0 : i32
    %c0_i32_0 = arith.constant 0 : i32
    %c0_i32_1 = arith.constant 0 : i32
    return %c0_i32, %c0_i32_0 : i32, i32
  }
  func.func @transform_20(%arg0: i32) -> (i32, i32) {
    %c0_i32 = arith.constant 0 : i32
    %c0_i32_0 = arith.constant 0 : i32
    %c0_i32_1 = arith.constant 0 : i32
    return %c0_i32, %c0_i32_0 : i32, i32
  }
  func.func @transform_21(%arg0: i32) -> (i32, i32) {
    %c0_i32 = arith.constant 0 : i32
    %c0_i32_0 = arith.constant 0 : i32
    %c0_i32_1 = arith.constant 0 : i32
    return %c0_i32, %c0_i32_0 : i32, i32
  }
  func.func @transform_22(%arg0: i32) -> (i32, i32) {
    %c0_i32 = arith.constant 0 : i32
    %c0_i32_0 = arith.constant 0 : i32
    %c0_i32_1 = arith.constant 0 : i32
    return %c0_i32, %c0_i32_0 : i32, i32
  }
  func.func @transform_23(%arg0: i32) -> (i32, i32) {
    %c0_i32 = arith.constant 0 : i32
    %c0_i32_0 = arith.constant 0 : i32
    %c0_i32_1 = arith.constant 0 : i32
    return %c0_i32, %c0_i32_0 : i32, i32
  }
  func.func @transform_24(%arg0: i32) -> (i32, i32) {
    %c0_i32 = arith.constant 0 : i32
    %c0_i32_0 = arith.constant 0 : i32
    %c0_i32_1 = arith.constant 0 : i32
    return %c0_i32, %c0_i32_0 : i32, i32
  }
  func.func @transform_25(%arg0: i32) -> (i32, i32, i32) {
    %c0_i32 = arith.constant 0 : i32
    %c0_i32_0 = arith.constant 0 : i32
    %c0_i32_1 = arith.constant 0 : i32
    return %arg0, %c0_i32, %c0_i32_0 : i32, i32, i32
  }
}

</mosaic_0001>

<llo_original>
// kernel: transformer_forward.1
$region0: #{transformer_forward.1}
  #allocation0 [shape = 'u32[]', space=smem, size = 0x4, offset = 0x4, fixed_abs, tag = 'smem constant byte address 0x4 - core index']
  #allocation1 [shape = 'u32[144,128]{1,0:T(1,128)}', space=vmem, size = 0x12000, scoped, tag = 'internal scratch']
  %s0 = inlined_call_operand.vmem [shape: f32[2,8,32], index: 0, kind: input, shape index: {}]
  %s1 = inlined_call_operand.vmem [shape: f32[2,8,32], index: 1, kind: input, shape index: {}]
  %s2 = inlined_call_operand.vmem [shape: bf16[4,32,8], index: 2, kind: input, shape index: {}]
  %s3 = inlined_call_operand.vmem [shape: bf16[4,32,8], index: 3, kind: input, shape index: {}]
  %s4 = inlined_call_operand.vmem [shape: bf16[4,32,8], index: 4, kind: input, shape index: {}]
  %s5 = inlined_call_operand.vmem [shape: bf16[4,8,32], index: 5, kind: input, shape index: {}]
  %s6 = inlined_call_operand.vmem [shape: bf16[4,32,8], index: 6, kind: input, shape index: {}]
  %s7 = inlined_call_operand.vmem [shape: bf16[4,32,8], index: 7, kind: input, shape index: {}]
  %s8 = inlined_call_operand.vmem [shape: bf16[4,32,8], index: 8, kind: input, shape index: {}]
  %s9 = inlined_call_operand.vmem [shape: bf16[4,8,32], index: 9, kind: input, shape index: {}]
  %s10 = inlined_call_operand.vmem [shape: bf16[4,32,8], index: 10, kind: input, shape index: {}]
  %s11 = inlined_call_operand.vmem [shape: bf16[4,32,8], index: 11, kind: input, shape index: {}]
  %s12 = inlined_call_operand.vmem [shape: bf16[4,32,8], index: 12, kind: input, shape index: {}]
  %s13 = inlined_call_operand.vmem [shape: bf16[4,8,32], index: 13, kind: input, shape index: {}]
  %s14 = inlined_call_operand.vmem [shape: bf16[32,64], index: 14, kind: input, shape index: {}]
  %s15 = inlined_call_operand.vmem [shape: f32[1,64], index: 15, kind: input, shape index: {}]
  %s16 = inlined_call_operand.vmem [shape: bf16[64,32], index: 16, kind: input, shape index: {}]
  %s17 = inlined_call_operand.vmem [shape: f32[1,32], index: 17, kind: input, shape index: {}]
  %s18 = inlined_call_operand.vmem [shape: bf16[32,64], index: 18, kind: input, shape index: {}]
  %s19 = inlined_call_operand.vmem [shape: f32[1,64], index: 19, kind: input, shape index: {}]
  %s20 = inlined_call_operand.vmem [shape: bf16[64,32], index: 20, kind: input, shape index: {}]
  %s21 = inlined_call_operand.vmem [shape: f32[1,32], index: 21, kind: input, shape index: {}]
  %s22 = inlined_call_operand.vmem [shape: f32[1,32], index: 22, kind: input, shape index: {}]
  %s23 = inlined_call_operand.vmem [shape: f32[1,32], index: 23, kind: input, shape index: {}]
  %s24 = inlined_call_operand.vmem [shape: bf16[32,128], index: 24, kind: input, shape index: {}]
  %s25 = inlined_call_operand.hbm [shape: f32[2,8,128], index: 25, kind: output, shape index: {}]
  %s26 = sld [smem:[#allocation0]]
  $region133: #{transformer_forward.1} parent=0
    _
  %s28 = ssub.s32 1, %s26
  %s29 = scalar_select 0, %s28, %s26
  $region1: #{transformer_forward.1} parent=0
    #allocation2 [shape = 'u8[8192]{0}', space=vmem, size = 0x2000, scoped, tag = 'output window, operand 0']
    #allocation3 [shape = 's32[2]{0}', space=sflag, size = 0x8, scoped, tag = 'scoped memory for transformer_forward.1']
    %30 = vsyncpa [#allocation3], 0
    %s31 = scalar_lea.sflag [#allocation3], 1
    %32 = vsyncpa %s31, 0
    loop: start=0, step=1, limit=4
    $region2: #{transformer_forward.1} parent=1 // loop_pre_header
      _
    $region3: #{transformer_forward.1} parent=1 // loop_header
      %s34 = sphi 0, %s38
      %p35 = scmp.ge.s32.totalorder %s34, 4
      %s44 = sphi 0, %s46
      %s47 = sphi 0, %s44
      %s48 = sphi 0, %s47
      %s64 = sphi 0, %s48
      %s70 = sphi 0, %s72
      %s73 = sphi 0, %s70
      %s74 = sphi 0, %s73
      %s90 = sphi 0, %s74
      %s94 = sphi 0, %s94
      %s96 = sphi 0, %s94
      %s97 = sphi 0, %s96
      %s111 = sphi 0, %s97
      %s115 = sphi 0, %s115
      %s117 = sphi 0, %s115
      %s118 = sphi 0, %s117
      %s132 = sphi 0, %s118
      %s136 = sphi 0, %s136
      %s138 = sphi 0, %s136
      %s139 = sphi 0, %s138
      %s153 = sphi 0, %s139
      %s157 = sphi 0, %s157
      %s159 = sphi 0, %s157
      %s160 = sphi 0, %s159
      %s174 = sphi 0, %s160
      %s178 = sphi 0, %s178
      %s180 = sphi 0, %s178
      %s181 = sphi 0, %s180
      %s195 = sphi 0, %s181
      %s199 = sphi 0, %s199
      %s201 = sphi 0, %s199
      %s202 = sphi 0, %s201
      %s216 = sphi 0, %s202
      %s220 = sphi 0, %s220
      %s222 = sphi 0, %s220
      %s223 = sphi 0, %s222
      %s237 = sphi 0, %s223
      %s241 = sphi 0, %s241
      %s243 = sphi 0, %s241
      %s244 = sphi 0, %s243
      %s258 = sphi 0, %s244
      %s262 = sphi 0, %s262
      %s264 = sphi 0, %s262
      %s265 = sphi 0, %s264
      %s279 = sphi 0, %s265
      %s283 = sphi 0, %s283
      %s285 = sphi 0, %s283
      %s286 = sphi 0, %s285
      %s300 = sphi 0, %s286
      %s304 = sphi 0, %s304
      %s306 = sphi 0, %s304
      %s307 = sphi 0, %s306
      %s321 = sphi 0, %s307
      %s325 = sphi 0, %s325
      %s327 = sphi 0, %s325
      %s328 = sphi 0, %s327
      %s342 = sphi 0, %s328
      %s346 = sphi 0, %s346
      %s348 = sphi 0, %s346
      %s349 = sphi 0, %s348
      %s363 = sphi 0, %s349
      %s367 = sphi 0, %s367
      %s369 = sphi 0, %s367
      %s370 = sphi 0, %s369
      %s384 = sphi 0, %s370
      %s388 = sphi 0, %s388
      %s390 = sphi 0, %s388
      %s391 = sphi 0, %s390
      %s405 = sphi 0, %s391
      %s409 = sphi 0, %s409
      %s411 = sphi 0, %s409
      %s412 = sphi 0, %s411
      %s426 = sphi 0, %s412
      %s430 = sphi 0, %s430
      %s432 = sphi 0, %s430
      %s433 = sphi 0, %s432
      %s447 = sphi 0, %s433
      %s451 = sphi 0, %s451
      %s453 = sphi 0, %s451
      %s454 = sphi 0, %s453
      %s468 = sphi 0, %s454
      %s472 = sphi 0, %s472
      %s474 = sphi 0, %s472
      %s475 = sphi 0, %s474
      %s489 = sphi 0, %s475
      %s493 = sphi 0, %s493
      %s495 = sphi 0, %s493
      %s496 = sphi 0, %s495
      %s510 = sphi 0, %s496
      %s514 = sphi 0, %s514
      %s516 = sphi 0, %s514
      %s517 = sphi 0, %s516
      %s531 = sphi 0, %s517
      %s535 = sphi 0, %s535
      %s537 = sphi 0, %s535
      %s538 = sphi 0, %s537
      %s552 = sphi 0, %s538
      %s556 = sphi 0, %s556
      %s558 = sphi 0, %s556
      %s559 = sphi 0, %s558
      %s573 = sphi 0, %s559
      %s579 = sphi 0, %s581
      %s582 = sphi 0, %s579
      %s583 = sphi 0, %s582
      %s599 = sphi 0, %s583
    $region4: #{transformer_forward.1} parent=1 // loop_header_branch
      %37 = sbr.rel (%p35) target = $region8
    $region5: #{transformer_forward.1} parent=1 // loop_body
      %s39 = ssub.s32 %s34, 1
      %s40 = ssub.s32 %s34, 2
      %s41 = sadd.s32 %s34, 1
      %s42 = ssub.s32 %s34, %s41
      %p43 = scmp.eq.s32.totalorder %s42, 0
      %s45 = sadd.s32 %s44, 1
      %s46 = scalar_select %p43, %s44, %s45
      %p49 = pneg %p43
      %p50 = scmp.eq.s32.totalorder %s34, 1
      %p51 = por %p49, %p50
      %p52 = scmp.ne.s32.totalorder %s44, %s47
      %p53 = scmp.eq.s32.totalorder %s34, 0
      %p54 = por %p52, %p53
      %p55 = scmp.ne.s32.totalorder %s44, %s47
      %p56 = scmp.eq.s32.totalorder %s39, 1
      %p57 = por %p55, %p56
      %p58 = scmp.ne.s32.totalorder %s47, %s48
      %p59 = scmp.eq.s32.totalorder %s39, 0
      %p60 = por %p58, %p59
      %p61 = scmp.ne.s32.totalorder %s47, %s48
      %p62 = scmp.eq.s32.totalorder %s40, 1
      %p63 = por %p61, %p62
      %p65 = scmp.ne.s32.totalorder %s48, %s64
      %p66 = scmp.eq.s32.totalorder %s40, 0
      %p67 = por %p65, %p66
      %s68 = ssub.s32 %s34, %s41
      %p69 = scmp.eq.s32.totalorder %s68, 0
      %s71 = sadd.s32 %s70, 1
      %s72 = scalar_select %p69, %s70, %s71
      %p75 = pneg %p69
      %p76 = scmp.eq.s32.totalorder %s34, 1
      %p77 = por %p75, %p76
      %p78 = scmp.ne.s32.totalorder %s70, %s73
      %p79 = scmp.eq.s32.totalorder %s34, 0
      %p80 = por %p78, %p79
      %p81 = scmp.ne.s32.totalorder %s70, %s73
      %p82 = scmp.eq.s32.totalorder %s39, 1
      %p83 = por %p81, %p82
      %p84 = scmp.ne.s32.totalorder %s73, %s74
      %p85 = scmp.eq.s32.totalorder %s39, 0
      %p86 = por %p84, %p85
      %p87 = scmp.ne.s32.totalorder %s73, %s74
      %p88 = scmp.eq.s32.totalorder %s40, 1
      %p89 = por %p87, %p88
      %p91 = scmp.ne.s32.totalorder %s74, %s90
      %p92 = scmp.eq.s32.totalorder %s40, 0
      %p93 = por %p91, %p92
      %s95 = sadd.s32 %s94, 1
      %p98 = scmp.eq.s32.totalorder %s34, 1
      %p99 = scmp.ne.s32.totalorder %s94, %s96
      %p100 = scmp.eq.s32.totalorder %s34, 0
      %p101 = por %p99, %p100
      %p102 = scmp.ne.s32.totalorder %s94, %s96
      %p103 = scmp.eq.s32.totalorder %s39, 1
      %p104 = por %p102, %p103
      %p105 = scmp.ne.s32.totalorder %s96, %s97
      %p106 = scmp.eq.s32.totalorder %s39, 0
      %p107 = por %p105, %p106
      %p108 = scmp.ne.s32.totalorder %s96, %s97
      %p109 = scmp.eq.s32.totalorder %s40, 1
      %p110 = por %p108, %p109
      %p112 = scmp.ne.s32.totalorder %s97, %s111
      %p113 = scmp.eq.s32.totalorder %s40, 0
      %p114 = por %p112, %p113
      %s116 = sadd.s32 %s115, 1
      %p119 = scmp.eq.s32.totalorder %s34, 1
      %p120 = scmp.ne.s32.totalorder %s115, %s117
      %p121 = scmp.eq.s32.totalorder %s34, 0
      %p122 = por %p120, %p121
      %p123 = scmp.ne.s32.totalorder %s115, %s117
      %p124 = scmp.eq.s32.totalorder %s39, 1
      %p125 = por %p123, %p124
      %p126 = scmp.ne.s32.totalorder %s117, %s118
      %p127 = scmp.eq.s32.totalorder %s39, 0
      %p128 = por %p126, %p127
      %p129 = scmp.ne.s32.totalorder %s117, %s118
      %p130 = scmp.eq.s32.totalorder %s40, 1
      %p131 = por %p129, %p130
      %p133 = scmp.ne.s32.totalorder %s118, %s132
      %p134 = scmp.eq.s32.totalorder %s40, 0
      %p135 = por %p133, %p134
      %s137 = sadd.s32 %s136, 1
      %p140 = scmp.eq.s32.totalorder %s34, 1
      %p141 = scmp.ne.s32.totalorder %s136, %s138
      %p142 = scmp.eq.s32.totalorder %s34, 0
      %p143 = por %p141, %p142
      %p144 = scmp.ne.s32.totalorder %s136, %s138
      %p145 = scmp.eq.s32.totalorder %s39, 1
      %p146 = por %p144, %p145
      %p147 = scmp.ne.s32.totalorder %s138, %s139
      %p148 = scmp.eq.s32.totalorder %s39, 0
      %p149 = por %p147, %p148
      %p150 = scmp.ne.s32.totalorder %s138, %s139
      %p151 = scmp.eq.s32.totalorder %s40, 1
      %p152 = por %p150, %p151
      %p154 = scmp.ne.s32.totalorder %s139, %s153
      %p155 = scmp.eq.s32.totalorder %s40, 0
      %p156 = por %p154, %p155
      %s158 = sadd.s32 %s157, 1
      %p161 = scmp.eq.s32.totalorder %s34, 1
      %p162 = scmp.ne.s32.totalorder %s157, %s159
      %p163 = scmp.eq.s32.totalorder %s34, 0
      %p164 = por %p162, %p163
      %p165 = scmp.ne.s32.totalorder %s157, %s159
      %p166 = scmp.eq.s32.totalorder %s39, 1
      %p167 = por %p165, %p166
      %p168 = scmp.ne.s32.totalorder %s159, %s160
      %p169 = scmp.eq.s32.totalorder %s39, 0
      %p170 = por %p168, %p169
      %p171 = scmp.ne.s32.totalorder %s159, %s160
      %p172 = scmp.eq.s32.totalorder %s40, 1
      %p173 = por %p171, %p172
      %p175 = scmp.ne.s32.totalorder %s160, %s174
      %p176 = scmp.eq.s32.totalorder %s40, 0
      %p177 = por %p175, %p176
      %s179 = sadd.s32 %s178, 1
      %p182 = scmp.eq.s32.totalorder %s34, 1
      %p183 = scmp.ne.s32.totalorder %s178, %s180
      %p184 = scmp.eq.s32.totalorder %s34, 0
      %p185 = por %p183, %p184
      %p186 = scmp.ne.s32.totalorder %s178, %s180
      %p187 = scmp.eq.s32.totalorder %s39, 1
      %p188 = por %p186, %p187
      %p189 = scmp.ne.s32.totalorder %s180, %s181
      %p190 = scmp.eq.s32.totalorder %s39, 0
      %p191 = por %p189, %p190
      %p192 = scmp.ne.s32.totalorder %s180, %s181
      %p193 = scmp.eq.s32.totalorder %s40, 1
      %p194 = por %p192, %p193
      %p196 = scmp.ne.s32.totalorder %s181, %s195
      %p197 = scmp.eq.s32.totalorder %s40, 0
      %p198 = por %p196, %p197
      %s200 = sadd.s32 %s199, 1
      %p203 = scmp.eq.s32.totalorder %s34, 1
      %p204 = scmp.ne.s32.totalorder %s199, %s201
      %p205 = scmp.eq.s32.totalorder %s34, 0
      %p206 = por %p204, %p205
      %p207 = scmp.ne.s32.totalorder %s199, %s201
      %p208 = scmp.eq.s32.totalorder %s39, 1
      %p209 = por %p207, %p208
      %p210 = scmp.ne.s32.totalorder %s201, %s202
      %p211 = scmp.eq.s32.totalorder %s39, 0
      %p212 = por %p210, %p211
      %p213 = scmp.ne.s32.totalorder %s201, %s202
      %p214 = scmp.eq.s32.totalorder %s40, 1
      %p215 = por %p213, %p214
      %p217 = scmp.ne.s32.totalorder %s202, %s216
      %p218 = scmp.eq.s32.totalorder %s40, 0
      %p219 = por %p217, %p218
      %s221 = sadd.s32 %s220, 1
      %p224 = scmp.eq.s32.totalorder %s34, 1
      %p225 = scmp.ne.s32.totalorder %s220, %s222
      %p226 = scmp.eq.s32.totalorder %s34, 0
      %p227 = por %p225, %p226
      %p228 = scmp.ne.s32.totalorder %s220, %s222
      %p229 = scmp.eq.s32.totalorder %s39, 1
      %p230 = por %p228, %p229
      %p231 = scmp.ne.s32.totalorder %s222, %s223
      %p232 = scmp.eq.s32.totalorder %s39, 0
      %p233 = por %p231, %p232
      %p234 = scmp.ne.s32.totalorder %s222, %s223
      %p235 = scmp.eq.s32.totalorder %s40, 1
      %p236 = por %p234, %p235
      %p238 = scmp.ne.s32.totalorder %s223, %s237
      %p239 = scmp.eq.s32.totalorder %s40, 0
      %p240 = por %p238, %p239
      %s242 = sadd.s32 %s241, 1
      %p245 = scmp.eq.s32.totalorder %s34, 1
      %p246 = scmp.ne.s32.totalorder %s241, %s243
      %p247 = scmp.eq.s32.totalorder %s34, 0
      %p248 = por %p246, %p247
      %p249 = scmp.ne.s32.totalorder %s241, %s243
      %p250 = scmp.eq.s32.totalorder %s39, 1
      %p251 = por %p249, %p250
      %p252 = scmp.ne.s32.totalorder %s243, %s244
      %p253 = scmp.eq.s32.totalorder %s39, 0
      %p254 = por %p252, %p253
      %p255 = scmp.ne.s32.totalorder %s243, %s244
      %p256 = scmp.eq.s32.totalorder %s40, 1
      %p257 = por %p255, %p256
      %p259 = scmp.ne.s32.totalorder %s244, %s258
      %p260 = scmp.eq.s32.totalorder %s40, 0
      %p261 = por %p259, %p260
      %s263 = sadd.s32 %s262, 1
      %p266 = scmp.eq.s32.totalorder %s34, 1
      %p267 = scmp.ne.s32.totalorder %s262, %s264
      %p268 = scmp.eq.s32.totalorder %s34, 0
      %p269 = por %p267, %p268
      %p270 = scmp.ne.s32.totalorder %s262, %s264
      %p271 = scmp.eq.s32.totalorder %s39, 1
      %p272 = por %p270, %p271
      %p273 = scmp.ne.s32.totalorder %s264, %s265
      %p274 = scmp.eq.s32.totalorder %s39, 0
      %p275 = por %p273, %p274
      %p276 = scmp.ne.s32.totalorder %s264, %s265
      %p277 = scmp.eq.s32.totalorder %s40, 1
      %p278 = por %p276, %p277
      %p280 = scmp.ne.s32.totalorder %s265, %s279
      %p281 = scmp.eq.s32.totalorder %s40, 0
      %p282 = por %p280, %p281
      %s284 = sadd.s32 %s283, 1
      %p287 = scmp.eq.s32.totalorder %s34, 1
      %p288 = scmp.ne.s32.totalorder %s283, %s285
      %p289 = scmp.eq.s32.totalorder %s34, 0
      %p290 = por %p288, %p289
      %p291 = scmp.ne.s32.totalorder %s283, %s285
      %p292 = scmp.eq.s32.totalorder %s39, 1
      %p293 = por %p291, %p292
      %p294 = scmp.ne.s32.totalorder %s285, %s286
      %p295 = scmp.eq.s32.totalorder %s39, 0
      %p296 = por %p294, %p295
      %p297 = scmp.ne.s32.totalorder %s285, %s286
      %p298 = scmp.eq.s32.totalorder %s40, 1
      %p299 = por %p297, %p298
      %p301 = scmp.ne.s32.totalorder %s286, %s300
      %p302 = scmp.eq.s32.totalorder %s40, 0
      %p303 = por %p301, %p302
      %s305 = sadd.s32 %s304, 1
      %p308 = scmp.eq.s32.totalorder %s34, 1
      %p309 = scmp.ne.s32.totalorder %s304, %s306
      %p310 = scmp.eq.s32.totalorder %s34, 0
      %p311 = por %p309, %p310
      %p312 = scmp.ne.s32.totalorder %s304, %s306
      %p313 = scmp.eq.s32.totalorder %s39, 1
      %p314 = por %p312, %p313
      %p315 = scmp.ne.s32.totalorder %s306, %s307
      %p316 = scmp.eq.s32.totalorder %s39, 0
      %p317 = por %p315, %p316
      %p318 = scmp.ne.s32.totalorder %s306, %s307
      %p319 = scmp.eq.s32.totalorder %s40, 1
      %p320 = por %p318, %p319
      %p322 = scmp.ne.s32.totalorder %s307, %s321
      %p323 = scmp.eq.s32.totalorder %s40, 0
      %p324 = por %p322, %p323
      %s326 = sadd.s32 %s325, 1
      %p329 = scmp.eq.s32.totalorder %s34, 1
      %p330 = scmp.ne.s32.totalorder %s325, %s327
      %p331 = scmp.eq.s32.totalorder %s34, 0
      %p332 = por %p330, %p331
      %p333 = scmp.ne.s32.totalorder %s325, %s327
      %p334 = scmp.eq.s32.totalorder %s39, 1
      %p335 = por %p333, %p334
      %p336 = scmp.ne.s32.totalorder %s327, %s328
      %p337 = scmp.eq.s32.totalorder %s39, 0
      %p338 = por %p336, %p337
      %p339 = scmp.ne.s32.totalorder %s327, %s328
      %p340 = scmp.eq.s32.totalorder %s40, 1
      %p341 = por %p339, %p340
      %p343 = scmp.ne.s32.totalorder %s328, %s342
      %p344 = scmp.eq.s32.totalorder %s40, 0
      %p345 = por %p343, %p344
      %s347 = sadd.s32 %s346, 1
      %p350 = scmp.eq.s32.totalorder %s34, 1
      %p351 = scmp.ne.s32.totalorder %s346, %s348
      %p352 = scmp.eq.s32.totalorder %s34, 0
      %p353 = por %p351, %p352
      %p354 = scmp.ne.s32.totalorder %s346, %s348
      %p355 = scmp.eq.s32.totalorder %s39, 1
      %p356 = por %p354, %p355
      %p357 = scmp.ne.s32.totalorder %s348, %s349
      %p358 = scmp.eq.s32.totalorder %s39, 0
      %p359 = por %p357, %p358
      %p360 = scmp.ne.s32.totalorder %s348, %s349
      %p361 = scmp.eq.s32.totalorder %s40, 1
      %p362 = por %p360, %p361
      %p364 = scmp.ne.s32.totalorder %s349, %s363
      %p365 = scmp.eq.s32.totalorder %s40, 0
      %p366 = por %p364, %p365
      %s368 = sadd.s32 %s367, 1
      %p371 = scmp.eq.s32.totalorder %s34, 1
      %p372 = scmp.ne.s32.totalorder %s367, %s369
      %p373 = scmp.eq.s32.totalorder %s34, 0
      %p374 = por %p372, %p373
      %p375 = scmp.ne.s32.totalorder %s367, %s369
      %p376 = scmp.eq.s32.totalorder %s39, 1
      %p377 = por %p375, %p376
      %p378 = scmp.ne.s32.totalorder %s369, %s370
      %p379 = scmp.eq.s32.totalorder %s39, 0
      %p380 = por %p378, %p379
      %p381 = scmp.ne.s32.totalorder %s369, %s370
      %p382 = scmp.eq.s32.totalorder %s40, 1
      %p383 = por %p381, %p382
      %p385 = scmp.ne.s32.totalorder %s370, %s384
      %p386 = scmp.eq.s32.totalorder %s40, 0
      %p387 = por %p385, %p386
      %s389 = sadd.s32 %s388, 1
      %p392 = scmp.eq.s32.totalorder %s34, 1
      %p393 = scmp.ne.s32.totalorder %s388, %s390
      %p394 = scmp.eq.s32.totalorder %s34, 0
      %p395 = por %p393, %p394
      %p396 = scmp.ne.s32.totalorder %s388, %s390
      %p397 = scmp.eq.s32.totalorder %s39, 1
      %p398 = por %p396, %p397
      %p399 = scmp.ne.s32.totalorder %s390, %s391
      %p400 = scmp.eq.s32.totalorder %s39, 0
      %p401 = por %p399, %p400
      %p402 = scmp.ne.s32.totalorder %s390, %s391
      %p403 = scmp.eq.s32.totalorder %s40, 1
      %p404 = por %p402, %p403
      %p406 = scmp.ne.s32.totalorder %s391, %s405
      %p407 = scmp.eq.s32.totalorder %s40, 0
      %p408 = por %p406, %p407
      %s410 = sadd.s32 %s409, 1
      %p413 = scmp.eq.s32.totalorder %s34, 1
      %p414 = scmp.ne.s32.totalorder %s409, %s411
      %p415 = scmp.eq.s32.totalorder %s34, 0
      %p416 = por %p414, %p415
      %p417 = scmp.ne.s32.totalorder %s409, %s411
      %p418 = scmp.eq.s32.totalorder %s39, 1
      %p419 = por %p417, %p418
      %p420 = scmp.ne.s32.totalorder %s411, %s412
      %p421 = scmp.eq.s32.totalorder %s39, 0
      %p422 = por %p420, %p421
      %p423 = scmp.ne.s32.totalorder %s411, %s412
      %p424 = scmp.eq.s32.totalorder %s40, 1
      %p425 = por %p423, %p424
      %p427 = scmp.ne.s32.totalorder %s412, %s426
      %p428 = scmp.eq.s32.totalorder %s40, 0
      %p429 = por %p427, %p428
      %s431 = sadd.s32 %s430, 1
      %p434 = scmp.eq.s32.totalorder %s34, 1
      %p435 = scmp.ne.s32.totalorder %s430, %s432
      %p436 = scmp.eq.s32.totalorder %s34, 0
      %p437 = por %p435, %p436
      %p438 = scmp.ne.s32.totalorder %s430, %s432
      %p439 = scmp.eq.s32.totalorder %s39, 1
      %p440 = por %p438, %p439
      %p441 = scmp.ne.s32.totalorder %s432, %s433
      %p442 = scmp.eq.s32.totalorder %s39, 0
      %p443 = por %p441, %p442
      %p444 = scmp.ne.s32.totalorder %s432, %s433
      %p445 = scmp.eq.s32.totalorder %s40, 1
      %p446 = por %p444, %p445
      %p448 = scmp.ne.s32.totalorder %s433, %s447
      %p449 = scmp.eq.s32.totalorder %s40, 0
      %p450 = por %p448, %p449
      %s452 = sadd.s32 %s451, 1
      %p455 = scmp.eq.s32.totalorder %s34, 1
      %p456 = scmp.ne.s32.totalorder %s451, %s453
      %p457 = scmp.eq.s32.totalorder %s34, 0
      %p458 = por %p456, %p457
      %p459 = scmp.ne.s32.totalorder %s451, %s453
      %p460 = scmp.eq.s32.totalorder %s39, 1
      %p461 = por %p459, %p460
      %p462 = scmp.ne.s32.totalorder %s453, %s454
      %p463 = scmp.eq.s32.totalorder %s39, 0
      %p464 = por %p462, %p463
      %p465 = scmp.ne.s32.totalorder %s453, %s454
      %p466 = scmp.eq.s32.totalorder %s40, 1
      %p467 = por %p465, %p466
      %p469 = scmp.ne.s32.totalorder %s454, %s468
      %p470 = scmp.eq.s32.totalorder %s40, 0
      %p471 = por %p469, %p470
      %s473 = sadd.s32 %s472, 1
      %p476 = scmp.eq.s32.totalorder %s34, 1
      %p477 = scmp.ne.s32.totalorder %s472, %s474
      %p478 = scmp.eq.s32.totalorder %s34, 0
      %p479 = por %p477, %p478
      %p480 = scmp.ne.s32.totalorder %s472, %s474
      %p481 = scmp.eq.s32.totalorder %s39, 1
      %p482 = por %p480, %p481
      %p483 = scmp.ne.s32.totalorder %s474, %s475
      %p484 = scmp.eq.s32.totalorder %s39, 0
      %p485 = por %p483, %p484
      %p486 = scmp.ne.s32.totalorder %s474, %s475
      %p487 = scmp.eq.s32.totalorder %s40, 1
      %p488 = por %p486, %p487
      %p490 = scmp.ne.s32.totalorder %s475, %s489
      %p491 = scmp.eq.s32.totalorder %s40, 0
      %p492 = por %p490, %p491
      %s494 = sadd.s32 %s493, 1
      %p497 = scmp.eq.s32.totalorder %s34, 1
      %p498 = scmp.ne.s32.totalorder %s493, %s495
      %p499 = scmp.eq.s32.totalorder %s34, 0
      %p500 = por %p498, %p499
      %p501 = scmp.ne.s32.totalorder %s493, %s495
      %p502 = scmp.eq.s32.totalorder %s39, 1
      %p503 = por %p501, %p502
      %p504 = scmp.ne.s32.totalorder %s495, %s496
      %p505 = scmp.eq.s32.totalorder %s39, 0
      %p506 = por %p504, %p505
      %p507 = scmp.ne.s32.totalorder %s495, %s496
      %p508 = scmp.eq.s32.totalorder %s40, 1
      %p509 = por %p507, %p508
      %p511 = scmp.ne.s32.totalorder %s496, %s510
      %p512 = scmp.eq.s32.totalorder %s40, 0
      %p513 = por %p511, %p512
      %s515 = sadd.s32 %s514, 1
      %p518 = scmp.eq.s32.totalorder %s34, 1
      %p519 = scmp.ne.s32.totalorder %s514, %s516
      %p520 = scmp.eq.s32.totalorder %s34, 0
      %p521 = por %p519, %p520
      %p522 = scmp.ne.s32.totalorder %s514, %s516
      %p523 = scmp.eq.s32.totalorder %s39, 1
      %p524 = por %p522, %p523
      %p525 = scmp.ne.s32.totalorder %s516, %s517
      %p526 = scmp.eq.s32.totalorder %s39, 0
      %p527 = por %p525, %p526
      %p528 = scmp.ne.s32.totalorder %s516, %s517
      %p529 = scmp.eq.s32.totalorder %s40, 1
      %p530 = por %p528, %p529
      %p532 = scmp.ne.s32.totalorder %s517, %s531
      %p533 = scmp.eq.s32.totalorder %s40, 0
      %p534 = por %p532, %p533
      %s536 = sadd.s32 %s535, 1
      %p539 = scmp.eq.s32.totalorder %s34, 1
      %p540 = scmp.ne.s32.totalorder %s535, %s537
      %p541 = scmp.eq.s32.totalorder %s34, 0
      %p542 = por %p540, %p541
      %p543 = scmp.ne.s32.totalorder %s535, %s537
      %p544 = scmp.eq.s32.totalorder %s39, 1
      %p545 = por %p543, %p544
      %p546 = scmp.ne.s32.totalorder %s537, %s538
      %p547 = scmp.eq.s32.totalorder %s39, 0
      %p548 = por %p546, %p547
      %p549 = scmp.ne.s32.totalorder %s537, %s538
      %p550 = scmp.eq.s32.totalorder %s40, 1
      %p551 = por %p549, %p550
      %p553 = scmp.ne.s32.totalorder %s538, %s552
      %p554 = scmp.eq.s32.totalorder %s40, 0
      %p555 = por %p553, %p554
      %s557 = sadd.s32 %s556, 1
      %p560 = scmp.eq.s32.totalorder %s34, 1
      %p561 = scmp.ne.s32.totalorder %s556, %s558
      %p562 = scmp.eq.s32.totalorder %s34, 0
      %p563 = por %p561, %p562
      %p564 = scmp.ne.s32.totalorder %s556, %s558
      %p565 = scmp.eq.s32.totalorder %s39, 1
      %p566 = por %p564, %p565
      %p567 = scmp.ne.s32.totalorder %s558, %s559
      %p568 = scmp.eq.s32.totalorder %s39, 0
      %p569 = por %p567, %p568
      %p570 = scmp.ne.s32.totalorder %s558, %s559
      %p571 = scmp.eq.s32.totalorder %s40, 1
      %p572 = por %p570, %p571
      %p574 = scmp.ne.s32.totalorder %s559, %s573
      %p575 = scmp.eq.s32.totalorder %s40, 0
      %p576 = por %p574, %p575
      %s577 = ssub.s32 %s34, %s41
      %p578 = scmp.eq.s32.totalorder %s577, 0
      %s580 = sadd.s32 %s579, 1
      %s581 = scalar_select %p578, %s579, %s580
      %p584 = pneg %p578
      %p585 = scmp.eq.s32.totalorder %s34, 1
      %p586 = por %p584, %p585
      %p587 = scmp.ne.s32.totalorder %s579, %s582
      %p588 = scmp.eq.s32.totalorder %s34, 0
      %p589 = por %p587, %p588
      %p590 = scmp.ne.s32.totalorder %s579, %s582
      %p591 = scmp.eq.s32.totalorder %s39, 1
      %p592 = por %p590, %p591
      %p593 = scmp.ne.s32.totalorder %s582, %s583
      %p594 = scmp.eq.s32.totalorder %s39, 0
      %p595 = por %p593, %p594
      %p596 = scmp.ne.s32.totalorder %s582, %s583
      %p597 = scmp.eq.s32.totalorder %s40, 1
      %p598 = por %p596, %p597
      %p600 = scmp.ne.s32.totalorder %s583, %s599
      %p601 = scmp.eq.s32.totalorder %s40, 0
      %p602 = por %p600, %p601
      %p603 = scmp.le.s32.totalorder 1, %s34
      %p604 = scmp.lt.s32.totalorder %s34, 3
      %p605 = pnand %p603, %p604
      %p606 = pneg %p605
      // Predicated region
      $region9: #{transformer_forward.1} parent=5 // pred_check
        _
      $region10: #{transformer_forward.1} parent=5 // pred_check_branch
        %608 = sbr.rel (%p605) target = $region12
      $region11: #{transformer_forward.1} parent=5 // pred_region
        %s609 = ssub.s32 %s34, 1
        // Predicated region
        $region13: #{transformer_forward.1} parent=11 // pred_check
          %p610 = pneg %p107
        $region14: #{transformer_forward.1} parent=11 // pred_check_branch
          %612 = sbr.rel (%p610) target = $region16
        $region15: #{transformer_forward.1} parent=11 // pred_region
          _
        $region16: #{transformer_forward.1} parent=11 // pred_fallthru
          _
        // Predicated region
        $region17: #{transformer_forward.1} parent=11 // pred_check
          %p613 = pneg %p128
        $region18: #{transformer_forward.1} parent=11 // pred_check_branch
          %615 = sbr.rel (%p613) target = $region20
        $region19: #{transformer_forward.1} parent=11 // pred_region
          _
        $region20: #{transformer_forward.1} parent=11 // pred_fallthru
          _
        // Predicated region
        $region21: #{transformer_forward.1} parent=11 // pred_check
          %p616 = pneg %p149
        $region22: #{transformer_forward.1} parent=11 // pred_check_branch
          %618 = sbr.rel (%p616) target = $region24
        $region23: #{transformer_forward.1} parent=11 // pred_region
          _
        $region24: #{transformer_forward.1} parent=11 // pred_fallthru
          _
        // Predicated region
        $region25: #{transformer_forward.1} parent=11 // pred_check
          %p619 = pneg %p170
        $region26: #{transformer_forward.1} parent=11 // pred_check_branch
          %621 = sbr.rel (%p619) target = $region28
        $region27: #{transformer_forward.1} parent=11 // pred_region
          _
        $region28: #{transformer_forward.1} parent=11 // pred_fallthru
          _
        // Predicated region
        $region29: #{transformer_forward.1} parent=11 // pred_check
          %p622 = pneg %p191
        $region30: #{transformer_forward.1} parent=11 // pred_check_branch
          %624 = sbr.rel (%p622) target = $region32
        $region31: #{transformer_forward.1} parent=11 // pred_region
          _
        $region32: #{transformer_forward.1} parent=11 // pred_fallthru
          _
        // Predicated region
        $region33: #{transformer_forward.1} parent=11 // pred_check
          %p625 = pneg %p212
        $region34: #{transformer_forward.1} parent=11 // pred_check_branch
          %627 = sbr.rel (%p625) target = $region36
        $region35: #{transformer_forward.1} parent=11 // pred_region
          _
        $region36: #{transformer_forward.1} parent=11 // pred_fallthru
          _
        // Predicated region
        $region37: #{transformer_forward.1} parent=11 // pred_check
          %p628 = pneg %p233
        $region38: #{transformer_forward.1} parent=11 // pred_check_branch
          %630 = sbr.rel (%p628) target = $region40
        $region39: #{transformer_forward.1} parent=11 // pred_region
          _
        $region40: #{transformer_forward.1} parent=11 // pred_fallthru
          _
        // Predicated region
        $region41: #{transformer_forward.1} parent=11 // pred_check
          %p631 = pneg %p254
        $region42: #{transformer_forward.1} parent=11 // pred_check_branch
          %633 = sbr.rel (%p631) target = $region44
        $region43: #{transformer_forward.1} parent=11 // pred_region
          _
        $region44: #{transformer_forward.1} parent=11 // pred_fallthru
          _
        // Predicated region
        $region45: #{transformer_forward.1} parent=11 // pred_check
          %p634 = pneg %p275
        $region46: #{transformer_forward.1} parent=11 // pred_check_branch
          %636 = sbr.rel (%p634) target = $region48
        $region47: #{transformer_forward.1} parent=11 // pred_region
          _
        $region48: #{transformer_forward.1} parent=11 // pred_fallthru
          _
        // Predicated region
        $region49: #{transformer_forward.1} parent=11 // pred_check
          %p637 = pneg %p296
        $region50: #{transformer_forward.1} parent=11 // pred_check_branch
          %639 = sbr.rel (%p637) target = $region52
        $region51: #{transformer_forward.1} parent=11 // pred_region
          _
        $region52: #{transformer_forward.1} parent=11 // pred_fallthru
          _
        // Predicated region
        $region53: #{transformer_forward.1} parent=11 // pred_check
          %p640 = pneg %p317
        $region54: #{transformer_forward.1} parent=11 // pred_check_branch
          %642 = sbr.rel (%p640) target = $region56
        $region55: #{transformer_forward.1} parent=11 // pred_region
          _
        $region56: #{transformer_forward.1} parent=11 // pred_fallthru
          _
        // Predicated region
        $region57: #{transformer_forward.1} parent=11 // pred_check
          %p643 = pneg %p338
        $region58: #{transformer_forward.1} parent=11 // pred_check_branch
          %645 = sbr.rel (%p643) target = $region60
        $region59: #{transformer_forward.1} parent=11 // pred_region
          _
        $region60: #{transformer_forward.1} parent=11 // pred_fallthru
          _
        // Predicated region
        $region61: #{transformer_forward.1} parent=11 // pred_check
          %p646 = pneg %p359
        $region62: #{transformer_forward.1} parent=11 // pred_check_branch
          %648 = sbr.rel (%p646) target = $region64
        $region63: #{transformer_forward.1} parent=11 // pred_region
          _
        $region64: #{transformer_forward.1} parent=11 // pred_fallthru
          _
        // Predicated region
        $region65: #{transformer_forward.1} parent=11 // pred_check
          %p649 = pneg %p380
        $region66: #{transformer_forward.1} parent=11 // pred_check_branch
          %651 = sbr.rel (%p649) target = $region68
        $region67: #{transformer_forward.1} parent=11 // pred_region
          _
        $region68: #{transformer_forward.1} parent=11 // pred_fallthru
          _
        // Predicated region
        $region69: #{transformer_forward.1} parent=11 // pred_check
          %p652 = pneg %p401
        $region70: #{transformer_forward.1} parent=11 // pred_check_branch
          %654 = sbr.rel (%p652) target = $region72
        $region71: #{transformer_forward.1} parent=11 // pred_region
          _
        $region72: #{transformer_forward.1} parent=11 // pred_fallthru
          _
        // Predicated region
        $region73: #{transformer_forward.1} parent=11 // pred_check
          %p655 = pneg %p422
        $region74: #{transformer_forward.1} parent=11 // pred_check_branch
          %657 = sbr.rel (%p655) target = $region76
        $region75: #{transformer_forward.1} parent=11 // pred_region
          _
        $region76: #{transformer_forward.1} parent=11 // pred_fallthru
          _
        // Predicated region
        $region77: #{transformer_forward.1} parent=11 // pred_check
          %p658 = pneg %p443
        $region78: #{transformer_forward.1} parent=11 // pred_check_branch
          %660 = sbr.rel (%p658) target = $region80
        $region79: #{transformer_forward.1} parent=11 // pred_region
          _
        $region80: #{transformer_forward.1} parent=11 // pred_fallthru
          _
        // Predicated region
        $region81: #{transformer_forward.1} parent=11 // pred_check
          %p661 = pneg %p464
        $region82: #{transformer_forward.1} parent=11 // pred_check_branch
          %663 = sbr.rel (%p661) target = $region84
        $region83: #{transformer_forward.1} parent=11 // pred_region
          _
        $region84: #{transformer_forward.1} parent=11 // pred_fallthru
          _
        // Predicated region
        $region85: #{transformer_forward.1} parent=11 // pred_check
          %p664 = pneg %p485
        $region86: #{transformer_forward.1} parent=11 // pred_check_branch
          %666 = sbr.rel (%p664) target = $region88
        $region87: #{transformer_forward.1} parent=11 // pred_region
          _
        $region88: #{transformer_forward.1} parent=11 // pred_fallthru
          _
        // Predicated region
        $region89: #{transformer_forward.1} parent=11 // pred_check
          %p667 = pneg %p506
        $region90: #{transformer_forward.1} parent=11 // pred_check_branch
          %669 = sbr.rel (%p667) target = $region92
        $region91: #{transformer_forward.1} parent=11 // pred_region
          _
        $region92: #{transformer_forward.1} parent=11 // pred_fallthru
          _
        // Predicated region
        $region93: #{transformer_forward.1} parent=11 // pred_check
          %p670 = pneg %p527
        $region94: #{transformer_forward.1} parent=11 // pred_check_branch
          %672 = sbr.rel (%p670) target = $region96
        $region95: #{transformer_forward.1} parent=11 // pred_region
          _
        $region96: #{transformer_forward.1} parent=11 // pred_fallthru
          _
        // Predicated region
        $region97: #{transformer_forward.1} parent=11 // pred_check
          %p673 = pneg %p548
        $region98: #{transformer_forward.1} parent=11 // pred_check_branch
          %675 = sbr.rel (%p673) target = $region100
        $region99: #{transformer_forward.1} parent=11 // pred_region
          _
        $region100: #{transformer_forward.1} parent=11 // pred_fallthru
          _
        // Predicated region
        $region101: #{transformer_forward.1} parent=11 // pred_check
          %p676 = pneg %p569
        $region102: #{transformer_forward.1} parent=11 // pred_check_branch
          %678 = sbr.rel (%p676) target = $region104
        $region103: #{transformer_forward.1} parent=11 // pred_region
          _
        $region104: #{transformer_forward.1} parent=11 // pred_fallthru
          _
      $region12: #{transformer_forward.1} parent=5 // pred_fallthru
        _
      %p679 = scmp.lt.s32.totalorder %s34, 2
      // Predicated region
      $region105: #{transformer_forward.1} parent=5 // pred_check
        %p680 = pneg %p679
      $region106: #{transformer_forward.1} parent=5 // pred_check_branch
        %682 = sbr.rel (%p680) target = $region108
      $region107: #{transformer_forward.1} parent=5 // pred_region
        // Predicated region
        $region109: #{transformer_forward.1} parent=107 // pred_check
          %p683 = pneg %p54
        $region110: #{transformer_forward.1} parent=107 // pred_check_branch
          %685 = sbr.rel (%p683) target = $region112
        $region111: #{transformer_forward.1} parent=107 // pred_region
          %p686 = scmp.lt.s32.totalorder %s34, 1
          %s687 = scalar_select %p686, %s34, 1
          %s688 = smul.addr %s687, 8
          %s689 = scalar_lea.vmem %s0, %s688
        $region112: #{transformer_forward.1} parent=107 // pred_fallthru
          _
        // Predicated region
        $region113: #{transformer_forward.1} parent=107 // pred_check
          %p690 = pneg %p80
        $region114: #{transformer_forward.1} parent=107 // pred_check_branch
          %692 = sbr.rel (%p690) target = $region116
        $region115: #{transformer_forward.1} parent=107 // pred_region
          %p693 = scmp.lt.s32.totalorder %s34, 1
          %s694 = scalar_select %p693, %s34, 1
          %s695 = smul.addr %s694, 8
          %s696 = scalar_lea.vmem %s1, %s695
        $region116: #{transformer_forward.1} parent=107 // pred_fallthru
          _
      $region108: #{transformer_forward.1} parent=5 // pred_fallthru
        _
      %p697 = scmp.le.s32.totalorder 1, %s34
      %p698 = scmp.lt.s32.totalorder %s34, 3
      %p699 = pnand %p697, %p698
      %p700 = pneg %p699
      // Predicated region
      $region117: #{transformer_forward.1} parent=5 // pred_check
        _
      $region118: #{transformer_forward.1} parent=5 // pred_check_branch
        %702 = sbr.rel (%p699) target = $region120
      $region119: #{transformer_forward.1} parent=5 // pred_region
        %s703 = ssub.s32 %s34, 1
        %p704 = scmp.lt.s32.totalorder %s39, 1
        %s705 = scalar_select %p704, %s39, 1
        %s706 = smul.addr %s705, 8
        %s707 = scalar_lea.vmem %s0, %s706
        %p708 = pneg %p60
        %p709 = pneg %p57
        %p710 = scmp.lt.s32.totalorder %s39, 1
        %s711 = scalar_select %p710, %s39, 1
        %s712 = smul.addr %s711, 8
        %s713 = scalar_lea.vmem %s1, %s712
        %p714 = pneg %p86
        %p715 = pneg %p83
        %p716 = pneg %p107
        %p717 = pneg %p104
        %p718 = pneg %p128
        %p719 = pneg %p125
        %p720 = pneg %p149
        %p721 = pneg %p146
        %p722 = pneg %p170
        %p723 = pneg %p167
        %p724 = pneg %p191
        %p725 = pneg %p188
        %p726 = pneg %p212
        %p727 = pneg %p209
        %p728 = pneg %p233
        %p729 = pneg %p230
        %p730 = pneg %p254
        %p731 = pneg %p251
        %p732 = pneg %p275
        %p733 = pneg %p272
        %p734 = pneg %p296
        %p735 = pneg %p293
        %p736 = pneg %p317
        %p737 = pneg %p314
        %p738 = pneg %p338
        %p739 = pneg %p335
        %p740 = pneg %p359
        %p741 = pneg %p356
        %p742 = pneg %p380
        %p743 = pneg %p377
        %p744 = pneg %p401
        %p745 = pneg %p398
        %p746 = pneg %p422
        %p747 = pneg %p419
        %p748 = pneg %p443
        %p749 = pneg %p440
        %p750 = pneg %p464
        %p751 = pneg %p461
        %p752 = pneg %p485
        %p753 = pneg %p482
        %p754 = pneg %p506
        %p755 = pneg %p503
        %p756 = pneg %p527
        %p757 = pneg %p524
        %p758 = pneg %p548
        %p759 = pneg %p545
        %p760 = pneg %p569
        %p761 = pneg %p566
        %p762 = pneg %p595
        %p763 = pneg %p592
        %s764 = sand.u32 %s582, 1
        %s765 = scalar_lea.sflag [#allocation3], %s764
        %s766 = sand.u32 %s582, 1
        %s767 = smul.addr %s766, 8
        %s768 = scalar_lea.vmem [#allocation2], %s767
        %p769 = scmp.lt.s32.totalorder %s39, 1
        %s770 = scalar_select %p769, %s39, 1
        %s771 = smul.addr %s770, 8
        %s772 = scalar_lea.vmem %s0, %s771
        %p773 = scmp.lt.s32.totalorder %s39, 1
        %s774 = scalar_select %p773, %s39, 1
        %s775 = smul.addr %s774, 8
        %s776 = scalar_lea.vmem %s1, %s775
        %v778 = vld [vmem:[%s22] sm:$0x1]
        %v779 = vld [vmem:[%s23] sm:$0x1]
        %v780 = vld [vmem:[%s772] sm:$0xff]
        %v781 = vld [vmem:[%s2] sm:$0xf]
        %v782 = vld [vmem:[%s2 + $0x4] sm:$0xf]
        %v783 = vld [vmem:[%s2 + $0x8] sm:$0xf]
        %v784 = vld [vmem:[%s2 + $0xc] sm:$0xf]
        %v785 = vld [vmem:[%s2 + $0x10] sm:$0xf]
        %v786 = vld [vmem:[%s2 + $0x14] sm:$0xf]
        %v787 = vld [vmem:[%s2 + $0x18] sm:$0xf]
        %v788 = vld [vmem:[%s2 + $0x1c] sm:$0xf]
        %v789 = vld [vmem:[%s2 + $0x20] sm:$0xf]
        %v790 = vld [vmem:[%s2 + $0x24] sm:$0xf]
        %v791 = vld [vmem:[%s2 + $0x28] sm:$0xf]
        %v792 = vld [vmem:[%s2 + $0x2c] sm:$0xf]
        %v793 = vld [vmem:[%s2 + $0x30] sm:$0xf]
        %v794 = vld [vmem:[%s2 + $0x34] sm:$0xf]
        %v795 = vld [vmem:[%s2 + $0x38] sm:$0xf]
        %v796 = vld [vmem:[%s2 + $0x3c] sm:$0xf]
        %v797 = vld [vmem:[%s3] sm:$0xf]
        %v798 = vld [vmem:[%s3 + $0x4] sm:$0xf]
        %v799 = vld [vmem:[%s3 + $0x8] sm:$0xf]
        %v800 = vld [vmem:[%s3 + $0xc] sm:$0xf]
        %v801 = vld [vmem:[%s3 + $0x10] sm:$0xf]
        %v802 = vld [vmem:[%s3 + $0x14] sm:$0xf]
        %v803 = vld [vmem:[%s3 + $0x18] sm:$0xf]
        %v804 = vld [vmem:[%s3 + $0x1c] sm:$0xf]
        %v805 = vld [vmem:[%s3 + $0x20] sm:$0xf]
        %v806 = vld [vmem:[%s3 + $0x24] sm:$0xf]
        %v807 = vld [vmem:[%s3 + $0x28] sm:$0xf]
        %v808 = vld [vmem:[%s3 + $0x2c] sm:$0xf]
        %v809 = vld [vmem:[%s3 + $0x30] sm:$0xf]
        %v810 = vld [vmem:[%s3 + $0x34] sm:$0xf]
        %v811 = vld [vmem:[%s3 + $0x38] sm:$0xf]
        %v812 = vld [vmem:[%s3 + $0x3c] sm:$0xf]
        %v813 = vld [vmem:[%s4] sm:$0xf]
        %v814 = vld [vmem:[%s4 + $0x4] sm:$0xf]
        %v815 = vld [vmem:[%s4 + $0x8] sm:$0xf]
        %v816 = vld [vmem:[%s4 + $0xc] sm:$0xf]
        %v817 = vld [vmem:[%s4 + $0x10] sm:$0xf]
        %v818 = vld [vmem:[%s4 + $0x14] sm:$0xf]
        %v819 = vld [vmem:[%s4 + $0x18] sm:$0xf]
        %v820 = vld [vmem:[%s4 + $0x1c] sm:$0xf]
        %v821 = vld [vmem:[%s4 + $0x20] sm:$0xf]
        %v822 = vld [vmem:[%s4 + $0x24] sm:$0xf]
        %v823 = vld [vmem:[%s4 + $0x28] sm:$0xf]
        %v824 = vld [vmem:[%s4 + $0x2c] sm:$0xf]
        %v825 = vld [vmem:[%s4 + $0x30] sm:$0xf]
        %v826 = vld [vmem:[%s4 + $0x34] sm:$0xf]
        %v827 = vld [vmem:[%s4 + $0x38] sm:$0xf]
        %v828 = vld [vmem:[%s4 + $0x3c] sm:$0xf]
        %v829 = vld [vmem:[%s5] sm:$0xf]
        %v830 = vld [vmem:[%s5 + $0x4] sm:$0xf]
        %v831 = vld [vmem:[%s5 + $0x8] sm:$0xf]
        %v832 = vld [vmem:[%s5 + $0xc] sm:$0xf]
        %v833 = vpack.c.bf16 %v780, %v780
        %v838 = vunpack.c.l.b16 %v781
        %v839 = vunpack.c.l.b16 %v782
        %v840 = vunpack.c.l.b16 %v783
        %v841 = vunpack.c.l.b16 %v784
        %v842 = vpack.c.b16 %v839, %v838
        %v843 = vpack.c.b16 %v841, %v840
        %vm846 = vcmask 261120
        %v848 = vsel %vm846, %v833, 0
        %850 = vmatprep.subr.bf16.mxu0 0
        %851 = vmatpush1.bf16.msra.mxu0 0
        %852 = vmatprep.subr.bf16.mxu0 0
        %853 = vmatpush1.bf16.msra.mxu0 0
        %854 = vmatprep.subr.bf16.mxu0 0
        %855 = vmatpush1.bf16.msra.mxu0 0
        %856 = vmatprep.subr.bf16.mxu0 0
        %857 = vmatpush1.bf16.msra.mxu0 0
        %858 = vmatprep.subr.bf16.mxu0 0
        %859 = vmatpush1.bf16.msra.mxu0 0
        %860 = vmatprep.subr.bf16.mxu0 0
        %861 = vmatpush1.bf16.msra.mxu0 0
        %862 = vmatprep.subr.bf16.mxu0 0
        %863 = vmatpush1.bf16.msra.mxu0 %v843
        %864 = vmatprep.subr.bf16.mxu0 0
        %865 = vmatpush1.bf16.msra.mxu0 %v842
        %866 = vmatprep.subr.bf16.mxu0 0
        %867 = vmatpush2.bf16.msra.mxu0 0
        %868 = vmatprep.subr.bf16.mxu0 0
        %869 = vmatpush2.bf16.msra.mxu0 0
        %870 = vmatprep.subr.bf16.mxu0 0
        %871 = vmatpush2.bf16.msra.mxu0 0
        %872 = vmatprep.subr.bf16.mxu0 0
        %873 = vmatpush2.bf16.msra.mxu0 0
        %874 = vmatprep.subr.bf16.mxu0 0
        %875 = vmatpush2.bf16.msra.mxu0 0
        %876 = vmatprep.subr.bf16.mxu0 0
        %877 = vmatpush2.bf16.msra.mxu0 0
        %878 = vmatprep.subr.bf16.mxu0 0
        %879 = vmatpush2.bf16.msra.mxu0 0
        %880 = vmatprep.subr.bf16.mxu0 0
        %881 = vmatpush2.bf16.msra.mxu0 0
        %882 = vmatprep.mubr.bf16.mxu0 0
        %883 = vmatmul.mubr.bf16.gmra.mxu0 %v848
        %v884 = vpop.f32.mrf.mxu0
        %v885 = vadd.f32 0.0, %v884
        %v886 = vpop.f32.mrf.mxu0
        %v887 = vpop.f32.mrf.mxu0
        %v888 = vpop.f32.mrf.mxu0
        %889 = vdwg.mxu0
        %v894 = vunpack.c.l.b16 %v785
        %v895 = vunpack.c.l.b16 %v786
        %v896 = vunpack.c.l.b16 %v787
        %v897 = vunpack.c.l.b16 %v788
        %v898 = vpack.c.b16 %v895, %v894
        %v899 = vpack.c.b16 %v897, %v896
        %902 = vmatprep.subr.bf16.mxu0 0
        %903 = vmatpush1.bf16.msra.mxu0 0
        %904 = vmatprep.subr.bf16.mxu0 0
        %905 = vmatpush1.bf16.msra.mxu0 0
        %906 = vmatprep.subr.bf16.mxu0 0
        %907 = vmatpush1.bf16.msra.mxu0 0
        %908 = vmatprep.subr.bf16.mxu0 0
        %909 = vmatpush1.bf16.msra.mxu0 0
        %910 = vmatprep.subr.bf16.mxu0 0
        %911 = vmatpush1.bf16.msra.mxu0 0
        %912 = vmatprep.subr.bf16.mxu0 0
        %913 = vmatpush1.bf16.msra.mxu0 0
        %914 = vmatprep.subr.bf16.mxu0 0
        %915 = vmatpush1.bf16.msra.mxu0 %v899
        %916 = vmatprep.subr.bf16.mxu0 0
        %917 = vmatpush1.bf16.msra.mxu0 %v898
        %918 = vmatprep.subr.bf16.mxu0 0
        %919 = vmatpush2.bf16.msra.mxu0 0
        %920 = vmatprep.subr.bf16.mxu0 0
        %921 = vmatpush2.bf16.msra.mxu0 0
        %922 = vmatprep.subr.bf16.mxu0 0
        %923 = vmatpush2.bf16.msra.mxu0 0
        %924 = vmatprep.subr.bf16.mxu0 0
        %925 = vmatpush2.bf16.msra.mxu0 0
        %926 = vmatprep.subr.bf16.mxu0 0
        %927 = vmatpush2.bf16.msra.mxu0 0
        %928 = vmatprep.subr.bf16.mxu0 0
        %929 = vmatpush2.bf16.msra.mxu0 0
        %930 = vmatprep.subr.bf16.mxu0 0
        %931 = vmatpush2.bf16.msra.mxu0 0
        %932 = vmatprep.subr.bf16.mxu0 0
        %933 = vmatpush2.bf16.msra.mxu0 0
        %934 = vmatprep.mubr.bf16.mxu0 0
        %935 = vmatmul.mubr.bf16.gmra.mxu0 %v848
        %v936 = vpop.f32.mrf.mxu0
        %v937 = vadd.f32 0.0, %v936
        %v938 = vpop.f32.mrf.mxu0
        %v939 = vpop.f32.mrf.mxu0
        %v940 = vpop.f32.mrf.mxu0
        %941 = vdwg.mxu0
        %v946 = vunpack.c.l.b16 %v789
        %v947 = vunpack.c.l.b16 %v790
        %v948 = vunpack.c.l.b16 %v791
        %v949 = vunpack.c.l.b16 %v792
        %v950 = vpack.c.b16 %v947, %v946
        %v951 = vpack.c.b16 %v949, %v948
        %954 = vmatprep.subr.bf16.mxu0 0
        %955 = vmatpush1.bf16.msra.mxu0 0
        %956 = vmatprep.subr.bf16.mxu0 0
        %957 = vmatpush1.bf16.msra.mxu0 0
        %958 = vmatprep.subr.bf16.mxu0 0
        %959 = vmatpush1.bf16.msra.mxu0 0
        %960 = vmatprep.subr.bf16.mxu0 0
        %961 = vmatpush1.bf16.msra.mxu0 0
        %962 = vmatprep.subr.bf16.mxu0 0
        %963 = vmatpush1.bf16.msra.mxu0 0
        %964 = vmatprep.subr.bf16.mxu0 0
        %965 = vmatpush1.bf16.msra.mxu0 0
        %966 = vmatprep.subr.bf16.mxu0 0
        %967 = vmatpush1.bf16.msra.mxu0 %v951
        %968 = vmatprep.subr.bf16.mxu0 0
        %969 = vmatpush1.bf16.msra.mxu0 %v950
        %970 = vmatprep.subr.bf16.mxu0 0
        %971 = vmatpush2.bf16.msra.mxu0 0
        %972 = vmatprep.subr.bf16.mxu0 0
        %973 = vmatpush2.bf16.msra.mxu0 0
        %974 = vmatprep.subr.bf16.mxu0 0
        %975 = vmatpush2.bf16.msra.mxu0 0
        %976 = vmatprep.subr.bf16.mxu0 0
        %977 = vmatpush2.bf16.msra.mxu0 0
        %978 = vmatprep.subr.bf16.mxu0 0
        %979 = vmatpush2.bf16.msra.mxu0 0
        %980 = vmatprep.subr.bf16.mxu0 0
        %981 = vmatpush2.bf16.msra.mxu0 0
        %982 = vmatprep.subr.bf16.mxu0 0
        %983 = vmatpush2.bf16.msra.mxu0 0
        %984 = vmatprep.subr.bf16.mxu0 0
        %985 = vmatpush2.bf16.msra.mxu0 0
        %986 = vmatprep.mubr.bf16.mxu0 0
        %987 = vmatmul.mubr.bf16.gmra.mxu0 %v848
        %v988 = vpop.f32.mrf.mxu0
        %v989 = vadd.f32 0.0, %v988
        %v990 = vpop.f32.mrf.mxu0
        %v991 = vpop.f32.mrf.mxu0
        %v992 = vpop.f32.mrf.mxu0
        %993 = vdwg.mxu0
        %v998 = vunpack.c.l.b16 %v793
        %v999 = vunpack.c.l.b16 %v794
        %v1000 = vunpack.c.l.b16 %v795
        %v1001 = vunpack.c.l.b16 %v796
        %v1002 = vpack.c.b16 %v999, %v998
        %v1003 = vpack.c.b16 %v1001, %v1000
        %1006 = vmatprep.subr.bf16.mxu0 0
        %1007 = vmatpush1.bf16.msra.mxu0 0
        %1008 = vmatprep.subr.bf16.mxu0 0
        %1009 = vmatpush1.bf16.msra.mxu0 0
        %1010 = vmatprep.subr.bf16.mxu0 0
        %1011 = vmatpush1.bf16.msra.mxu0 0
        %1012 = vmatprep.subr.bf16.mxu0 0
        %1013 = vmatpush1.bf16.msra.mxu0 0
        %1014 = vmatprep.subr.bf16.mxu0 0
        %1015 = vmatpush1.bf16.msra.mxu0 0
        %1016 = vmatprep.subr.bf16.mxu0 0
        %1017 = vmatpush1.bf16.msra.mxu0 0
        %1018 = vmatprep.subr.bf16.mxu0 0
        %1019 = vmatpush1.bf16.msra.mxu0 %v1003
        %1020 = vmatprep.subr.bf16.mxu0 0
        %1021 = vmatpush1.bf16.msra.mxu0 %v1002
        %1022 = vmatprep.subr.bf16.mxu0 0
        %1023 = vmatpush2.bf16.msra.mxu0 0
        %1024 = vmatprep.subr.bf16.mxu0 0
        %1025 = vmatpush2.bf16.msra.mxu0 0
        %1026 = vmatprep.subr.bf16.mxu0 0
        %1027 = vmatpush2.bf16.msra.mxu0 0
        %1028 = vmatprep.subr.bf16.mxu0 0
        %1029 = vmatpush2.bf16.msra.mxu0 0
        %1030 = vmatprep.subr.bf16.mxu0 0
        %1031 = vmatpush2.bf16.msra.mxu0 0
        %1032 = vmatprep.subr.bf16.mxu0 0
        %1033 = vmatpush2.bf16.msra.mxu0 0
        %1034 = vmatprep.subr.bf16.mxu0 0
        %1035 = vmatpush2.bf16.msra.mxu0 0
        %1036 = vmatprep.subr.bf16.mxu0 0
        %1037 = vmatpush2.bf16.msra.mxu0 0
        %1038 = vmatprep.mubr.bf16.mxu0 0
        %1039 = vmatmul.mubr.bf16.gmra.mxu0 %v848
        %v1040 = vpop.f32.mrf.mxu0
        %v1041 = vadd.f32 0.0, %v1040
        %v1042 = vpop.f32.mrf.mxu0
        %v1043 = vpop.f32.mrf.mxu0
        %v1044 = vpop.f32.mrf.mxu0
        %1045 = vdwg.mxu0
        %v1050 = vunpack.c.l.b16 %v797
        %v1051 = vunpack.c.l.b16 %v798
        %v1052 = vunpack.c.l.b16 %v799
        %v1053 = vunpack.c.l.b16 %v800
        %v1054 = vpack.c.b16 %v1051, %v1050
        %v1055 = vpack.c.b16 %v1053, %v1052
        %1058 = vmatprep.subr.bf16.mxu0 0
        %1059 = vmatpush1.bf16.msra.mxu0 0
        %1060 = vmatprep.subr.bf16.mxu0 0
        %1061 = vmatpush1.bf16.msra.mxu0 0
        %1062 = vmatprep.subr.bf16.mxu0 0
        %1063 = vmatpush1.bf16.msra.mxu0 0
        %1064 = vmatprep.subr.bf16.mxu0 0
        %1065 = vmatpush1.bf16.msra.mxu0 0
        %1066 = vmatprep.subr.bf16.mxu0 0
        %1067 = vmatpush1.bf16.msra.mxu0 0
        %1068 = vmatprep.subr.bf16.mxu0 0
        %1069 = vmatpush1.bf16.msra.mxu0 0
        %1070 = vmatprep.subr.bf16.mxu0 0
        %1071 = vmatpush1.bf16.msra.mxu0 %v1055
        %1072 = vmatprep.subr.bf16.mxu0 0
        %1073 = vmatpush1.bf16.msra.mxu0 %v1054
        %1074 = vmatprep.subr.bf16.mxu0 0
        %1075 = vmatpush2.bf16.msra.mxu0 0
        %1076 = vmatprep.subr.bf16.mxu0 0
        %1077 = vmatpush2.bf16.msra.mxu0 0
        %1078 = vmatprep.subr.bf16.mxu0 0
        %1079 = vmatpush2.bf16.msra.mxu0 0
        %1080 = vmatprep.subr.bf16.mxu0 0
        %1081 = vmatpush2.bf16.msra.mxu0 0
        %1082 = vmatprep.subr.bf16.mxu0 0
        %1083 = vmatpush2.bf16.msra.mxu0 0
        %1084 = vmatprep.subr.bf16.mxu0 0
        %1085 = vmatpush2.bf16.msra.mxu0 0
        %1086 = vmatprep.subr.bf16.mxu0 0
        %1087 = vmatpush2.bf16.msra.mxu0 0
        %1088 = vmatprep.subr.bf16.mxu0 0
        %1089 = vmatpush2.bf16.msra.mxu0 0
        %1090 = vmatprep.mubr.bf16.mxu0 0
        %1091 = vmatmul.mubr.bf16.gmra.mxu0 %v848
        %v1092 = vpop.f32.mrf.mxu0
        %v1093 = vadd.f32 0.0, %v1092
        %v1094 = vpop.f32.mrf.mxu0
        %v1095 = vpop.f32.mrf.mxu0
        %v1096 = vpop.f32.mrf.mxu0
        %1097 = vdwg.mxu0
        %v1102 = vunpack.c.l.b16 %v801
        %v1103 = vunpack.c.l.b16 %v802
        %v1104 = vunpack.c.l.b16 %v803
        %v1105 = vunpack.c.l.b16 %v804
        %v1106 = vpack.c.b16 %v1103, %v1102
        %v1107 = vpack.c.b16 %v1105, %v1104
        %1110 = vmatprep.subr.bf16.mxu0 0
        %1111 = vmatpush1.bf16.msra.mxu0 0
        %1112 = vmatprep.subr.bf16.mxu0 0
        %1113 = vmatpush1.bf16.msra.mxu0 0
        %1114 = vmatprep.subr.bf16.mxu0 0
        %1115 = vmatpush1.bf16.msra.mxu0 0
        %1116 = vmatprep.subr.bf16.mxu0 0
        %1117 = vmatpush1.bf16.msra.mxu0 0
        %1118 = vmatprep.subr.bf16.mxu0 0
        %1119 = vmatpush1.bf16.msra.mxu0 0
        %1120 = vmatprep.subr.bf16.mxu0 0
        %1121 = vmatpush1.bf16.msra.mxu0 0
        %1122 = vmatprep.subr.bf16.mxu0 0
        %1123 = vmatpush1.bf16.msra.mxu0 %v1107
        %1124 = vmatprep.subr.bf16.mxu0 0
        %1125 = vmatpush1.bf16.msra.mxu0 %v1106
        %1126 = vmatprep.subr.bf16.mxu0 0
        %1127 = vmatpush2.bf16.msra.mxu0 0
        %1128 = vmatprep.subr.bf16.mxu0 0
        %1129 = vmatpush2.bf16.msra.mxu0 0
        %1130 = vmatprep.subr.bf16.mxu0 0
        %1131 = vmatpush2.bf16.msra.mxu0 0
        %1132 = vmatprep.subr.bf16.mxu0 0
        %1133 = vmatpush2.bf16.msra.mxu0 0
        %1134 = vmatprep.subr.bf16.mxu0 0
        %1135 = vmatpush2.bf16.msra.mxu0 0
        %1136 = vmatprep.subr.bf16.mxu0 0
        %1137 = vmatpush2.bf16.msra.mxu0 0
        %1138 = vmatprep.subr.bf16.mxu0 0
        %1139 = vmatpush2.bf16.msra.mxu0 0
        %1140 = vmatprep.subr.bf16.mxu0 0
        %1141 = vmatpush2.bf16.msra.mxu0 0
        %1142 = vmatprep.mubr.bf16.mxu0 0
        %1143 = vmatmul.mubr.bf16.gmra.mxu0 %v848
        %v1144 = vpop.f32.mrf.mxu0
        %v1145 = vadd.f32 0.0, %v1144
        %v1146 = vpop.f32.mrf.mxu0
        %v1147 = vpop.f32.mrf.mxu0
        %v1148 = vpop.f32.mrf.mxu0
        %1149 = vdwg.mxu0
        %v1154 = vunpack.c.l.b16 %v805
        %v1155 = vunpack.c.l.b16 %v806
        %v1156 = vunpack.c.l.b16 %v807
        %v1157 = vunpack.c.l.b16 %v808
        %v1158 = vpack.c.b16 %v1155, %v1154
        %v1159 = vpack.c.b16 %v1157, %v1156
        %1162 = vmatprep.subr.bf16.mxu0 0
        %1163 = vmatpush1.bf16.msra.mxu0 0
        %1164 = vmatprep.subr.bf16.mxu0 0
        %1165 = vmatpush1.bf16.msra.mxu0 0
        %1166 = vmatprep.subr.bf16.mxu0 0
        %1167 = vmatpush1.bf16.msra.mxu0 0
        %1168 = vmatprep.subr.bf16.mxu0 0
        %1169 = vmatpush1.bf16.msra.mxu0 0
        %1170 = vmatprep.subr.bf16.mxu0 0
        %1171 = vmatpush1.bf16.msra.mxu0 0
        %1172 = vmatprep.subr.bf16.mxu0 0
        %1173 = vmatpush1.bf16.msra.mxu0 0
        %1174 = vmatprep.subr.bf16.mxu0 0
        %1175 = vmatpush1.bf16.msra.mxu0 %v1159
        %1176 = vmatprep.subr.bf16.mxu0 0
        %1177 = vmatpush1.bf16.msra.mxu0 %v1158
        %1178 = vmatprep.subr.bf16.mxu0 0
        %1179 = vmatpush2.bf16.msra.mxu0 0
        %1180 = vmatprep.subr.bf16.mxu0 0
        %1181 = vmatpush2.bf16.msra.mxu0 0
        %1182 = vmatprep.subr.bf16.mxu0 0
        %1183 = vmatpush2.bf16.msra.mxu0 0
        %1184 = vmatprep.subr.bf16.mxu0 0
        %1185 = vmatpush2.bf16.msra.mxu0 0
        %1186 = vmatprep.subr.bf16.mxu0 0
        %1187 = vmatpush2.bf16.msra.mxu0 0
        %1188 = vmatprep.subr.bf16.mxu0 0
        %1189 = vmatpush2.bf16.msra.mxu0 0
        %1190 = vmatprep.subr.bf16.mxu0 0
        %1191 = vmatpush2.bf16.msra.mxu0 0
        %1192 = vmatprep.subr.bf16.mxu0 0
        %1193 = vmatpush2.bf16.msra.mxu0 0
        %1194 = vmatprep.mubr.bf16.mxu0 0
        %1195 = vmatmul.mubr.bf16.gmra.mxu0 %v848
        %v1196 = vpop.f32.mrf.mxu0
        %v1197 = vadd.f32 0.0, %v1196
        %v1198 = vpop.f32.mrf.mxu0
        %v1199 = vpop.f32.mrf.mxu0
        %v1200 = vpop.f32.mrf.mxu0
        %1201 = vdwg.mxu0
        %v1206 = vunpack.c.l.b16 %v809
        %v1207 = vunpack.c.l.b16 %v810
        %v1208 = vunpack.c.l.b16 %v811
        %v1209 = vunpack.c.l.b16 %v812
        %v1210 = vpack.c.b16 %v1207, %v1206
        %v1211 = vpack.c.b16 %v1209, %v1208
        %1214 = vmatprep.subr.bf16.mxu0 0
        %1215 = vmatpush1.bf16.msra.mxu0 0
        %1216 = vmatprep.subr.bf16.mxu0 0
        %1217 = vmatpush1.bf16.msra.mxu0 0
        %1218 = vmatprep.subr.bf16.mxu0 0
        %1219 = vmatpush1.bf16.msra.mxu0 0
        %1220 = vmatprep.subr.bf16.mxu0 0
        %1221 = vmatpush1.bf16.msra.mxu0 0
        %1222 = vmatprep.subr.bf16.mxu0 0
        %1223 = vmatpush1.bf16.msra.mxu0 0
        %1224 = vmatprep.subr.bf16.mxu0 0
        %1225 = vmatpush1.bf16.msra.mxu0 0
        %1226 = vmatprep.subr.bf16.mxu0 0
        %1227 = vmatpush1.bf16.msra.mxu0 %v1211
        %1228 = vmatprep.subr.bf16.mxu0 0
        %1229 = vmatpush1.bf16.msra.mxu0 %v1210
        %1230 = vmatprep.subr.bf16.mxu0 0
        %1231 = vmatpush2.bf16.msra.mxu0 0
        %1232 = vmatprep.subr.bf16.mxu0 0
        %1233 = vmatpush2.bf16.msra.mxu0 0
        %1234 = vmatprep.subr.bf16.mxu0 0
        %1235 = vmatpush2.bf16.msra.mxu0 0
        %1236 = vmatprep.subr.bf16.mxu0 0
        %1237 = vmatpush2.bf16.msra.mxu0 0
        %1238 = vmatprep.subr.bf16.mxu0 0
        %1239 = vmatpush2.bf16.msra.mxu0 0
        %1240 = vmatprep.subr.bf16.mxu0 0
        %1241 = vmatpush2.bf16.msra.mxu0 0
        %1242 = vmatprep.subr.bf16.mxu0 0
        %1243 = vmatpush2.bf16.msra.mxu0 0
        %1244 = vmatprep.subr.bf16.mxu0 0
        %1245 = vmatpush2.bf16.msra.mxu0 0
        %1246 = vmatprep.mubr.bf16.mxu0 0
        %1247 = vmatmul.mubr.bf16.gmra.mxu0 %v848
        %v1248 = vpop.f32.mrf.mxu0
        %v1249 = vadd.f32 0.0, %v1248
        %v1250 = vpop.f32.mrf.mxu0
        %v1251 = vpop.f32.mrf.mxu0
        %v1252 = vpop.f32.mrf.mxu0
        %1253 = vdwg.mxu0
        %v1258 = vunpack.c.l.b16 %v813
        %v1259 = vunpack.c.l.b16 %v814
        %v1260 = vunpack.c.l.b16 %v815
        %v1261 = vunpack.c.l.b16 %v816
        %v1262 = vpack.c.b16 %v1259, %v1258
        %v1263 = vpack.c.b16 %v1261, %v1260
        %1266 = vmatprep.subr.bf16.mxu0 0
        %1267 = vmatpush1.bf16.msra.mxu0 0
        %1268 = vmatprep.subr.bf16.mxu0 0
        %1269 = vmatpush1.bf16.msra.mxu0 0
        %1270 = vmatprep.subr.bf16.mxu0 0
        %1271 = vmatpush1.bf16.msra.mxu0 0
        %1272 = vmatprep.subr.bf16.mxu0 0
        %1273 = vmatpush1.bf16.msra.mxu0 0
        %1274 = vmatprep.subr.bf16.mxu0 0
        %1275 = vmatpush1.bf16.msra.mxu0 0
        %1276 = vmatprep.subr.bf16.mxu0 0
        %1277 = vmatpush1.bf16.msra.mxu0 0
        %1278 = vmatprep.subr.bf16.mxu0 0
        %1279 = vmatpush1.bf16.msra.mxu0 %v1263
        %1280 = vmatprep.subr.bf16.mxu0 0
        %1281 = vmatpush1.bf16.msra.mxu0 %v1262
        %1282 = vmatprep.subr.bf16.mxu0 0
        %1283 = vmatpush2.bf16.msra.mxu0 0
        %1284 = vmatprep.subr.bf16.mxu0 0
        %1285 = vmatpush2.bf16.msra.mxu0 0
        %1286 = vmatprep.subr.bf16.mxu0 0
        %1287 = vmatpush2.bf16.msra.mxu0 0
        %1288 = vmatprep.subr.bf16.mxu0 0
        %1289 = vmatpush2.bf16.msra.mxu0 0
        %1290 = vmatprep.subr.bf16.mxu0 0
        %1291 = vmatpush2.bf16.msra.mxu0 0
        %1292 = vmatprep.subr.bf16.mxu0 0
        %1293 = vmatpush2.bf16.msra.mxu0 0
        %1294 = vmatprep.subr.bf16.mxu0 0
        %1295 = vmatpush2.bf16.msra.mxu0 0
        %1296 = vmatprep.subr.bf16.mxu0 0
        %1297 = vmatpush2.bf16.msra.mxu0 0
        %1298 = vmatprep.mubr.bf16.mxu0 0
        %1299 = vmatmul.mubr.bf16.gmra.mxu0 %v848
        %v1300 = vpop.f32.mrf.mxu0
        %v1301 = vadd.f32 0.0, %v1300
        %v1302 = vpop.f32.mrf.mxu0
        %v1303 = vpop.f32.mrf.mxu0
        %v1304 = vpop.f32.mrf.mxu0
        %1305 = vdwg.mxu0
        %v1310 = vunpack.c.l.b16 %v817
        %v1311 = vunpack.c.l.b16 %v818
        %v1312 = vunpack.c.l.b16 %v819
        %v1313 = vunpack.c.l.b16 %v820
        %v1314 = vpack.c.b16 %v1311, %v1310
        %v1315 = vpack.c.b16 %v1313, %v1312
        %1318 = vmatprep.subr.bf16.mxu0 0
        %1319 = vmatpush1.bf16.msra.mxu0 0
        %1320 = vmatprep.subr.bf16.mxu0 0
        %1321 = vmatpush1.bf16.msra.mxu0 0
        %1322 = vmatprep.subr.bf16.mxu0 0
        %1323 = vmatpush1.bf16.msra.mxu0 0
        %1324 = vmatprep.subr.bf16.mxu0 0
        %1325 = vmatpush1.bf16.msra.mxu0 0
        %1326 = vmatprep.subr.bf16.mxu0 0
        %1327 = vmatpush1.bf16.msra.mxu0 0
        %1328 = vmatprep.subr.bf16.mxu0 0
        %1329 = vmatpush1.bf16.msra.mxu0 0
        %1330 = vmatprep.subr.bf16.mxu0 0
        %1331 = vmatpush1.bf16.msra.mxu0 %v1315
        %1332 = vmatprep.subr.bf16.mxu0 0
        %1333 = vmatpush1.bf16.msra.mxu0 %v1314
        %1334 = vmatprep.subr.bf16.mxu0 0
        %1335 = vmatpush2.bf16.msra.mxu0 0
        %1336 = vmatprep.subr.bf16.mxu0 0
        %1337 = vmatpush2.bf16.msra.mxu0 0
        %1338 = vmatprep.subr.bf16.mxu0 0
        %1339 = vmatpush2.bf16.msra.mxu0 0
        %1340 = vmatprep.subr.bf16.mxu0 0
        %1341 = vmatpush2.bf16.msra.mxu0 0
        %1342 = vmatprep.subr.bf16.mxu0 0
        %1343 = vmatpush2.bf16.msra.mxu0 0
        %1344 = vmatprep.subr.bf16.mxu0 0
        %1345 = vmatpush2.bf16.msra.mxu0 0
        %1346 = vmatprep.subr.bf16.mxu0 0
        %1347 = vmatpush2.bf16.msra.mxu0 0
        %1348 = vmatprep.subr.bf16.mxu0 0
        %1349 = vmatpush2.bf16.msra.mxu0 0
        %1350 = vmatprep.mubr.bf16.mxu0 0
        %1351 = vmatmul.mubr.bf16.gmra.mxu0 %v848
        %v1352 = vpop.f32.mrf.mxu0
        %v1353 = vadd.f32 0.0, %v1352
        %v1354 = vpop.f32.mrf.mxu0
        %v1355 = vpop.f32.mrf.mxu0
        %v1356 = vpop.f32.mrf.mxu0
        %1357 = vdwg.mxu0
        %v1362 = vunpack.c.l.b16 %v821
        %v1363 = vunpack.c.l.b16 %v822
        %v1364 = vunpack.c.l.b16 %v823
        %v1365 = vunpack.c.l.b16 %v824
        %v1366 = vpack.c.b16 %v1363, %v1362
        %v1367 = vpack.c.b16 %v1365, %v1364
        %1370 = vmatprep.subr.bf16.mxu0 0
        %1371 = vmatpush1.bf16.msra.mxu0 0
        %1372 = vmatprep.subr.bf16.mxu0 0
        %1373 = vmatpush1.bf16.msra.mxu0 0
        %1374 = vmatprep.subr.bf16.mxu0 0
        %1375 = vmatpush1.bf16.msra.mxu0 0
        %1376 = vmatprep.subr.bf16.mxu0 0
        %1377 = vmatpush1.bf16.msra.mxu0 0
        %1378 = vmatprep.subr.bf16.mxu0 0
        %1379 = vmatpush1.bf16.msra.mxu0 0
        %1380 = vmatprep.subr.bf16.mxu0 0
        %1381 = vmatpush1.bf16.msra.mxu0 0
        %1382 = vmatprep.subr.bf16.mxu0 0
        %1383 = vmatpush1.bf16.msra.mxu0 %v1367
        %1384 = vmatprep.subr.bf16.mxu0 0
        %1385 = vmatpush1.bf16.msra.mxu0 %v1366
        %1386 = vmatprep.subr.bf16.mxu0 0
        %1387 = vmatpush2.bf16.msra.mxu0 0
        %1388 = vmatprep.subr.bf16.mxu0 0
        %1389 = vmatpush2.bf16.msra.mxu0 0
        %1390 = vmatprep.subr.bf16.mxu0 0
        %1391 = vmatpush2.bf16.msra.mxu0 0
        %1392 = vmatprep.subr.bf16.mxu0 0
        %1393 = vmatpush2.bf16.msra.mxu0 0
        %1394 = vmatprep.subr.bf16.mxu0 0
        %1395 = vmatpush2.bf16.msra.mxu0 0
        %1396 = vmatprep.subr.bf16.mxu0 0
        %1397 = vmatpush2.bf16.msra.mxu0 0
        %1398 = vmatprep.subr.bf16.mxu0 0
        %1399 = vmatpush2.bf16.msra.mxu0 0
        %1400 = vmatprep.subr.bf16.mxu0 0
        %1401 = vmatpush2.bf16.msra.mxu0 0
        %1402 = vmatprep.mubr.bf16.mxu0 0
        %1403 = vmatmul.mubr.bf16.gmra.mxu0 %v848
        %v1404 = vpop.f32.mrf.mxu0
        %v1405 = vadd.f32 0.0, %v1404
        %v1406 = vpop.f32.mrf.mxu0
        %v1407 = vpop.f32.mrf.mxu0
        %v1408 = vpop.f32.mrf.mxu0
        %1409 = vdwg.mxu0
        %v1414 = vunpack.c.l.b16 %v825
        %v1415 = vunpack.c.l.b16 %v826
        %v1416 = vunpack.c.l.b16 %v827
        %v1417 = vunpack.c.l.b16 %v828
        %v1418 = vpack.c.b16 %v1415, %v1414
        %v1419 = vpack.c.b16 %v1417, %v1416
        %1422 = vmatprep.subr.bf16.mxu0 0
        %1423 = vmatpush1.bf16.msra.mxu0 0
        %1424 = vmatprep.subr.bf16.mxu0 0
        %1425 = vmatpush1.bf16.msra.mxu0 0
        %1426 = vmatprep.subr.bf16.mxu0 0
        %1427 = vmatpush1.bf16.msra.mxu0 0
        %1428 = vmatprep.subr.bf16.mxu0 0
        %1429 = vmatpush1.bf16.msra.mxu0 0
        %1430 = vmatprep.subr.bf16.mxu0 0
        %1431 = vmatpush1.bf16.msra.mxu0 0
        %1432 = vmatprep.subr.bf16.mxu0 0
        %1433 = vmatpush1.bf16.msra.mxu0 0
        %1434 = vmatprep.subr.bf16.mxu0 0
        %1435 = vmatpush1.bf16.msra.mxu0 %v1419
        %1436 = vmatprep.subr.bf16.mxu0 0
        %1437 = vmatpush1.bf16.msra.mxu0 %v1418
        %1438 = vmatprep.subr.bf16.mxu0 0
        %1439 = vmatpush2.bf16.msra.mxu0 0
        %1440 = vmatprep.subr.bf16.mxu0 0
        %1441 = vmatpush2.bf16.msra.mxu0 0
        %1442 = vmatprep.subr.bf16.mxu0 0
        %1443 = vmatpush2.bf16.msra.mxu0 0
        %1444 = vmatprep.subr.bf16.mxu0 0
        %1445 = vmatpush2.bf16.msra.mxu0 0
        %1446 = vmatprep.subr.bf16.mxu0 0
        %1447 = vmatpush2.bf16.msra.mxu0 0
        %1448 = vmatprep.subr.bf16.mxu0 0
        %1449 = vmatpush2.bf16.msra.mxu0 0
        %1450 = vmatprep.subr.bf16.mxu0 0
        %1451 = vmatpush2.bf16.msra.mxu0 0
        %1452 = vmatprep.subr.bf16.mxu0 0
        %1453 = vmatpush2.bf16.msra.mxu0 0
        %1454 = vmatprep.mubr.bf16.mxu0 0
        %1455 = vmatmul.mubr.bf16.gmra.mxu0 %v848
        %v1456 = vpop.f32.mrf.mxu0
        %v1457 = vadd.f32 0.0, %v1456
        %v1458 = vpop.f32.mrf.mxu0
        %v1459 = vpop.f32.mrf.mxu0
        %v1460 = vpop.f32.mrf.mxu0
        %1461 = vdwg.mxu0
        %v1462 = vmul.f32 %v885, 0.35355338
        %v1463 = vmul.f32 %v937, 0.35355338
        %v1464 = vmul.f32 %v989, 0.35355338
        %v1465 = vmul.f32 %v1041, 0.35355338
        %v1466 = vpack.c.bf16 %v1462, %v1462
        %v1467 = vpack.c.bf16 %v1463, %v1463
        %v1468 = vpack.c.bf16 %v1464, %v1464
        %v1469 = vpack.c.bf16 %v1465, %v1465
        %v1470 = vpack.c.bf16 %v1093, %v1093
        %v1471 = vpack.c.bf16 %v1145, %v1145
        %v1472 = vpack.c.bf16 %v1197, %v1197
        %v1473 = vpack.c.bf16 %v1249, %v1249
        %vm1474 = vcmask 64512
        %v1476 = vsel %vm1474, %v1466, 0
        %v1479 = vsel %vm1474, %v1470, 0
        %1481 = vmatprep.subr.bf16.mxu0 0
        %1482 = vmatpush1.bf16.xpose.msra.mxu0 0
        %1483 = vmatprep.subr.bf16.mxu0 0
        %1484 = vmatpush1.bf16.xpose.msra.mxu0 0
        %1485 = vmatprep.subr.bf16.mxu0 0
        %1486 = vmatpush1.bf16.xpose.msra.mxu0 0
        %1487 = vmatprep.subr.bf16.mxu0 0
        %1488 = vmatpush1.bf16.xpose.msra.mxu0 0
        %1489 = vmatprep.subr.bf16.mxu0 0
        %1490 = vmatpush1.bf16.xpose.msra.mxu0 0
        %1491 = vmatprep.subr.bf16.mxu0 0
        %1492 = vmatpush1.bf16.xpose.msra.mxu0 0
        %1493 = vmatprep.subr.bf16.mxu0 0
        %1494 = vmatpush1.bf16.xpose.msra.mxu0 0
        %1495 = vmatprep.subr.bf16.mxu0 0
        %1496 = vmatpush1.bf16.xpose.msra.mxu0 %v1479
        %1497 = vmatprep.subr.bf16.mxu0 0
        %1498 = vmatpush2.bf16.xpose.msra.mxu0 0
        %1499 = vmatprep.subr.bf16.mxu0 0
        %1500 = vmatpush2.bf16.xpose.msra.mxu0 0
        %1501 = vmatprep.subr.bf16.mxu0 0
        %1502 = vmatpush2.bf16.xpose.msra.mxu0 0
        %1503 = vmatprep.subr.bf16.mxu0 0
        %1504 = vmatpush2.bf16.xpose.msra.mxu0 0
        %1505 = vmatprep.subr.bf16.mxu0 0
        %1506 = vmatpush2.bf16.xpose.msra.mxu0 0
        %1507 = vmatprep.subr.bf16.mxu0 0
        %1508 = vmatpush2.bf16.xpose.msra.mxu0 0
        %1509 = vmatprep.subr.bf16.mxu0 0
        %1510 = vmatpush2.bf16.xpose.msra.mxu0 0
        %1511 = vmatprep.subr.bf16.mxu0 0
        %1512 = vmatpush2.bf16.xpose.msra.mxu0 0
        %1513 = vmatprep.mubr.bf16.mxu0 0
        %1514 = vmatmul.mubr.bf16.gmra.mxu0 %v1476
        %v1515 = vpop.f32.mrf.mxu0
        %v1516 = vadd.f32 0.0, %v1515
        %v1517 = vpop.f32.mrf.mxu0
        %v1518 = vpop.f32.mrf.mxu0
        %v1519 = vpop.f32.mrf.mxu0
        %1520 = vdwg.mxu0
        %v1522 = vsel %vm1474, %v1467, 0
        %v1525 = vsel %vm1474, %v1471, 0
        %1527 = vmatprep.subr.bf16.mxu0 0
        %1528 = vmatpush1.bf16.xpose.msra.mxu0 0
        %1529 = vmatprep.subr.bf16.mxu0 0
        %1530 = vmatpush1.bf16.xpose.msra.mxu0 0
        %1531 = vmatprep.subr.bf16.mxu0 0
        %1532 = vmatpush1.bf16.xpose.msra.mxu0 0
        %1533 = vmatprep.subr.bf16.mxu0 0
        %1534 = vmatpush1.bf16.xpose.msra.mxu0 0
        %1535 = vmatprep.subr.bf16.mxu0 0
        %1536 = vmatpush1.bf16.xpose.msra.mxu0 0
        %1537 = vmatprep.subr.bf16.mxu0 0
        %1538 = vmatpush1.bf16.xpose.msra.mxu0 0
        %1539 = vmatprep.subr.bf16.mxu0 0
        %1540 = vmatpush1.bf16.xpose.msra.mxu0 0
        %1541 = vmatprep.subr.bf16.mxu0 0
        %1542 = vmatpush1.bf16.xpose.msra.mxu0 %v1525
        %1543 = vmatprep.subr.bf16.mxu0 0
        %1544 = vmatpush2.bf16.xpose.msra.mxu0 0
        %1545 = vmatprep.subr.bf16.mxu0 0
        %1546 = vmatpush2.bf16.xpose.msra.mxu0 0
        %1547 = vmatprep.subr.bf16.mxu0 0
        %1548 = vmatpush2.bf16.xpose.msra.mxu0 0
        %1549 = vmatprep.subr.bf16.mxu0 0
        %1550 = vmatpush2.bf16.xpose.msra.mxu0 0
        %1551 = vmatprep.subr.bf16.mxu0 0
        %1552 = vmatpush2.bf16.xpose.msra.mxu0 0
        %1553 = vmatprep.subr.bf16.mxu0 0
        %1554 = vmatpush2.bf16.xpose.msra.mxu0 0
        %1555 = vmatprep.subr.bf16.mxu0 0
        %1556 = vmatpush2.bf16.xpose.msra.mxu0 0
        %1557 = vmatprep.subr.bf16.mxu0 0
        %1558 = vmatpush2.bf16.xpose.msra.mxu0 0
        %1559 = vmatprep.mubr.bf16.mxu0 0
        %1560 = vmatmul.mubr.bf16.gmra.mxu0 %v1522
        %v1561 = vpop.f32.mrf.mxu0
        %v1562 = vadd.f32 0.0, %v1561
        %v1563 = vpop.f32.mrf.mxu0
        %v1564 = vpop.f32.mrf.mxu0
        %v1565 = vpop.f32.mrf.mxu0
        %1566 = vdwg.mxu0
        %v1568 = vsel %vm1474, %v1468, 0
        %v1571 = vsel %vm1474, %v1472, 0
        %1573 = vmatprep.subr.bf16.mxu0 0
        %1574 = vmatpush1.bf16.xpose.msra.mxu0 0
        %1575 = vmatprep.subr.bf16.mxu0 0
        %1576 = vmatpush1.bf16.xpose.msra.mxu0 0
        %1577 = vmatprep.subr.bf16.mxu0 0
        %1578 = vmatpush1.bf16.xpose.msra.mxu0 0
        %1579 = vmatprep.subr.bf16.mxu0 0
        %1580 = vmatpush1.bf16.xpose.msra.mxu0 0
        %1581 = vmatprep.subr.bf16.mxu0 0
        %1582 = vmatpush1.bf16.xpose.msra.mxu0 0
        %1583 = vmatprep.subr.bf16.mxu0 0
        %1584 = vmatpush1.bf16.xpose.msra.mxu0 0
        %1585 = vmatprep.subr.bf16.mxu0 0
        %1586 = vmatpush1.bf16.xpose.msra.mxu0 0
        %1587 = vmatprep.subr.bf16.mxu0 0
        %1588 = vmatpush1.bf16.xpose.msra.mxu0 %v1571
        %1589 = vmatprep.subr.bf16.mxu0 0
        %1590 = vmatpush2.bf16.xpose.msra.mxu0 0
        %1591 = vmatprep.subr.bf16.mxu0 0
        %1592 = vmatpush2.bf16.xpose.msra.mxu0 0
        %1593 = vmatprep.subr.bf16.mxu0 0
        %1594 = vmatpush2.bf16.xpose.msra.mxu0 0
        %1595 = vmatprep.subr.bf16.mxu0 0
        %1596 = vmatpush2.bf16.xpose.msra.mxu0 0
        %1597 = vmatprep.subr.bf16.mxu0 0
        %1598 = vmatpush2.bf16.xpose.msra.mxu0 0
        %1599 = vmatprep.subr.bf16.mxu0 0
        %1600 = vmatpush2.bf16.xpose.msra.mxu0 0
        %1601 = vmatprep.subr.bf16.mxu0 0
        %1602 = vmatpush2.bf16.xpose.msra.mxu0 0
        %1603 = vmatprep.subr.bf16.mxu0 0
        %1604 = vmatpush2.bf16.xpose.msra.mxu0 0
        %1605 = vmatprep.mubr.bf16.mxu0 0
        %1606 = vmatmul.mubr.bf16.gmra.mxu0 %v1568
        %v1607 = vpop.f32.mrf.mxu0
        %v1608 = vadd.f32 0.0, %v1607
        %v1609 = vpop.f32.mrf.mxu0
        %v1610 = vpop.f32.mrf.mxu0
        %v1611 = vpop.f32.mrf.mxu0
        %1612 = vdwg.mxu0
        %v1614 = vsel %vm1474, %v1469, 0
        %v1617 = vsel %vm1474, %v1473, 0
        %1619 = vmatprep.subr.bf16.mxu0 0
        %1620 = vmatpush1.bf16.xpose.msra.mxu0 0
        %1621 = vmatprep.subr.bf16.mxu0 0
        %1622 = vmatpush1.bf16.xpose.msra.mxu0 0
        %1623 = vmatprep.subr.bf16.mxu0 0
        %1624 = vmatpush1.bf16.xpose.msra.mxu0 0
        %1625 = vmatprep.subr.bf16.mxu0 0
        %1626 = vmatpush1.bf16.xpose.msra.mxu0 0
        %1627 = vmatprep.subr.bf16.mxu0 0
        %1628 = vmatpush1.bf16.xpose.msra.mxu0 0
        %1629 = vmatprep.subr.bf16.mxu0 0
        %1630 = vmatpush1.bf16.xpose.msra.mxu0 0
        %1631 = vmatprep.subr.bf16.mxu0 0
        %1632 = vmatpush1.bf16.xpose.msra.mxu0 0
        %1633 = vmatprep.subr.bf16.mxu0 0
        %1634 = vmatpush1.bf16.xpose.msra.mxu0 %v1617
        %1635 = vmatprep.subr.bf16.mxu0 0
        %1636 = vmatpush2.bf16.xpose.msra.mxu0 0
        %1637 = vmatprep.subr.bf16.mxu0 0
        %1638 = vmatpush2.bf16.xpose.msra.mxu0 0
        %1639 = vmatprep.subr.bf16.mxu0 0
        %1640 = vmatpush2.bf16.xpose.msra.mxu0 0
        %1641 = vmatprep.subr.bf16.mxu0 0
        %1642 = vmatpush2.bf16.xpose.msra.mxu0 0
        %1643 = vmatprep.subr.bf16.mxu0 0
        %1644 = vmatpush2.bf16.xpose.msra.mxu0 0
        %1645 = vmatprep.subr.bf16.mxu0 0
        %1646 = vmatpush2.bf16.xpose.msra.mxu0 0
        %1647 = vmatprep.subr.bf16.mxu0 0
        %1648 = vmatpush2.bf16.xpose.msra.mxu0 0
        %1649 = vmatprep.subr.bf16.mxu0 0
        %1650 = vmatpush2.bf16.xpose.msra.mxu0 0
        %1651 = vmatprep.mubr.bf16.mxu0 0
        %1652 = vmatmul.mubr.bf16.gmra.mxu0 %v1614
        %v1653 = vpop.f32.mrf.mxu0
        %v1654 = vadd.f32 0.0, %v1653
        %v1655 = vpop.f32.mrf.mxu0
        %v1656 = vpop.f32.mrf.mxu0
        %v1657 = vpop.f32.mrf.mxu0
        %1658 = vdwg.mxu0
        %v1659 = vsel %vm1474, %v1516, -inf
        %1660 = vmax.xlane.f32.xlu0 %v1659
        %v1661 = vpop.xlane.xlu0 %1660
        %v1662 = vsel %vm1474, %v1562, -inf
        %1663 = vmax.xlane.f32.xlu0 %v1662
        %v1664 = vpop.xlane.xlu0 %1663
        %v1665 = vsel %vm1474, %v1608, -inf
        %1666 = vmax.xlane.f32.xlu0 %v1665
        %v1667 = vpop.xlane.xlu0 %1666
        %v1668 = vsel %vm1474, %v1654, -inf
        %1669 = vmax.xlane.f32.xlu0 %v1668
        %v1670 = vpop.xlane.xlu0 %1669
        %v1671 = vsub.f32 %v1516, %v1661
        %v1672 = vsub.f32 %v1562, %v1664
        %v1673 = vsub.f32 %v1608, %v1667
        %v1674 = vsub.f32 %v1654, %v1670
        %v1675 = vmul.f32 %v1671, 1.442695
        %v1676 = vpow.pop %v1675
        %v1677 = vmul.f32 %v1672, 1.442695
        %v1678 = vpow.pop %v1677
        %v1679 = vmul.f32 %v1673, 1.442695
        %v1680 = vpow.pop %v1679
        %v1681 = vmul.f32 %v1674, 1.442695
        %v1682 = vpow.pop %v1681
        %v1683 = vsel %vm1474, %v1676, 0.0
        %1684 = vadd.xlane.f32.xlu0 %v1683
        %v1685 = vpop.xlane.xlu0 %1684
        %v1686 = vsel %vm1474, %v1678, 0.0
        %1687 = vadd.xlane.f32.xlu0 %v1686
        %v1688 = vpop.xlane.xlu0 %1687
        %v1689 = vsel %vm1474, %v1680, 0.0
        %1690 = vadd.xlane.f32.xlu0 %v1689
        %v1691 = vpop.xlane.xlu0 %1690
        %v1692 = vsel %vm1474, %v1682, 0.0
        %1693 = vadd.xlane.f32.xlu0 %v1692
        %v1694 = vpop.xlane.xlu0 %1693
        %v1695 = vrcp.pop %v1685
        %v1696 = vrcp.pop %v1688
        %v1697 = vrcp.pop %v1691
        %v1698 = vrcp.pop %v1694
        %v1699 = vmul.f32 %v1676, %v1695
        %v1700 = vmul.f32 %v1678, %v1696
        %v1701 = vmul.f32 %v1680, %v1697
        %v1702 = vmul.f32 %v1682, %v1698
        %v1703 = vpack.c.bf16 %v1699, %v1699
        %v1704 = vpack.c.bf16 %v1700, %v1700
        %v1705 = vpack.c.bf16 %v1701, %v1701
        %v1706 = vpack.c.bf16 %v1702, %v1702
        %v1707 = vpack.c.bf16 %v1301, %v1301
        %v1708 = vpack.c.bf16 %v1353, %v1353
        %v1709 = vpack.c.bf16 %v1405, %v1405
        %v1710 = vpack.c.bf16 %v1457, %v1457
        %v1712 = vsel %vm1474, %v1703, 0
        %vm1714 = vcmask 1043456
        %v1716 = vsel %vm1714, %v1707, 0
        %1718 = vmatprep.subr.bf16.mxu0 0
        %1719 = vmatpush1.bf16.msra.mxu0 0
        %1720 = vmatprep.subr.bf16.mxu0 0
        %1721 = vmatpush1.bf16.msra.mxu0 0
        %1722 = vmatprep.subr.bf16.mxu0 0
        %1723 = vmatpush1.bf16.msra.mxu0 0
        %1724 = vmatprep.subr.bf16.mxu0 0
        %1725 = vmatpush1.bf16.msra.mxu0 0
        %1726 = vmatprep.subr.bf16.mxu0 0
        %1727 = vmatpush1.bf16.msra.mxu0 0
        %1728 = vmatprep.subr.bf16.mxu0 0
        %1729 = vmatpush1.bf16.msra.mxu0 0
        %1730 = vmatprep.subr.bf16.mxu0 0
        %1731 = vmatpush1.bf16.msra.mxu0 0
        %1732 = vmatprep.subr.bf16.mxu0 0
        %1733 = vmatpush1.bf16.msra.mxu0 %v1716
        %1734 = vmatprep.subr.bf16.mxu0 0
        %1735 = vmatpush2.bf16.msra.mxu0 0
        %1736 = vmatprep.subr.bf16.mxu0 0
        %1737 = vmatpush2.bf16.msra.mxu0 0
        %1738 = vmatprep.subr.bf16.mxu0 0
        %1739 = vmatpush2.bf16.msra.mxu0 0
        %1740 = vmatprep.subr.bf16.mxu0 0
        %1741 = vmatpush2.bf16.msra.mxu0 0
        %1742 = vmatprep.subr.bf16.mxu0 0
        %1743 = vmatpush2.bf16.msra.mxu0 0
        %1744 = vmatprep.subr.bf16.mxu0 0
        %1745 = vmatpush2.bf16.msra.mxu0 0
        %1746 = vmatprep.subr.bf16.mxu0 0
        %1747 = vmatpush2.bf16.msra.mxu0 0
        %1748 = vmatprep.subr.bf16.mxu0 0
        %1749 = vmatpush2.bf16.msra.mxu0 0
        %1750 = vmatprep.mubr.bf16.mxu0 0
        %1751 = vmatmul.mubr.bf16.gmra.mxu0 %v1712
        %v1752 = vpop.f32.mrf.mxu0
        %v1753 = vadd.f32 0.0, %v1752
        %v1754 = vpop.f32.mrf.mxu0
        %v1755 = vpop.f32.mrf.mxu0
        %v1756 = vpop.f32.mrf.mxu0
        %1757 = vdwg.mxu0
        %v1759 = vsel %vm1474, %v1704, 0
        %v1762 = vsel %vm1714, %v1708, 0
        %1764 = vmatprep.subr.bf16.mxu0 0
        %1765 = vmatpush1.bf16.msra.mxu0 0
        %1766 = vmatprep.subr.bf16.mxu0 0
        %1767 = vmatpush1.bf16.msra.mxu0 0
        %1768 = vmatprep.subr.bf16.mxu0 0
        %1769 = vmatpush1.bf16.msra.mxu0 0
        %1770 = vmatprep.subr.bf16.mxu0 0
        %1771 = vmatpush1.bf16.msra.mxu0 0
        %1772 = vmatprep.subr.bf16.mxu0 0
        %1773 = vmatpush1.bf16.msra.mxu0 0
        %1774 = vmatprep.subr.bf16.mxu0 0
        %1775 = vmatpush1.bf16.msra.mxu0 0
        %1776 = vmatprep.subr.bf16.mxu0 0
        %1777 = vmatpush1.bf16.msra.mxu0 0
        %1778 = vmatprep.subr.bf16.mxu0 0
        %1779 = vmatpush1.bf16.msra.mxu0 %v1762
        %1780 = vmatprep.subr.bf16.mxu0 0
        %1781 = vmatpush2.bf16.msra.mxu0 0
        %1782 = vmatprep.subr.bf16.mxu0 0
        %1783 = vmatpush2.bf16.msra.mxu0 0
        %1784 = vmatprep.subr.bf16.mxu0 0
        %1785 = vmatpush2.bf16.msra.mxu0 0
        %1786 = vmatprep.subr.bf16.mxu0 0
        %1787 = vmatpush2.bf16.msra.mxu0 0
        %1788 = vmatprep.subr.bf16.mxu0 0
        %1789 = vmatpush2.bf16.msra.mxu0 0
        %1790 = vmatprep.subr.bf16.mxu0 0
        %1791 = vmatpush2.bf16.msra.mxu0 0
        %1792 = vmatprep.subr.bf16.mxu0 0
        %1793 = vmatpush2.bf16.msra.mxu0 0
        %1794 = vmatprep.subr.bf16.mxu0 0
        %1795 = vmatpush2.bf16.msra.mxu0 0
        %1796 = vmatprep.mubr.bf16.mxu0 0
        %1797 = vmatmul.mubr.bf16.gmra.mxu0 %v1759
        %v1798 = vpop.f32.mrf.mxu0
        %v1799 = vadd.f32 0.0, %v1798
        %v1800 = vpop.f32.mrf.mxu0
        %v1801 = vpop.f32.mrf.mxu0
        %v1802 = vpop.f32.mrf.mxu0
        %1803 = vdwg.mxu0
        %v1805 = vsel %vm1474, %v1705, 0
        %v1808 = vsel %vm1714, %v1709, 0
        %1810 = vmatprep.subr.bf16.mxu0 0
        %1811 = vmatpush1.bf16.msra.mxu0 0
        %1812 = vmatprep.subr.bf16.mxu0 0
        %1813 = vmatpush1.bf16.msra.mxu0 0
        %1814 = vmatprep.subr.bf16.mxu0 0
        %1815 = vmatpush1.bf16.msra.mxu0 0
        %1816 = vmatprep.subr.bf16.mxu0 0
        %1817 = vmatpush1.bf16.msra.mxu0 0
        %1818 = vmatprep.subr.bf16.mxu0 0
        %1819 = vmatpush1.bf16.msra.mxu0 0
        %1820 = vmatprep.subr.bf16.mxu0 0
        %1821 = vmatpush1.bf16.msra.mxu0 0
        %1822 = vmatprep.subr.bf16.mxu0 0
        %1823 = vmatpush1.bf16.msra.mxu0 0
        %1824 = vmatprep.subr.bf16.mxu0 0
        %1825 = vmatpush1.bf16.msra.mxu0 %v1808
        %1826 = vmatprep.subr.bf16.mxu0 0
        %1827 = vmatpush2.bf16.msra.mxu0 0
        %1828 = vmatprep.subr.bf16.mxu0 0
        %1829 = vmatpush2.bf16.msra.mxu0 0
        %1830 = vmatprep.subr.bf16.mxu0 0
        %1831 = vmatpush2.bf16.msra.mxu0 0
        %1832 = vmatprep.subr.bf16.mxu0 0
        %1833 = vmatpush2.bf16.msra.mxu0 0
        %1834 = vmatprep.subr.bf16.mxu0 0
        %1835 = vmatpush2.bf16.msra.mxu0 0
        %1836 = vmatprep.subr.bf16.mxu0 0
        %1837 = vmatpush2.bf16.msra.mxu0 0
        %1838 = vmatprep.subr.bf16.mxu0 0
        %1839 = vmatpush2.bf16.msra.mxu0 0
        %1840 = vmatprep.subr.bf16.mxu0 0
        %1841 = vmatpush2.bf16.msra.mxu0 0
        %1842 = vmatprep.mubr.bf16.mxu0 0
        %1843 = vmatmul.mubr.bf16.gmra.mxu0 %v1805
        %v1844 = vpop.f32.mrf.mxu0
        %v1845 = vadd.f32 0.0, %v1844
        %v1846 = vpop.f32.mrf.mxu0
        %v1847 = vpop.f32.mrf.mxu0
        %v1848 = vpop.f32.mrf.mxu0
        %1849 = vdwg.mxu0
        %v1851 = vsel %vm1474, %v1706, 0
        %v1854 = vsel %vm1714, %v1710, 0
        %1856 = vmatprep.subr.bf16.mxu0 0
        %1857 = vmatpush1.bf16.msra.mxu0 0
        %1858 = vmatprep.subr.bf16.mxu0 0
        %1859 = vmatpush1.bf16.msra.mxu0 0
        %1860 = vmatprep.subr.bf16.mxu0 0
        %1861 = vmatpush1.bf16.msra.mxu0 0
        %1862 = vmatprep.subr.bf16.mxu0 0
        %1863 = vmatpush1.bf16.msra.mxu0 0
        %1864 = vmatprep.subr.bf16.mxu0 0
        %1865 = vmatpush1.bf16.msra.mxu0 0
        %1866 = vmatprep.subr.bf16.mxu0 0
        %1867 = vmatpush1.bf16.msra.mxu0 0
        %1868 = vmatprep.subr.bf16.mxu0 0
        %1869 = vmatpush1.bf16.msra.mxu0 0
        %1870 = vmatprep.subr.bf16.mxu0 0
        %1871 = vmatpush1.bf16.msra.mxu0 %v1854
        %1872 = vmatprep.subr.bf16.mxu0 0
        %1873 = vmatpush2.bf16.msra.mxu0 0
        %1874 = vmatprep.subr.bf16.mxu0 0
        %1875 = vmatpush2.bf16.msra.mxu0 0
        %1876 = vmatprep.subr.bf16.mxu0 0
        %1877 = vmatpush2.bf16.msra.mxu0 0
        %1878 = vmatprep.subr.bf16.mxu0 0
        %1879 = vmatpush2.bf16.msra.mxu0 0
        %1880 = vmatprep.subr.bf16.mxu0 0
        %1881 = vmatpush2.bf16.msra.mxu0 0
        %1882 = vmatprep.subr.bf16.mxu0 0
        %1883 = vmatpush2.bf16.msra.mxu0 0
        %1884 = vmatprep.subr.bf16.mxu0 0
        %1885 = vmatpush2.bf16.msra.mxu0 0
        %1886 = vmatprep.subr.bf16.mxu0 0
        %1887 = vmatpush2.bf16.msra.mxu0 0
        %1888 = vmatprep.mubr.bf16.mxu0 0
        %1889 = vmatmul.mubr.bf16.gmra.mxu0 %v1851
        %v1890 = vpop.f32.mrf.mxu0
        %v1891 = vadd.f32 0.0, %v1890
        %v1892 = vpop.f32.mrf.mxu0
        %v1893 = vpop.f32.mrf.mxu0
        %v1894 = vpop.f32.mrf.mxu0
        %1895 = vdwg.mxu0
        %v1896 = vpack.c.bf16 %v1753, %v1753
        %v1897 = vpack.c.bf16 %v1799, %v1799
        %v1898 = vpack.c.bf16 %v1845, %v1845
        %v1899 = vpack.c.bf16 %v1891, %v1891
        %v1901 = vsel %vm1474, %v1896, 0
        %v1904 = vsel %vm1714, %v829, 0
        %1906 = vmatprep.subr.bf16.mxu0 0
        %1907 = vmatpush1.bf16.msra.mxu0 0
        %1908 = vmatprep.subr.bf16.mxu0 0
        %1909 = vmatpush1.bf16.msra.mxu0 0
        %1910 = vmatprep.subr.bf16.mxu0 0
        %1911 = vmatpush1.bf16.msra.mxu0 0
        %1912 = vmatprep.subr.bf16.mxu0 0
        %1913 = vmatpush1.bf16.msra.mxu0 0
        %1914 = vmatprep.subr.bf16.mxu0 0
        %1915 = vmatpush1.bf16.msra.mxu0 0
        %1916 = vmatprep.subr.bf16.mxu0 0
        %1917 = vmatpush1.bf16.msra.mxu0 0
        %1918 = vmatprep.subr.bf16.mxu0 0
        %1919 = vmatpush1.bf16.msra.mxu0 0
        %1920 = vmatprep.subr.bf16.mxu0 0
        %1921 = vmatpush1.bf16.msra.mxu0 %v1904
        %1922 = vmatprep.subr.bf16.mxu0 0
        %1923 = vmatpush2.bf16.msra.mxu0 0
        %1924 = vmatprep.subr.bf16.mxu0 0
        %1925 = vmatpush2.bf16.msra.mxu0 0
        %1926 = vmatprep.subr.bf16.mxu0 0
        %1927 = vmatpush2.bf16.msra.mxu0 0
        %1928 = vmatprep.subr.bf16.mxu0 0
        %1929 = vmatpush2.bf16.msra.mxu0 0
        %1930 = vmatprep.subr.bf16.mxu0 0
        %1931 = vmatpush2.bf16.msra.mxu0 0
        %1932 = vmatprep.subr.bf16.mxu0 0
        %1933 = vmatpush2.bf16.msra.mxu0 0
        %1934 = vmatprep.subr.bf16.mxu0 0
        %1935 = vmatpush2.bf16.msra.mxu0 0
        %1936 = vmatprep.subr.bf16.mxu0 0
        %1937 = vmatpush2.bf16.msra.mxu0 0
        %1938 = vmatprep.mubr.bf16.mxu0 0
        %1939 = vmatmul.mubr.bf16.gmra.mxu0 %v1901
        %v1940 = vpop.f32.mrf.mxu0
        %v1941 = vadd.f32 0.0, %v1940
        %v1942 = vpop.f32.mrf.mxu0
        %v1943 = vpop.f32.mrf.mxu0
        %v1944 = vpop.f32.mrf.mxu0
        %1945 = vdwg.mxu0
        %v1947 = vsel %vm1474, %v1897, 0
        %v1950 = vsel %vm1714, %v830, 0
        %1952 = vmatprep.subr.bf16.mxu0 0
        %1953 = vmatpush1.bf16.msra.mxu0 0
        %1954 = vmatprep.subr.bf16.mxu0 0
        %1955 = vmatpush1.bf16.msra.mxu0 0
        %1956 = vmatprep.subr.bf16.mxu0 0
        %1957 = vmatpush1.bf16.msra.mxu0 0
        %1958 = vmatprep.subr.bf16.mxu0 0
        %1959 = vmatpush1.bf16.msra.mxu0 0
        %1960 = vmatprep.subr.bf16.mxu0 0
        %1961 = vmatpush1.bf16.msra.mxu0 0
        %1962 = vmatprep.subr.bf16.mxu0 0
        %1963 = vmatpush1.bf16.msra.mxu0 0
        %1964 = vmatprep.subr.bf16.mxu0 0
        %1965 = vmatpush1.bf16.msra.mxu0 0
        %1966 = vmatprep.subr.bf16.mxu0 0
        %1967 = vmatpush1.bf16.msra.mxu0 %v1950
        %1968 = vmatprep.subr.bf16.mxu0 0
        %1969 = vmatpush2.bf16.msra.mxu0 0
        %1970 = vmatprep.subr.bf16.mxu0 0
        %1971 = vmatpush2.bf16.msra.mxu0 0
        %1972 = vmatprep.subr.bf16.mxu0 0
        %1973 = vmatpush2.bf16.msra.mxu0 0
        %1974 = vmatprep.subr.bf16.mxu0 0
        %1975 = vmatpush2.bf16.msra.mxu0 0
        %1976 = vmatprep.subr.bf16.mxu0 0
        %1977 = vmatpush2.bf16.msra.mxu0 0
        %1978 = vmatprep.subr.bf16.mxu0 0
        %1979 = vmatpush2.bf16.msra.mxu0 0
        %1980 = vmatprep.subr.bf16.mxu0 0
        %1981 = vmatpush2.bf16.msra.mxu0 0
        %1982 = vmatprep.subr.bf16.mxu0 0
        %1983 = vmatpush2.bf16.msra.mxu0 0
        %1984 = vmatprep.mubr.bf16.mxu0 0
        %1985 = vmatmul.mubr.bf16.gmra.mxu0 %v1947
        %v1986 = vpop.f32.mrf.mxu0
        %v1987 = vadd.f32 0.0, %v1986
        %v1988 = vpop.f32.mrf.mxu0
        %v1989 = vpop.f32.mrf.mxu0
        %v1990 = vpop.f32.mrf.mxu0
        %1991 = vdwg.mxu0
        %v1993 = vsel %vm1474, %v1898, 0
        %v1996 = vsel %vm1714, %v831, 0
        %1998 = vmatprep.subr.bf16.mxu0 0
        %1999 = vmatpush1.bf16.msra.mxu0 0
        %2000 = vmatprep.subr.bf16.mxu0 0
        %2001 = vmatpush1.bf16.msra.mxu0 0
        %2002 = vmatprep.subr.bf16.mxu0 0
        %2003 = vmatpush1.bf16.msra.mxu0 0
        %2004 = vmatprep.subr.bf16.mxu0 0
        %2005 = vmatpush1.bf16.msra.mxu0 0
        %2006 = vmatprep.subr.bf16.mxu0 0
        %2007 = vmatpush1.bf16.msra.mxu0 0
        %2008 = vmatprep.subr.bf16.mxu0 0
        %2009 = vmatpush1.bf16.msra.mxu0 0
        %2010 = vmatprep.subr.bf16.mxu0 0
        %2011 = vmatpush1.bf16.msra.mxu0 0
        %2012 = vmatprep.subr.bf16.mxu0 0
        %2013 = vmatpush1.bf16.msra.mxu0 %v1996
        %2014 = vmatprep.subr.bf16.mxu0 0
        %2015 = vmatpush2.bf16.msra.mxu0 0
        %2016 = vmatprep.subr.bf16.mxu0 0
        %2017 = vmatpush2.bf16.msra.mxu0 0
        %2018 = vmatprep.subr.bf16.mxu0 0
        %2019 = vmatpush2.bf16.msra.mxu0 0
        %2020 = vmatprep.subr.bf16.mxu0 0
        %2021 = vmatpush2.bf16.msra.mxu0 0
        %2022 = vmatprep.subr.bf16.mxu0 0
        %2023 = vmatpush2.bf16.msra.mxu0 0
        %2024 = vmatprep.subr.bf16.mxu0 0
        %2025 = vmatpush2.bf16.msra.mxu0 0
        %2026 = vmatprep.subr.bf16.mxu0 0
        %2027 = vmatpush2.bf16.msra.mxu0 0
        %2028 = vmatprep.subr.bf16.mxu0 0
        %2029 = vmatpush2.bf16.msra.mxu0 0
        %2030 = vmatprep.mubr.bf16.mxu0 0
        %2031 = vmatmul.mubr.bf16.gmra.mxu0 %v1993
        %v2032 = vpop.f32.mrf.mxu0
        %v2033 = vadd.f32 0.0, %v2032
        %v2034 = vpop.f32.mrf.mxu0
        %v2035 = vpop.f32.mrf.mxu0
        %v2036 = vpop.f32.mrf.mxu0
        %2037 = vdwg.mxu0
        %v2039 = vsel %vm1474, %v1899, 0
        %v2042 = vsel %vm1714, %v832, 0
        %2044 = vmatprep.subr.bf16.mxu0 0
        %2045 = vmatpush1.bf16.msra.mxu0 0
        %2046 = vmatprep.subr.bf16.mxu0 0
        %2047 = vmatpush1.bf16.msra.mxu0 0
        %2048 = vmatprep.subr.bf16.mxu0 0
        %2049 = vmatpush1.bf16.msra.mxu0 0
        %2050 = vmatprep.subr.bf16.mxu0 0
        %2051 = vmatpush1.bf16.msra.mxu0 0
        %2052 = vmatprep.subr.bf16.mxu0 0
        %2053 = vmatpush1.bf16.msra.mxu0 0
        %2054 = vmatprep.subr.bf16.mxu0 0
        %2055 = vmatpush1.bf16.msra.mxu0 0
        %2056 = vmatprep.subr.bf16.mxu0 0
        %2057 = vmatpush1.bf16.msra.mxu0 0
        %2058 = vmatprep.subr.bf16.mxu0 0
        %2059 = vmatpush1.bf16.msra.mxu0 %v2042
        %2060 = vmatprep.subr.bf16.mxu0 0
        %2061 = vmatpush2.bf16.msra.mxu0 0
        %2062 = vmatprep.subr.bf16.mxu0 0
        %2063 = vmatpush2.bf16.msra.mxu0 0
        %2064 = vmatprep.subr.bf16.mxu0 0
        %2065 = vmatpush2.bf16.msra.mxu0 0
        %2066 = vmatprep.subr.bf16.mxu0 0
        %2067 = vmatpush2.bf16.msra.mxu0 0
        %2068 = vmatprep.subr.bf16.mxu0 0
        %2069 = vmatpush2.bf16.msra.mxu0 0
        %2070 = vmatprep.subr.bf16.mxu0 0
        %2071 = vmatpush2.bf16.msra.mxu0 0
        %2072 = vmatprep.subr.bf16.mxu0 0
        %2073 = vmatpush2.bf16.msra.mxu0 0
        %2074 = vmatprep.subr.bf16.mxu0 0
        %2075 = vmatpush2.bf16.msra.mxu0 0
        %2076 = vmatprep.mubr.bf16.mxu0 0
        %2077 = vmatmul.mubr.bf16.gmra.mxu0 %v2039
        %v2078 = vpop.f32.mrf.mxu0
        %v2079 = vadd.f32 0.0, %v2078
        %v2080 = vpop.f32.mrf.mxu0
        %v2081 = vpop.f32.mrf.mxu0
        %v2082 = vpop.f32.mrf.mxu0
        %2083 = vdwg.mxu0
        %v2084 = vsel %vm846, %v1941, 0.0
        %v2085 = vsel %vm846, %v1987, 0.0
        %v2086 = vadd.f32 %v2084, %v2085
        %v2087 = vsel %vm846, %v2033, 0.0
        %v2088 = vadd.f32 %v2086, %v2087
        %v2089 = vsel %vm846, %v2079, 0.0
        %v2090 = vadd.f32 %v2088, %v2089
        %v2091 = vadd.f32 %v2090, %v780
        %v2092 = vsel %vm846, %v2091, 0.0
        %2093 = vadd.xlane.f32.xlu0 %v2092
        %v2094 = vpop.xlane.xlu0 %2093
        %v2095 = vrcp.pop 32.0
        %v2096 = vmul.f32 %v2094, %v2095
        %v2097 = vsub.f32 %v2091, %v2096
        %v2098 = vmul.f32 %v2097, %v2097
        %v2099 = vsel %vm846, %v2098, 0.0
        %2100 = vadd.xlane.f32.xlu0 %v2099
        %v2101 = vpop.xlane.xlu0 %2100
        %v2102 = vmul.f32 %v2101, %v2095
        %v2103 = vadd.f32 %v2102, 1e-05
        %v2104 = vrsqrt.pop %v2103
        %v2105 = vmul.f32 %v2097, %v2104
        %v2107 = vlaneseq
        %v2108 = vshrl.u32 %v2107, 7
        %v2109 = vsub.s32 0, %v2108
        %v2110 = vrot.slane %v778, %v2109
        %v2112 = vmul.f32 %v2105, %v2110
        %v2114 = vlaneseq
        %v2115 = vshrl.u32 %v2114, 7
        %v2116 = vsub.s32 0, %v2115
        %v2117 = vrot.slane %v779, %v2116
        %v2119 = vadd.f32 %v2112, %v2117
        %v2120 = vld [vmem:[%s14] sm:$0xf]
        %v2121 = vld [vmem:[%s14 + $0x4] sm:$0xf]
        %v2122 = vld [vmem:[%s14 + $0x8] sm:$0xf]
        %v2123 = vld [vmem:[%s14 + $0xc] sm:$0xf]
        %v2124 = vld [vmem:[%s15] sm:$0x1]
        %v2125 = vld [vmem:[%s16] sm:$0xf]
        %v2126 = vld [vmem:[%s16 + $0x4] sm:$0xf]
        %v2127 = vld [vmem:[%s16 + $0x8] sm:$0xf]
        %v2128 = vld [vmem:[%s16 + $0xc] sm:$0xf]
        %v2129 = vld [vmem:[%s16 + $0x10] sm:$0xf]
        %v2130 = vld [vmem:[%s16 + $0x14] sm:$0xf]
        %v2131 = vld [vmem:[%s16 + $0x18] sm:$0xf]
        %v2132 = vld [vmem:[%s16 + $0x1c] sm:$0xf]
        %v2133 = vld [vmem:[%s17] sm:$0x1]
        %v2134 = vpack.c.bf16 %v2119, %v2119
        %v2136 = vlaneseq
        %v2137 = vshrl.u32 %v2136, 7
        %v2138 = vsub.s32 0, %v2137
        %v2139 = vrot.slane %v2124, %v2138
        %v2145 = vunpack.c.l.b16 %v2120
        %v2146 = vunpack.c.l.b16 %v2121
        %v2147 = vunpack.c.l.b16 %v2122
        %v2148 = vunpack.c.l.b16 %v2123
        %v2149 = vpack.c.b16 %v2146, %v2145
        %v2150 = vpack.c.b16 %v2148, %v2147
        %v2154 = vsel %vm846, %v2134, 0
        %2156 = vmatprep.subr.bf16.mxu0 0
        %2157 = vmatpush1.bf16.msra.mxu0 0
        %2158 = vmatprep.subr.bf16.mxu0 0
        %2159 = vmatpush1.bf16.msra.mxu0 0
        %2160 = vmatprep.subr.bf16.mxu0 0
        %2161 = vmatpush1.bf16.msra.mxu0 0
        %2162 = vmatprep.subr.bf16.mxu0 0
        %2163 = vmatpush1.bf16.msra.mxu0 0
        %2164 = vmatprep.subr.bf16.mxu0 0
        %2165 = vmatpush1.bf16.msra.mxu0 0
        %2166 = vmatprep.subr.bf16.mxu0 0
        %2167 = vmatpush1.bf16.msra.mxu0 0
        %2168 = vmatprep.subr.bf16.mxu0 0
        %2169 = vmatpush1.bf16.msra.mxu0 %v2150
        %2170 = vmatprep.subr.bf16.mxu0 0
        %2171 = vmatpush1.bf16.msra.mxu0 %v2149
        %2172 = vmatprep.subr.bf16.mxu0 0
        %2173 = vmatpush2.bf16.msra.mxu0 0
        %2174 = vmatprep.subr.bf16.mxu0 0
        %2175 = vmatpush2.bf16.msra.mxu0 0
        %2176 = vmatprep.subr.bf16.mxu0 0
        %2177 = vmatpush2.bf16.msra.mxu0 0
        %2178 = vmatprep.subr.bf16.mxu0 0
        %2179 = vmatpush2.bf16.msra.mxu0 0
        %2180 = vmatprep.subr.bf16.mxu0 0
        %2181 = vmatpush2.bf16.msra.mxu0 0
        %2182 = vmatprep.subr.bf16.mxu0 0
        %2183 = vmatpush2.bf16.msra.mxu0 0
        %2184 = vmatprep.subr.bf16.mxu0 0
        %2185 = vmatpush2.bf16.msra.mxu0 0
        %2186 = vmatprep.subr.bf16.mxu0 0
        %2187 = vmatpush2.bf16.msra.mxu0 0
        %2188 = vmatprep.mubr.bf16.mxu0 0
        %2189 = vmatmul.mubr.bf16.gmra.mxu0 %v2154
        %v2190 = vpop.f32.mrf.mxu0
        %v2191 = vadd.f32 %v2139, %v2190
        %v2192 = vpop.f32.mrf.mxu0
        %v2193 = vpop.f32.mrf.mxu0
        %v2194 = vpop.f32.mrf.mxu0
        %2195 = vdwg.mxu0
        %v2196 = vmax.f32 %v2191, 0.0
        %v2197 = vpack.c.bf16 %v2196, %v2196
        %v2199 = vlaneseq
        %v2200 = vshrl.u32 %v2199, 7
        %v2201 = vsub.s32 0, %v2200
        %v2202 = vrot.slane %v2133, %v2201
        %v2212 = vunpack.c.l.b16 %v2125
        %v2213 = vunpack.c.l.b16 %v2126
        %v2214 = vunpack.c.l.b16 %v2127
        %v2215 = vunpack.c.l.b16 %v2128
        %v2216 = vunpack.c.l.b16 %v2129
        %v2217 = vunpack.c.l.b16 %v2130
        %v2218 = vunpack.c.l.b16 %v2131
        %v2219 = vunpack.c.l.b16 %v2132
        %v2220 = vpack.c.b16 %v2213, %v2212
        %v2221 = vpack.c.b16 %v2215, %v2214
        %v2222 = vpack.c.b16 %v2217, %v2216
        %v2223 = vpack.c.b16 %v2219, %v2218
        %vm2228 = vcmask 523264
        %v2230 = vsel %vm2228, %v2197, 0
        %2232 = vmatprep.subr.bf16.mxu0 0
        %2233 = vmatpush1.bf16.msra.mxu0 0
        %2234 = vmatprep.subr.bf16.mxu0 0
        %2235 = vmatpush1.bf16.msra.mxu0 0
        %2236 = vmatprep.subr.bf16.mxu0 0
        %2237 = vmatpush1.bf16.msra.mxu0 0
        %2238 = vmatprep.subr.bf16.mxu0 0
        %2239 = vmatpush1.bf16.msra.mxu0 0
        %2240 = vmatprep.subr.bf16.mxu0 0
        %2241 = vmatpush1.bf16.msra.mxu0 %v2223
        %2242 = vmatprep.subr.bf16.mxu0 0
        %2243 = vmatpush1.bf16.msra.mxu0 %v2222
        %2244 = vmatprep.subr.bf16.mxu0 0
        %2245 = vmatpush1.bf16.msra.mxu0 %v2221
        %2246 = vmatprep.subr.bf16.mxu0 0
        %2247 = vmatpush1.bf16.msra.mxu0 %v2220
        %2248 = vmatprep.subr.bf16.mxu0 0
        %2249 = vmatpush2.bf16.msra.mxu0 0
        %2250 = vmatprep.subr.bf16.mxu0 0
        %2251 = vmatpush2.bf16.msra.mxu0 0
        %2252 = vmatprep.subr.bf16.mxu0 0
        %2253 = vmatpush2.bf16.msra.mxu0 0
        %2254 = vmatprep.subr.bf16.mxu0 0
        %2255 = vmatpush2.bf16.msra.mxu0 0
        %2256 = vmatprep.subr.bf16.mxu0 0
        %2257 = vmatpush2.bf16.msra.mxu0 0
        %2258 = vmatprep.subr.bf16.mxu0 0
        %2259 = vmatpush2.bf16.msra.mxu0 0
        %2260 = vmatprep.subr.bf16.mxu0 0
        %2261 = vmatpush2.bf16.msra.mxu0 0
        %2262 = vmatprep.subr.bf16.mxu0 0
        %2263 = vmatpush2.bf16.msra.mxu0 0
        %2264 = vmatprep.mubr.bf16.mxu0 0
        %2265 = vmatmul.mubr.bf16.gmra.mxu0 %v2230
        %v2266 = vpop.f32.mrf.mxu0
        %v2267 = vadd.f32 %v2202, %v2266
        %v2268 = vpop.f32.mrf.mxu0
        %v2269 = vpop.f32.mrf.mxu0
        %v2270 = vpop.f32.mrf.mxu0
        %2271 = vdwg.mxu0
        %v2272 = vadd.f32 %v2267, %v2119
        %v2273 = vsel %vm846, %v2272, 0.0
        %2274 = vadd.xlane.f32.xlu0 %v2273
        %v2275 = vpop.xlane.xlu0 %2274
        %v2276 = vmul.f32 %v2275, %v2095
        %v2277 = vsub.f32 %v2272, %v2276
        %v2278 = vmul.f32 %v2277, %v2277
        %v2279 = vsel %vm846, %v2278, 0.0
        %2280 = vadd.xlane.f32.xlu0 %v2279
        %v2281 = vpop.xlane.xlu0 %2280
        %v2282 = vmul.f32 %v2281, %v2095
        %v2283 = vadd.f32 %v2282, 1e-05
        %v2284 = vrsqrt.pop %v2283
        %v2285 = vmul.f32 %v2277, %v2284
        %v2286 = vmul.f32 %v2285, %v2110
        %v2287 = vadd.f32 %v2286, %v2117
        %v2288 = vld [vmem:[%s776] sm:$0xff]
        %v2289 = vld [vmem:[%s6] sm:$0xf]
        %v2290 = vld [vmem:[%s6 + $0x4] sm:$0xf]
        %v2291 = vld [vmem:[%s6 + $0x8] sm:$0xf]
        %v2292 = vld [vmem:[%s6 + $0xc] sm:$0xf]
        %v2293 = vld [vmem:[%s6 + $0x10] sm:$0xf]
        %v2294 = vld [vmem:[%s6 + $0x14] sm:$0xf]
        %v2295 = vld [vmem:[%s6 + $0x18] sm:$0xf]
        %v2296 = vld [vmem:[%s6 + $0x1c] sm:$0xf]
        %v2297 = vld [vmem:[%s6 + $0x20] sm:$0xf]
        %v2298 = vld [vmem:[%s6 + $0x24] sm:$0xf]
        %v2299 = vld [vmem:[%s6 + $0x28] sm:$0xf]
        %v2300 = vld [vmem:[%s6 + $0x2c] sm:$0xf]
        %v2301 = vld [vmem:[%s6 + $0x30] sm:$0xf]
        %v2302 = vld [vmem:[%s6 + $0x34] sm:$0xf]
        %v2303 = vld [vmem:[%s6 + $0x38] sm:$0xf]
        %v2304 = vld [vmem:[%s6 + $0x3c] sm:$0xf]
        %v2305 = vld [vmem:[%s7] sm:$0xf]
        %v2306 = vld [vmem:[%s7 + $0x4] sm:$0xf]
        %v2307 = vld [vmem:[%s7 + $0x8] sm:$0xf]
        %v2308 = vld [vmem:[%s7 + $0xc] sm:$0xf]
        %v2309 = vld [vmem:[%s7 + $0x10] sm:$0xf]
        %v2310 = vld [vmem:[%s7 + $0x14] sm:$0xf]
        %v2311 = vld [vmem:[%s7 + $0x18] sm:$0xf]
        %v2312 = vld [vmem:[%s7 + $0x1c] sm:$0xf]
        %v2313 = vld [vmem:[%s7 + $0x20] sm:$0xf]
        %v2314 = vld [vmem:[%s7 + $0x24] sm:$0xf]
        %v2315 = vld [vmem:[%s7 + $0x28] sm:$0xf]
        %v2316 = vld [vmem:[%s7 + $0x2c] sm:$0xf]
        %v2317 = vld [vmem:[%s7 + $0x30] sm:$0xf]
        %v2318 = vld [vmem:[%s7 + $0x34] sm:$0xf]
        %v2319 = vld [vmem:[%s7 + $0x38] sm:$0xf]
        %v2320 = vld [vmem:[%s7 + $0x3c] sm:$0xf]
        %v2321 = vld [vmem:[%s8] sm:$0xf]
        %v2322 = vld [vmem:[%s8 + $0x4] sm:$0xf]
        %v2323 = vld [vmem:[%s8 + $0x8] sm:$0xf]
        %v2324 = vld [vmem:[%s8 + $0xc] sm:$0xf]
        %v2325 = vld [vmem:[%s8 + $0x10] sm:$0xf]
        %v2326 = vld [vmem:[%s8 + $0x14] sm:$0xf]
        %v2327 = vld [vmem:[%s8 + $0x18] sm:$0xf]
        %v2328 = vld [vmem:[%s8 + $0x1c] sm:$0xf]
        %v2329 = vld [vmem:[%s8 + $0x20] sm:$0xf]
        %v2330 = vld [vmem:[%s8 + $0x24] sm:$0xf]
        %v2331 = vld [vmem:[%s8 + $0x28] sm:$0xf]
        %v2332 = vld [vmem:[%s8 + $0x2c] sm:$0xf]
        %v2333 = vld [vmem:[%s8 + $0x30] sm:$0xf]
        %v2334 = vld [vmem:[%s8 + $0x34] sm:$0xf]
        %v2335 = vld [vmem:[%s8 + $0x38] sm:$0xf]
        %v2336 = vld [vmem:[%s8 + $0x3c] sm:$0xf]
        %v2337 = vld [vmem:[%s9] sm:$0xf]
        %v2338 = vld [vmem:[%s9 + $0x4] sm:$0xf]
        %v2339 = vld [vmem:[%s9 + $0x8] sm:$0xf]
        %v2340 = vld [vmem:[%s9 + $0xc] sm:$0xf]
        %v2341 = vpack.c.bf16 %v2288, %v2288
        %v2346 = vunpack.c.l.b16 %v2289
        %v2347 = vunpack.c.l.b16 %v2290
        %v2348 = vunpack.c.l.b16 %v2291
        %v2349 = vunpack.c.l.b16 %v2292
        %v2350 = vpack.c.b16 %v2347, %v2346
        %v2351 = vpack.c.b16 %v2349, %v2348
        %v2355 = vsel %vm846, %v2341, 0
        %2357 = vmatprep.subr.bf16.mxu0 0
        %2358 = vmatpush1.bf16.msra.mxu0 0
        %2359 = vmatprep.subr.bf16.mxu0 0
        %2360 = vmatpush1.bf16.msra.mxu0 0
        %2361 = vmatprep.subr.bf16.mxu0 0
        %2362 = vmatpush1.bf16.msra.mxu0 0
        %2363 = vmatprep.subr.bf16.mxu0 0
        %2364 = vmatpush1.bf16.msra.mxu0 0
        %2365 = vmatprep.subr.bf16.mxu0 0
        %2366 = vmatpush1.bf16.msra.mxu0 0
        %2367 = vmatprep.subr.bf16.mxu0 0
        %2368 = vmatpush1.bf16.msra.mxu0 0
        %2369 = vmatprep.subr.bf16.mxu0 0
        %2370 = vmatpush1.bf16.msra.mxu0 %v2351
        %2371 = vmatprep.subr.bf16.mxu0 0
        %2372 = vmatpush1.bf16.msra.mxu0 %v2350
        %2373 = vmatprep.subr.bf16.mxu0 0
        %2374 = vmatpush2.bf16.msra.mxu0 0
        %2375 = vmatprep.subr.bf16.mxu0 0
        %2376 = vmatpush2.bf16.msra.mxu0 0
        %2377 = vmatprep.subr.bf16.mxu0 0
        %2378 = vmatpush2.bf16.msra.mxu0 0
        %2379 = vmatprep.subr.bf16.mxu0 0
        %2380 = vmatpush2.bf16.msra.mxu0 0
        %2381 = vmatprep.subr.bf16.mxu0 0
        %2382 = vmatpush2.bf16.msra.mxu0 0
        %2383 = vmatprep.subr.bf16.mxu0 0
        %2384 = vmatpush2.bf16.msra.mxu0 0
        %2385 = vmatprep.subr.bf16.mxu0 0
        %2386 = vmatpush2.bf16.msra.mxu0 0
        %2387 = vmatprep.subr.bf16.mxu0 0
        %2388 = vmatpush2.bf16.msra.mxu0 0
        %2389 = vmatprep.mubr.bf16.mxu0 0
        %2390 = vmatmul.mubr.bf16.gmra.mxu0 %v2355
        %v2391 = vpop.f32.mrf.mxu0
        %v2392 = vadd.f32 0.0, %v2391
        %v2393 = vpop.f32.mrf.mxu0
        %v2394 = vpop.f32.mrf.mxu0
        %v2395 = vpop.f32.mrf.mxu0
        %2396 = vdwg.mxu0
        %v2401 = vunpack.c.l.b16 %v2293
        %v2402 = vunpack.c.l.b16 %v2294
        %v2403 = vunpack.c.l.b16 %v2295
        %v2404 = vunpack.c.l.b16 %v2296
        %v2405 = vpack.c.b16 %v2402, %v2401
        %v2406 = vpack.c.b16 %v2404, %v2403
        %2409 = vmatprep.subr.bf16.mxu0 0
        %2410 = vmatpush1.bf16.msra.mxu0 0
        %2411 = vmatprep.subr.bf16.mxu0 0
        %2412 = vmatpush1.bf16.msra.mxu0 0
        %2413 = vmatprep.subr.bf16.mxu0 0
        %2414 = vmatpush1.bf16.msra.mxu0 0
        %2415 = vmatprep.subr.bf16.mxu0 0
        %2416 = vmatpush1.bf16.msra.mxu0 0
        %2417 = vmatprep.subr.bf16.mxu0 0
        %2418 = vmatpush1.bf16.msra.mxu0 0
        %2419 = vmatprep.subr.bf16.mxu0 0
        %2420 = vmatpush1.bf16.msra.mxu0 0
        %2421 = vmatprep.subr.bf16.mxu0 0
        %2422 = vmatpush1.bf16.msra.mxu0 %v2406
        %2423 = vmatprep.subr.bf16.mxu0 0
        %2424 = vmatpush1.bf16.msra.mxu0 %v2405
        %2425 = vmatprep.subr.bf16.mxu0 0
        %2426 = vmatpush2.bf16.msra.mxu0 0
        %2427 = vmatprep.subr.bf16.mxu0 0
        %2428 = vmatpush2.bf16.msra.mxu0 0
        %2429 = vmatprep.subr.bf16.mxu0 0
        %2430 = vmatpush2.bf16.msra.mxu0 0
        %2431 = vmatprep.subr.bf16.mxu0 0
        %2432 = vmatpush2.bf16.msra.mxu0 0
        %2433 = vmatprep.subr.bf16.mxu0 0
        %2434 = vmatpush2.bf16.msra.mxu0 0
        %2435 = vmatprep.subr.bf16.mxu0 0
        %2436 = vmatpush2.bf16.msra.mxu0 0
        %2437 = vmatprep.subr.bf16.mxu0 0
        %2438 = vmatpush2.bf16.msra.mxu0 0
        %2439 = vmatprep.subr.bf16.mxu0 0
        %2440 = vmatpush2.bf16.msra.mxu0 0
        %2441 = vmatprep.mubr.bf16.mxu0 0
        %2442 = vmatmul.mubr.bf16.gmra.mxu0 %v2355
        %v2443 = vpop.f32.mrf.mxu0
        %v2444 = vadd.f32 0.0, %v2443
        %v2445 = vpop.f32.mrf.mxu0
        %v2446 = vpop.f32.mrf.mxu0
        %v2447 = vpop.f32.mrf.mxu0
        %2448 = vdwg.mxu0
        %v2453 = vunpack.c.l.b16 %v2297
        %v2454 = vunpack.c.l.b16 %v2298
        %v2455 = vunpack.c.l.b16 %v2299
        %v2456 = vunpack.c.l.b16 %v2300
        %v2457 = vpack.c.b16 %v2454, %v2453
        %v2458 = vpack.c.b16 %v2456, %v2455
        %2461 = vmatprep.subr.bf16.mxu0 0
        %2462 = vmatpush1.bf16.msra.mxu0 0
        %2463 = vmatprep.subr.bf16.mxu0 0
        %2464 = vmatpush1.bf16.msra.mxu0 0
        %2465 = vmatprep.subr.bf16.mxu0 0
        %2466 = vmatpush1.bf16.msra.mxu0 0
        %2467 = vmatprep.subr.bf16.mxu0 0
        %2468 = vmatpush1.bf16.msra.mxu0 0
        %2469 = vmatprep.subr.bf16.mxu0 0
        %2470 = vmatpush1.bf16.msra.mxu0 0
        %2471 = vmatprep.subr.bf16.mxu0 0
        %2472 = vmatpush1.bf16.msra.mxu0 0
        %2473 = vmatprep.subr.bf16.mxu0 0
        %2474 = vmatpush1.bf16.msra.mxu0 %v2458
        %2475 = vmatprep.subr.bf16.mxu0 0
        %2476 = vmatpush1.bf16.msra.mxu0 %v2457
        %2477 = vmatprep.subr.bf16.mxu0 0
        %2478 = vmatpush2.bf16.msra.mxu0 0
        %2479 = vmatprep.subr.bf16.mxu0 0
        %2480 = vmatpush2.bf16.msra.mxu0 0
        %2481 = vmatprep.subr.bf16.mxu0 0
        %2482 = vmatpush2.bf16.msra.mxu0 0
        %2483 = vmatprep.subr.bf16.mxu0 0
        %2484 = vmatpush2.bf16.msra.mxu0 0
        %2485 = vmatprep.subr.bf16.mxu0 0
        %2486 = vmatpush2.bf16.msra.mxu0 0
        %2487 = vmatprep.subr.bf16.mxu0 0
        %2488 = vmatpush2.bf16.msra.mxu0 0
        %2489 = vmatprep.subr.bf16.mxu0 0
        %2490 = vmatpush2.bf16.msra.mxu0 0
        %2491 = vmatprep.subr.bf16.mxu0 0
        %2492 = vmatpush2.bf16.msra.mxu0 0
        %2493 = vmatprep.mubr.bf16.mxu0 0
        %2494 = vmatmul.mubr.bf16.gmra.mxu0 %v2355
        %v2495 = vpop.f32.mrf.mxu0
        %v2496 = vadd.f32 0.0, %v2495
        %v2497 = vpop.f32.mrf.mxu0
        %v2498 = vpop.f32.mrf.mxu0
        %v2499 = vpop.f32.mrf.mxu0
        %2500 = vdwg.mxu0
        %v2505 = vunpack.c.l.b16 %v2301
        %v2506 = vunpack.c.l.b16 %v2302
        %v2507 = vunpack.c.l.b16 %v2303
        %v2508 = vunpack.c.l.b16 %v2304
        %v2509 = vpack.c.b16 %v2506, %v2505
        %v2510 = vpack.c.b16 %v2508, %v2507
        %2513 = vmatprep.subr.bf16.mxu0 0
        %2514 = vmatpush1.bf16.msra.mxu0 0
        %2515 = vmatprep.subr.bf16.mxu0 0
        %2516 = vmatpush1.bf16.msra.mxu0 0
        %2517 = vmatprep.subr.bf16.mxu0 0
        %2518 = vmatpush1.bf16.msra.mxu0 0
        %2519 = vmatprep.subr.bf16.mxu0 0
        %2520 = vmatpush1.bf16.msra.mxu0 0
        %2521 = vmatprep.subr.bf16.mxu0 0
        %2522 = vmatpush1.bf16.msra.mxu0 0
        %2523 = vmatprep.subr.bf16.mxu0 0
        %2524 = vmatpush1.bf16.msra.mxu0 0
        %2525 = vmatprep.subr.bf16.mxu0 0
        %2526 = vmatpush1.bf16.msra.mxu0 %v2510
        %2527 = vmatprep.subr.bf16.mxu0 0
        %2528 = vmatpush1.bf16.msra.mxu0 %v2509
        %2529 = vmatprep.subr.bf16.mxu0 0
        %2530 = vmatpush2.bf16.msra.mxu0 0
        %2531 = vmatprep.subr.bf16.mxu0 0
        %2532 = vmatpush2.bf16.msra.mxu0 0
        %2533 = vmatprep.subr.bf16.mxu0 0
        %2534 = vmatpush2.bf16.msra.mxu0 0
        %2535 = vmatprep.subr.bf16.mxu0 0
        %2536 = vmatpush2.bf16.msra.mxu0 0
        %2537 = vmatprep.subr.bf16.mxu0 0
        %2538 = vmatpush2.bf16.msra.mxu0 0
        %2539 = vmatprep.subr.bf16.mxu0 0
        %2540 = vmatpush2.bf16.msra.mxu0 0
        %2541 = vmatprep.subr.bf16.mxu0 0
        %2542 = vmatpush2.bf16.msra.mxu0 0
        %2543 = vmatprep.subr.bf16.mxu0 0
        %2544 = vmatpush2.bf16.msra.mxu0 0
        %2545 = vmatprep.mubr.bf16.mxu0 0
        %2546 = vmatmul.mubr.bf16.gmra.mxu0 %v2355
        %v2547 = vpop.f32.mrf.mxu0
        %v2548 = vadd.f32 0.0, %v2547
        %v2549 = vpop.f32.mrf.mxu0
        %v2550 = vpop.f32.mrf.mxu0
        %v2551 = vpop.f32.mrf.mxu0
        %2552 = vdwg.mxu0
        %v2557 = vunpack.c.l.b16 %v2305
        %v2558 = vunpack.c.l.b16 %v2306
        %v2559 = vunpack.c.l.b16 %v2307
        %v2560 = vunpack.c.l.b16 %v2308
        %v2561 = vpack.c.b16 %v2558, %v2557
        %v2562 = vpack.c.b16 %v2560, %v2559
        %2565 = vmatprep.subr.bf16.mxu0 0
        %2566 = vmatpush1.bf16.msra.mxu0 0
        %2567 = vmatprep.subr.bf16.mxu0 0
        %2568 = vmatpush1.bf16.msra.mxu0 0
        %2569 = vmatprep.subr.bf16.mxu0 0
        %2570 = vmatpush1.bf16.msra.mxu0 0
        %2571 = vmatprep.subr.bf16.mxu0 0
        %2572 = vmatpush1.bf16.msra.mxu0 0
        %2573 = vmatprep.subr.bf16.mxu0 0
        %2574 = vmatpush1.bf16.msra.mxu0 0
        %2575 = vmatprep.subr.bf16.mxu0 0
        %2576 = vmatpush1.bf16.msra.mxu0 0
        %2577 = vmatprep.subr.bf16.mxu0 0
        %2578 = vmatpush1.bf16.msra.mxu0 %v2562
        %2579 = vmatprep.subr.bf16.mxu0 0
        %2580 = vmatpush1.bf16.msra.mxu0 %v2561
        %2581 = vmatprep.subr.bf16.mxu0 0
        %2582 = vmatpush2.bf16.msra.mxu0 0
        %2583 = vmatprep.subr.bf16.mxu0 0
        %2584 = vmatpush2.bf16.msra.mxu0 0
        %2585 = vmatprep.subr.bf16.mxu0 0
        %2586 = vmatpush2.bf16.msra.mxu0 0
        %2587 = vmatprep.subr.bf16.mxu0 0
        %2588 = vmatpush2.bf16.msra.mxu0 0
        %2589 = vmatprep.subr.bf16.mxu0 0
        %2590 = vmatpush2.bf16.msra.mxu0 0
        %2591 = vmatprep.subr.bf16.mxu0 0
        %2592 = vmatpush2.bf16.msra.mxu0 0
        %2593 = vmatprep.subr.bf16.mxu0 0
        %2594 = vmatpush2.bf16.msra.mxu0 0
        %2595 = vmatprep.subr.bf16.mxu0 0
        %2596 = vmatpush2.bf16.msra.mxu0 0
        %2597 = vmatprep.mubr.bf16.mxu0 0
        %2598 = vmatmul.mubr.bf16.gmra.mxu0 %v2355
        %v2599 = vpop.f32.mrf.mxu0
        %v2600 = vadd.f32 0.0, %v2599
        %v2601 = vpop.f32.mrf.mxu0
        %v2602 = vpop.f32.mrf.mxu0
        %v2603 = vpop.f32.mrf.mxu0
        %2604 = vdwg.mxu0
        %v2609 = vunpack.c.l.b16 %v2309
        %v2610 = vunpack.c.l.b16 %v2310
        %v2611 = vunpack.c.l.b16 %v2311
        %v2612 = vunpack.c.l.b16 %v2312
        %v2613 = vpack.c.b16 %v2610, %v2609
        %v2614 = vpack.c.b16 %v2612, %v2611
        %2617 = vmatprep.subr.bf16.mxu0 0
        %2618 = vmatpush1.bf16.msra.mxu0 0
        %2619 = vmatprep.subr.bf16.mxu0 0
        %2620 = vmatpush1.bf16.msra.mxu0 0
        %2621 = vmatprep.subr.bf16.mxu0 0
        %2622 = vmatpush1.bf16.msra.mxu0 0
        %2623 = vmatprep.subr.bf16.mxu0 0
        %2624 = vmatpush1.bf16.msra.mxu0 0
        %2625 = vmatprep.subr.bf16.mxu0 0
        %2626 = vmatpush1.bf16.msra.mxu0 0
        %2627 = vmatprep.subr.bf16.mxu0 0
        %2628 = vmatpush1.bf16.msra.mxu0 0
        %2629 = vmatprep.subr.bf16.mxu0 0
        %2630 = vmatpush1.bf16.msra.mxu0 %v2614
        %2631 = vmatprep.subr.bf16.mxu0 0
        %2632 = vmatpush1.bf16.msra.mxu0 %v2613
        %2633 = vmatprep.subr.bf16.mxu0 0
        %2634 = vmatpush2.bf16.msra.mxu0 0
        %2635 = vmatprep.subr.bf16.mxu0 0
        %2636 = vmatpush2.bf16.msra.mxu0 0
        %2637 = vmatprep.subr.bf16.mxu0 0
        %2638 = vmatpush2.bf16.msra.mxu0 0
        %2639 = vmatprep.subr.bf16.mxu0 0
        %2640 = vmatpush2.bf16.msra.mxu0 0
        %2641 = vmatprep.subr.bf16.mxu0 0
        %2642 = vmatpush2.bf16.msra.mxu0 0
        %2643 = vmatprep.subr.bf16.mxu0 0
        %2644 = vmatpush2.bf16.msra.mxu0 0
        %2645 = vmatprep.subr.bf16.mxu0 0
        %2646 = vmatpush2.bf16.msra.mxu0 0
        %2647 = vmatprep.subr.bf16.mxu0 0
        %2648 = vmatpush2.bf16.msra.mxu0 0
        %2649 = vmatprep.mubr.bf16.mxu0 0
        %2650 = vmatmul.mubr.bf16.gmra.mxu0 %v2355
        %v2651 = vpop.f32.mrf.mxu0
        %v2652 = vadd.f32 0.0, %v2651
        %v2653 = vpop.f32.mrf.mxu0
        %v2654 = vpop.f32.mrf.mxu0
        %v2655 = vpop.f32.mrf.mxu0
        %2656 = vdwg.mxu0
        %v2661 = vunpack.c.l.b16 %v2313
        %v2662 = vunpack.c.l.b16 %v2314
        %v2663 = vunpack.c.l.b16 %v2315
        %v2664 = vunpack.c.l.b16 %v2316
        %v2665 = vpack.c.b16 %v2662, %v2661
        %v2666 = vpack.c.b16 %v2664, %v2663
        %2669 = vmatprep.subr.bf16.mxu0 0
        %2670 = vmatpush1.bf16.msra.mxu0 0
        %2671 = vmatprep.subr.bf16.mxu0 0
        %2672 = vmatpush1.bf16.msra.mxu0 0
        %2673 = vmatprep.subr.bf16.mxu0 0
        %2674 = vmatpush1.bf16.msra.mxu0 0
        %2675 = vmatprep.subr.bf16.mxu0 0
        %2676 = vmatpush1.bf16.msra.mxu0 0
        %2677 = vmatprep.subr.bf16.mxu0 0
        %2678 = vmatpush1.bf16.msra.mxu0 0
        %2679 = vmatprep.subr.bf16.mxu0 0
        %2680 = vmatpush1.bf16.msra.mxu0 0
        %2681 = vmatprep.subr.bf16.mxu0 0
        %2682 = vmatpush1.bf16.msra.mxu0 %v2666
        %2683 = vmatprep.subr.bf16.mxu0 0
        %2684 = vmatpush1.bf16.msra.mxu0 %v2665
        %2685 = vmatprep.subr.bf16.mxu0 0
        %2686 = vmatpush2.bf16.msra.mxu0 0
        %2687 = vmatprep.subr.bf16.mxu0 0
        %2688 = vmatpush2.bf16.msra.mxu0 0
        %2689 = vmatprep.subr.bf16.mxu0 0
        %2690 = vmatpush2.bf16.msra.mxu0 0
        %2691 = vmatprep.subr.bf16.mxu0 0
        %2692 = vmatpush2.bf16.msra.mxu0 0
        %2693 = vmatprep.subr.bf16.mxu0 0
        %2694 = vmatpush2.bf16.msra.mxu0 0
        %2695 = vmatprep.subr.bf16.mxu0 0
        %2696 = vmatpush2.bf16.msra.mxu0 0
        %2697 = vmatprep.subr.bf16.mxu0 0
        %2698 = vmatpush2.bf16.msra.mxu0 0
        %2699 = vmatprep.subr.bf16.mxu0 0
        %2700 = vmatpush2.bf16.msra.mxu0 0
        %2701 = vmatprep.mubr.bf16.mxu0 0
        %2702 = vmatmul.mubr.bf16.gmra.mxu0 %v2355
        %v2703 = vpop.f32.mrf.mxu0
        %v2704 = vadd.f32 0.0, %v2703
        %v2705 = vpop.f32.mrf.mxu0
        %v2706 = vpop.f32.mrf.mxu0
        %v2707 = vpop.f32.mrf.mxu0
        %2708 = vdwg.mxu0
        %v2713 = vunpack.c.l.b16 %v2317
        %v2714 = vunpack.c.l.b16 %v2318
        %v2715 = vunpack.c.l.b16 %v2319
        %v2716 = vunpack.c.l.b16 %v2320
        %v2717 = vpack.c.b16 %v2714, %v2713
        %v2718 = vpack.c.b16 %v2716, %v2715
        %2721 = vmatprep.subr.bf16.mxu0 0
        %2722 = vmatpush1.bf16.msra.mxu0 0
        %2723 = vmatprep.subr.bf16.mxu0 0
        %2724 = vmatpush1.bf16.msra.mxu0 0
        %2725 = vmatprep.subr.bf16.mxu0 0
        %2726 = vmatpush1.bf16.msra.mxu0 0
        %2727 = vmatprep.subr.bf16.mxu0 0
        %2728 = vmatpush1.bf16.msra.mxu0 0
        %2729 = vmatprep.subr.bf16.mxu0 0
        %2730 = vmatpush1.bf16.msra.mxu0 0
        %2731 = vmatprep.subr.bf16.mxu0 0
        %2732 = vmatpush1.bf16.msra.mxu0 0
        %2733 = vmatprep.subr.bf16.mxu0 0
        %2734 = vmatpush1.bf16.msra.mxu0 %v2718
        %2735 = vmatprep.subr.bf16.mxu0 0
        %2736 = vmatpush1.bf16.msra.mxu0 %v2717
        %2737 = vmatprep.subr.bf16.mxu0 0
        %2738 = vmatpush2.bf16.msra.mxu0 0
        %2739 = vmatprep.subr.bf16.mxu0 0
        %2740 = vmatpush2.bf16.msra.mxu0 0
        %2741 = vmatprep.subr.bf16.mxu0 0
        %2742 = vmatpush2.bf16.msra.mxu0 0
        %2743 = vmatprep.subr.bf16.mxu0 0
        %2744 = vmatpush2.bf16.msra.mxu0 0
        %2745 = vmatprep.subr.bf16.mxu0 0
        %2746 = vmatpush2.bf16.msra.mxu0 0
        %2747 = vmatprep.subr.bf16.mxu0 0
        %2748 = vmatpush2.bf16.msra.mxu0 0
        %2749 = vmatprep.subr.bf16.mxu0 0
        %2750 = vmatpush2.bf16.msra.mxu0 0
        %2751 = vmatprep.subr.bf16.mxu0 0
        %2752 = vmatpush2.bf16.msra.mxu0 0
        %2753 = vmatprep.mubr.bf16.mxu0 0
        %2754 = vmatmul.mubr.bf16.gmra.mxu0 %v2355
        %v2755 = vpop.f32.mrf.mxu0
        %v2756 = vadd.f32 0.0, %v2755
        %v2757 = vpop.f32.mrf.mxu0
        %v2758 = vpop.f32.mrf.mxu0
        %v2759 = vpop.f32.mrf.mxu0
        %2760 = vdwg.mxu0
        %v2765 = vunpack.c.l.b16 %v2321
        %v2766 = vunpack.c.l.b16 %v2322
        %v2767 = vunpack.c.l.b16 %v2323
        %v2768 = vunpack.c.l.b16 %v2324
        %v2769 = vpack.c.b16 %v2766, %v2765
        %v2770 = vpack.c.b16 %v2768, %v2767
        %2773 = vmatprep.subr.bf16.mxu0 0
        %2774 = vmatpush1.bf16.msra.mxu0 0
        %2775 = vmatprep.subr.bf16.mxu0 0
        %2776 = vmatpush1.bf16.msra.mxu0 0
        %2777 = vmatprep.subr.bf16.mxu0 0
        %2778 = vmatpush1.bf16.msra.mxu0 0
        %2779 = vmatprep.subr.bf16.mxu0 0
        %2780 = vmatpush1.bf16.msra.mxu0 0
        %2781 = vmatprep.subr.bf16.mxu0 0
        %2782 = vmatpush1.bf16.msra.mxu0 0
        %2783 = vmatprep.subr.bf16.mxu0 0
        %2784 = vmatpush1.bf16.msra.mxu0 0
        %2785 = vmatprep.subr.bf16.mxu0 0
        %2786 = vmatpush1.bf16.msra.mxu0 %v2770
        %2787 = vmatprep.subr.bf16.mxu0 0
        %2788 = vmatpush1.bf16.msra.mxu0 %v2769
        %2789 = vmatprep.subr.bf16.mxu0 0
        %2790 = vmatpush2.bf16.msra.mxu0 0
        %2791 = vmatprep.subr.bf16.mxu0 0
        %2792 = vmatpush2.bf16.msra.mxu0 0
        %2793 = vmatprep.subr.bf16.mxu0 0
        %2794 = vmatpush2.bf16.msra.mxu0 0
        %2795 = vmatprep.subr.bf16.mxu0 0
        %2796 = vmatpush2.bf16.msra.mxu0 0
        %2797 = vmatprep.subr.bf16.mxu0 0
        %2798 = vmatpush2.bf16.msra.mxu0 0
        %2799 = vmatprep.subr.bf16.mxu0 0
        %2800 = vmatpush2.bf16.msra.mxu0 0
        %2801 = vmatprep.subr.bf16.mxu0 0
        %2802 = vmatpush2.bf16.msra.mxu0 0
        %2803 = vmatprep.subr.bf16.mxu0 0
        %2804 = vmatpush2.bf16.msra.mxu0 0
        %2805 = vmatprep.mubr.bf16.mxu0 0
        %2806 = vmatmul.mubr.bf16.gmra.mxu0 %v2355
        %v2807 = vpop.f32.mrf.mxu0
        %v2808 = vadd.f32 0.0, %v2807
        %v2809 = vpop.f32.mrf.mxu0
        %v2810 = vpop.f32.mrf.mxu0
        %v2811 = vpop.f32.mrf.mxu0
        %2812 = vdwg.mxu0
        %v2817 = vunpack.c.l.b16 %v2325
        %v2818 = vunpack.c.l.b16 %v2326
        %v2819 = vunpack.c.l.b16 %v2327
        %v2820 = vunpack.c.l.b16 %v2328
        %v2821 = vpack.c.b16 %v2818, %v2817
        %v2822 = vpack.c.b16 %v2820, %v2819
        %2825 = vmatprep.subr.bf16.mxu0 0
        %2826 = vmatpush1.bf16.msra.mxu0 0
        %2827 = vmatprep.subr.bf16.mxu0 0
        %2828 = vmatpush1.bf16.msra.mxu0 0
        %2829 = vmatprep.subr.bf16.mxu0 0
        %2830 = vmatpush1.bf16.msra.mxu0 0
        %2831 = vmatprep.subr.bf16.mxu0 0
        %2832 = vmatpush1.bf16.msra.mxu0 0
        %2833 = vmatprep.subr.bf16.mxu0 0
        %2834 = vmatpush1.bf16.msra.mxu0 0
        %2835 = vmatprep.subr.bf16.mxu0 0
        %2836 = vmatpush1.bf16.msra.mxu0 0
        %2837 = vmatprep.subr.bf16.mxu0 0
        %2838 = vmatpush1.bf16.msra.mxu0 %v2822
        %2839 = vmatprep.subr.bf16.mxu0 0
        %2840 = vmatpush1.bf16.msra.mxu0 %v2821
        %2841 = vmatprep.subr.bf16.mxu0 0
        %2842 = vmatpush2.bf16.msra.mxu0 0
        %2843 = vmatprep.subr.bf16.mxu0 0
        %2844 = vmatpush2.bf16.msra.mxu0 0
        %2845 = vmatprep.subr.bf16.mxu0 0
        %2846 = vmatpush2.bf16.msra.mxu0 0
        %2847 = vmatprep.subr.bf16.mxu0 0
        %2848 = vmatpush2.bf16.msra.mxu0 0
        %2849 = vmatprep.subr.bf16.mxu0 0
        %2850 = vmatpush2.bf16.msra.mxu0 0
        %2851 = vmatprep.subr.bf16.mxu0 0
        %2852 = vmatpush2.bf16.msra.mxu0 0
        %2853 = vmatprep.subr.bf16.mxu0 0
        %2854 = vmatpush2.bf16.msra.mxu0 0
        %2855 = vmatprep.subr.bf16.mxu0 0
        %2856 = vmatpush2.bf16.msra.mxu0 0
        %2857 = vmatprep.mubr.bf16.mxu0 0
        %2858 = vmatmul.mubr.bf16.gmra.mxu0 %v2355
        %v2859 = vpop.f32.mrf.mxu0
        %v2860 = vadd.f32 0.0, %v2859
        %v2861 = vpop.f32.mrf.mxu0
        %v2862 = vpop.f32.mrf.mxu0
        %v2863 = vpop.f32.mrf.mxu0
        %2864 = vdwg.mxu0
        %v2869 = vunpack.c.l.b16 %v2329
        %v2870 = vunpack.c.l.b16 %v2330
        %v2871 = vunpack.c.l.b16 %v2331
        %v2872 = vunpack.c.l.b16 %v2332
        %v2873 = vpack.c.b16 %v2870, %v2869
        %v2874 = vpack.c.b16 %v2872, %v2871
        %2877 = vmatprep.subr.bf16.mxu0 0
        %2878 = vmatpush1.bf16.msra.mxu0 0
        %2879 = vmatprep.subr.bf16.mxu0 0
        %2880 = vmatpush1.bf16.msra.mxu0 0
        %2881 = vmatprep.subr.bf16.mxu0 0
        %2882 = vmatpush1.bf16.msra.mxu0 0
        %2883 = vmatprep.subr.bf16.mxu0 0
        %2884 = vmatpush1.bf16.msra.mxu0 0
        %2885 = vmatprep.subr.bf16.mxu0 0
        %2886 = vmatpush1.bf16.msra.mxu0 0
        %2887 = vmatprep.subr.bf16.mxu0 0
        %2888 = vmatpush1.bf16.msra.mxu0 0
        %2889 = vmatprep.subr.bf16.mxu0 0
        %2890 = vmatpush1.bf16.msra.mxu0 %v2874
        %2891 = vmatprep.subr.bf16.mxu0 0
        %2892 = vmatpush1.bf16.msra.mxu0 %v2873
        %2893 = vmatprep.subr.bf16.mxu0 0
        %2894 = vmatpush2.bf16.msra.mxu0 0
        %2895 = vmatprep.subr.bf16.mxu0 0
        %2896 = vmatpush2.bf16.msra.mxu0 0
        %2897 = vmatprep.subr.bf16.mxu0 0
        %2898 = vmatpush2.bf16.msra.mxu0 0
        %2899 = vmatprep.subr.bf16.mxu0 0
        %2900 = vmatpush2.bf16.msra.mxu0 0
        %2901 = vmatprep.subr.bf16.mxu0 0
        %2902 = vmatpush2.bf16.msra.mxu0 0
        %2903 = vmatprep.subr.bf16.mxu0 0
        %2904 = vmatpush2.bf16.msra.mxu0 0
        %2905 = vmatprep.subr.bf16.mxu0 0
        %2906 = vmatpush2.bf16.msra.mxu0 0
        %2907 = vmatprep.subr.bf16.mxu0 0
        %2908 = vmatpush2.bf16.msra.mxu0 0
        %2909 = vmatprep.mubr.bf16.mxu0 0
        %2910 = vmatmul.mubr.bf16.gmra.mxu0 %v2355
        %v2911 = vpop.f32.mrf.mxu0
        %v2912 = vadd.f32 0.0, %v2911
        %v2913 = vpop.f32.mrf.mxu0
        %v2914 = vpop.f32.mrf.mxu0
        %v2915 = vpop.f32.mrf.mxu0
        %2916 = vdwg.mxu0
        %v2921 = vunpack.c.l.b16 %v2333
        %v2922 = vunpack.c.l.b16 %v2334
        %v2923 = vunpack.c.l.b16 %v2335
        %v2924 = vunpack.c.l.b16 %v2336
        %v2925 = vpack.c.b16 %v2922, %v2921
        %v2926 = vpack.c.b16 %v2924, %v2923
        %2929 = vmatprep.subr.bf16.mxu0 0
        %2930 = vmatpush1.bf16.msra.mxu0 0
        %2931 = vmatprep.subr.bf16.mxu0 0
        %2932 = vmatpush1.bf16.msra.mxu0 0
        %2933 = vmatprep.subr.bf16.mxu0 0
        %2934 = vmatpush1.bf16.msra.mxu0 0
        %2935 = vmatprep.subr.bf16.mxu0 0
        %2936 = vmatpush1.bf16.msra.mxu0 0
        %2937 = vmatprep.subr.bf16.mxu0 0
        %2938 = vmatpush1.bf16.msra.mxu0 0
        %2939 = vmatprep.subr.bf16.mxu0 0
        %2940 = vmatpush1.bf16.msra.mxu0 0
        %2941 = vmatprep.subr.bf16.mxu0 0
        %2942 = vmatpush1.bf16.msra.mxu0 %v2926
        %2943 = vmatprep.subr.bf16.mxu0 0
        %2944 = vmatpush1.bf16.msra.mxu0 %v2925
        %2945 = vmatprep.subr.bf16.mxu0 0
        %2946 = vmatpush2.bf16.msra.mxu0 0
        %2947 = vmatprep.subr.bf16.mxu0 0
        %2948 = vmatpush2.bf16.msra.mxu0 0
        %2949 = vmatprep.subr.bf16.mxu0 0
        %2950 = vmatpush2.bf16.msra.mxu0 0
        %2951 = vmatprep.subr.bf16.mxu0 0
        %2952 = vmatpush2.bf16.msra.mxu0 0
        %2953 = vmatprep.subr.bf16.mxu0 0
        %2954 = vmatpush2.bf16.msra.mxu0 0
        %2955 = vmatprep.subr.bf16.mxu0 0
        %2956 = vmatpush2.bf16.msra.mxu0 0
        %2957 = vmatprep.subr.bf16.mxu0 0
        %2958 = vmatpush2.bf16.msra.mxu0 0
        %2959 = vmatprep.subr.bf16.mxu0 0
        %2960 = vmatpush2.bf16.msra.mxu0 0
        %2961 = vmatprep.mubr.bf16.mxu0 0
        %2962 = vmatmul.mubr.bf16.gmra.mxu0 %v2355
        %v2963 = vpop.f32.mrf.mxu0
        %v2964 = vadd.f32 0.0, %v2963
        %v2965 = vpop.f32.mrf.mxu0
        %v2966 = vpop.f32.mrf.mxu0
        %v2967 = vpop.f32.mrf.mxu0
        %2968 = vdwg.mxu0
        %v2969 = vmul.f32 %v2392, 0.35355338
        %v2970 = vmul.f32 %v2444, 0.35355338
        %v2971 = vmul.f32 %v2496, 0.35355338
        %v2972 = vmul.f32 %v2548, 0.35355338
        %v2973 = vpack.c.bf16 %v2969, %v2969
        %v2974 = vpack.c.bf16 %v2970, %v2970
        %v2975 = vpack.c.bf16 %v2971, %v2971
        %v2976 = vpack.c.bf16 %v2972, %v2972
        %v2977 = vpack.c.bf16 %v2600, %v2600
        %v2978 = vpack.c.bf16 %v2652, %v2652
        %v2979 = vpack.c.bf16 %v2704, %v2704
        %v2980 = vpack.c.bf16 %v2756, %v2756
        %v2982 = vsel %vm1474, %v2973, 0
        %v2985 = vsel %vm1474, %v2977, 0
        %2987 = vmatprep.subr.bf16.mxu0 0
        %2988 = vmatpush1.bf16.xpose.msra.mxu0 0
        %2989 = vmatprep.subr.bf16.mxu0 0
        %2990 = vmatpush1.bf16.xpose.msra.mxu0 0
        %2991 = vmatprep.subr.bf16.mxu0 0
        %2992 = vmatpush1.bf16.xpose.msra.mxu0 0
        %2993 = vmatprep.subr.bf16.mxu0 0
        %2994 = vmatpush1.bf16.xpose.msra.mxu0 0
        %2995 = vmatprep.subr.bf16.mxu0 0
        %2996 = vmatpush1.bf16.xpose.msra.mxu0 0
        %2997 = vmatprep.subr.bf16.mxu0 0
        %2998 = vmatpush1.bf16.xpose.msra.mxu0 0
        %2999 = vmatprep.subr.bf16.mxu0 0
        %3000 = vmatpush1.bf16.xpose.msra.mxu0 0
        %3001 = vmatprep.subr.bf16.mxu0 0
        %3002 = vmatpush1.bf16.xpose.msra.mxu0 %v2985
        %3003 = vmatprep.subr.bf16.mxu0 0
        %3004 = vmatpush2.bf16.xpose.msra.mxu0 0
        %3005 = vmatprep.subr.bf16.mxu0 0
        %3006 = vmatpush2.bf16.xpose.msra.mxu0 0
        %3007 = vmatprep.subr.bf16.mxu0 0
        %3008 = vmatpush2.bf16.xpose.msra.mxu0 0
        %3009 = vmatprep.subr.bf16.mxu0 0
        %3010 = vmatpush2.bf16.xpose.msra.mxu0 0
        %3011 = vmatprep.subr.bf16.mxu0 0
        %3012 = vmatpush2.bf16.xpose.msra.mxu0 0
        %3013 = vmatprep.subr.bf16.mxu0 0
        %3014 = vmatpush2.bf16.xpose.msra.mxu0 0
        %3015 = vmatprep.subr.bf16.mxu0 0
        %3016 = vmatpush2.bf16.xpose.msra.mxu0 0
        %3017 = vmatprep.subr.bf16.mxu0 0
        %3018 = vmatpush2.bf16.xpose.msra.mxu0 0
        %3019 = vmatprep.mubr.bf16.mxu0 0
        %3020 = vmatmul.mubr.bf16.gmra.mxu0 %v2982
        %v3021 = vpop.f32.mrf.mxu0
        %v3022 = vadd.f32 0.0, %v3021
        %v3023 = vpop.f32.mrf.mxu0
        %v3024 = vpop.f32.mrf.mxu0
        %v3025 = vpop.f32.mrf.mxu0
        %3026 = vdwg.mxu0
        %v3028 = vsel %vm1474, %v2974, 0
        %v3031 = vsel %vm1474, %v2978, 0
        %3033 = vmatprep.subr.bf16.mxu0 0
        %3034 = vmatpush1.bf16.xpose.msra.mxu0 0
        %3035 = vmatprep.subr.bf16.mxu0 0
        %3036 = vmatpush1.bf16.xpose.msra.mxu0 0
        %3037 = vmatprep.subr.bf16.mxu0 0
        %3038 = vmatpush1.bf16.xpose.msra.mxu0 0
        %3039 = vmatprep.subr.bf16.mxu0 0
        %3040 = vmatpush1.bf16.xpose.msra.mxu0 0
        %3041 = vmatprep.subr.bf16.mxu0 0
        %3042 = vmatpush1.bf16.xpose.msra.mxu0 0
        %3043 = vmatprep.subr.bf16.mxu0 0
        %3044 = vmatpush1.bf16.xpose.msra.mxu0 0
        %3045 = vmatprep.subr.bf16.mxu0 0
        %3046 = vmatpush1.bf16.xpose.msra.mxu0 0
        %3047 = vmatprep.subr.bf16.mxu0 0
        %3048 = vmatpush1.bf16.xpose.msra.mxu0 %v3031
        %3049 = vmatprep.subr.bf16.mxu0 0
        %3050 = vmatpush2.bf16.xpose.msra.mxu0 0
        %3051 = vmatprep.subr.bf16.mxu0 0
        %3052 = vmatpush2.bf16.xpose.msra.mxu0 0
        %3053 = vmatprep.subr.bf16.mxu0 0
        %3054 = vmatpush2.bf16.xpose.msra.mxu0 0
        %3055 = vmatprep.subr.bf16.mxu0 0
        %3056 = vmatpush2.bf16.xpose.msra.mxu0 0
        %3057 = vmatprep.subr.bf16.mxu0 0
        %3058 = vmatpush2.bf16.xpose.msra.mxu0 0
        %3059 = vmatprep.subr.bf16.mxu0 0
        %3060 = vmatpush2.bf16.xpose.msra.mxu0 0
        %3061 = vmatprep.subr.bf16.mxu0 0
        %3062 = vmatpush2.bf16.xpose.msra.mxu0 0
        %3063 = vmatprep.subr.bf16.mxu0 0
        %3064 = vmatpush2.bf16.xpose.msra.mxu0 0
        %3065 = vmatprep.mubr.bf16.mxu0 0
        %3066 = vmatmul.mubr.bf16.gmra.mxu0 %v3028
        %v3067 = vpop.f32.mrf.mxu0
        %v3068 = vadd.f32 0.0, %v3067
        %v3069 = vpop.f32.mrf.mxu0
        %v3070 = vpop.f32.mrf.mxu0
        %v3071 = vpop.f32.mrf.mxu0
        %3072 = vdwg.mxu0
        %v3074 = vsel %vm1474, %v2975, 0
        %v3077 = vsel %vm1474, %v2979, 0
        %3079 = vmatprep.subr.bf16.mxu0 0
        %3080 = vmatpush1.bf16.xpose.msra.mxu0 0
        %3081 = vmatprep.subr.bf16.mxu0 0
        %3082 = vmatpush1.bf16.xpose.msra.mxu0 0
        %3083 = vmatprep.subr.bf16.mxu0 0
        %3084 = vmatpush1.bf16.xpose.msra.mxu0 0
        %3085 = vmatprep.subr.bf16.mxu0 0
        %3086 = vmatpush1.bf16.xpose.msra.mxu0 0
        %3087 = vmatprep.subr.bf16.mxu0 0
        %3088 = vmatpush1.bf16.xpose.msra.mxu0 0
        %3089 = vmatprep.subr.bf16.mxu0 0
        %3090 = vmatpush1.bf16.xpose.msra.mxu0 0
        %3091 = vmatprep.subr.bf16.mxu0 0
        %3092 = vmatpush1.bf16.xpose.msra.mxu0 0
        %3093 = vmatprep.subr.bf16.mxu0 0
        %3094 = vmatpush1.bf16.xpose.msra.mxu0 %v3077
        %3095 = vmatprep.subr.bf16.mxu0 0
        %3096 = vmatpush2.bf16.xpose.msra.mxu0 0
        %3097 = vmatprep.subr.bf16.mxu0 0
        %3098 = vmatpush2.bf16.xpose.msra.mxu0 0
        %3099 = vmatprep.subr.bf16.mxu0 0
        %3100 = vmatpush2.bf16.xpose.msra.mxu0 0
        %3101 = vmatprep.subr.bf16.mxu0 0
        %3102 = vmatpush2.bf16.xpose.msra.mxu0 0
        %3103 = vmatprep.subr.bf16.mxu0 0
        %3104 = vmatpush2.bf16.xpose.msra.mxu0 0
        %3105 = vmatprep.subr.bf16.mxu0 0
        %3106 = vmatpush2.bf16.xpose.msra.mxu0 0
        %3107 = vmatprep.subr.bf16.mxu0 0
        %3108 = vmatpush2.bf16.xpose.msra.mxu0 0
        %3109 = vmatprep.subr.bf16.mxu0 0
        %3110 = vmatpush2.bf16.xpose.msra.mxu0 0
        %3111 = vmatprep.mubr.bf16.mxu0 0
        %3112 = vmatmul.mubr.bf16.gmra.mxu0 %v3074
        %v3113 = vpop.f32.mrf.mxu0
        %v3114 = vadd.f32 0.0, %v3113
        %v3115 = vpop.f32.mrf.mxu0
        %v3116 = vpop.f32.mrf.mxu0
        %v3117 = vpop.f32.mrf.mxu0
        %3118 = vdwg.mxu0
        %v3120 = vsel %vm1474, %v2976, 0
        %v3123 = vsel %vm1474, %v2980, 0
        %3125 = vmatprep.subr.bf16.mxu0 0
        %3126 = vmatpush1.bf16.xpose.msra.mxu0 0
        %3127 = vmatprep.subr.bf16.mxu0 0
        %3128 = vmatpush1.bf16.xpose.msra.mxu0 0
        %3129 = vmatprep.subr.bf16.mxu0 0
        %3130 = vmatpush1.bf16.xpose.msra.mxu0 0
        %3131 = vmatprep.subr.bf16.mxu0 0
        %3132 = vmatpush1.bf16.xpose.msra.mxu0 0
        %3133 = vmatprep.subr.bf16.mxu0 0
        %3134 = vmatpush1.bf16.xpose.msra.mxu0 0
        %3135 = vmatprep.subr.bf16.mxu0 0
        %3136 = vmatpush1.bf16.xpose.msra.mxu0 0
        %3137 = vmatprep.subr.bf16.mxu0 0
        %3138 = vmatpush1.bf16.xpose.msra.mxu0 0
        %3139 = vmatprep.subr.bf16.mxu0 0
        %3140 = vmatpush1.bf16.xpose.msra.mxu0 %v3123
        %3141 = vmatprep.subr.bf16.mxu0 0
        %3142 = vmatpush2.bf16.xpose.msra.mxu0 0
        %3143 = vmatprep.subr.bf16.mxu0 0
        %3144 = vmatpush2.bf16.xpose.msra.mxu0 0
        %3145 = vmatprep.subr.bf16.mxu0 0
        %3146 = vmatpush2.bf16.xpose.msra.mxu0 0
        %3147 = vmatprep.subr.bf16.mxu0 0
        %3148 = vmatpush2.bf16.xpose.msra.mxu0 0
        %3149 = vmatprep.subr.bf16.mxu0 0
        %3150 = vmatpush2.bf16.xpose.msra.mxu0 0
        %3151 = vmatprep.subr.bf16.mxu0 0
        %3152 = vmatpush2.bf16.xpose.msra.mxu0 0
        %3153 = vmatprep.subr.bf16.mxu0 0
        %3154 = vmatpush2.bf16.xpose.msra.mxu0 0
        %3155 = vmatprep.subr.bf16.mxu0 0
        %3156 = vmatpush2.bf16.xpose.msra.mxu0 0
        %3157 = vmatprep.mubr.bf16.mxu0 0
        %3158 = vmatmul.mubr.bf16.gmra.mxu0 %v3120
        %v3159 = vpop.f32.mrf.mxu0
        %v3160 = vadd.f32 0.0, %v3159
        %v3161 = vpop.f32.mrf.mxu0
        %v3162 = vpop.f32.mrf.mxu0
        %v3163 = vpop.f32.mrf.mxu0
        %3164 = vdwg.mxu0
        %v3165 = vlaneseq
        %v3166 = vshrl.u32 %v3165, 7
        %v3167 = vlaneseq
        %v3168 = vand.u32 %v3167, 127
        %vm3169 = vcmp.le.s32.totalorder %v3168, %v3166
        %v3170 = vsel %vm3169, %v3022, -1e+09
        %v3171 = vsel %vm3169, %v3068, -1e+09
        %v3172 = vsel %vm3169, %v3114, -1e+09
        %v3173 = vsel %vm3169, %v3160, -1e+09
        %v3174 = vsel %vm1474, %v3170, -inf
        %3175 = vmax.xlane.f32.xlu0 %v3174
        %v3176 = vpop.xlane.xlu0 %3175
        %v3177 = vsel %vm1474, %v3171, -inf
        %3178 = vmax.xlane.f32.xlu0 %v3177
        %v3179 = vpop.xlane.xlu0 %3178
        %v3180 = vsel %vm1474, %v3172, -inf
        %3181 = vmax.xlane.f32.xlu0 %v3180
        %v3182 = vpop.xlane.xlu0 %3181
        %v3183 = vsel %vm1474, %v3173, -inf
        %3184 = vmax.xlane.f32.xlu0 %v3183
        %v3185 = vpop.xlane.xlu0 %3184
        %v3186 = vsub.f32 %v3170, %v3176
        %v3187 = vsub.f32 %v3171, %v3179
        %v3188 = vsub.f32 %v3172, %v3182
        %v3189 = vsub.f32 %v3173, %v3185
        %v3190 = vmul.f32 %v3186, 1.442695
        %v3191 = vpow.pop %v3190
        %v3192 = vmul.f32 %v3187, 1.442695
        %v3193 = vpow.pop %v3192
        %v3194 = vmul.f32 %v3188, 1.442695
        %v3195 = vpow.pop %v3194
        %v3196 = vmul.f32 %v3189, 1.442695
        %v3197 = vpow.pop %v3196
        %v3198 = vsel %vm1474, %v3191, 0.0
        %3199 = vadd.xlane.f32.xlu0 %v3198
        %v3200 = vpop.xlane.xlu0 %3199
        %v3201 = vsel %vm1474, %v3193, 0.0
        %3202 = vadd.xlane.f32.xlu0 %v3201
        %v3203 = vpop.xlane.xlu0 %3202
        %v3204 = vsel %vm1474, %v3195, 0.0
        %3205 = vadd.xlane.f32.xlu0 %v3204
        %v3206 = vpop.xlane.xlu0 %3205
        %v3207 = vsel %vm1474, %v3197, 0.0
        %3208 = vadd.xlane.f32.xlu0 %v3207
        %v3209 = vpop.xlane.xlu0 %3208
        %v3210 = vrcp.pop %v3200
        %v3211 = vrcp.pop %v3203
        %v3212 = vrcp.pop %v3206
        %v3213 = vrcp.pop %v3209
        %v3214 = vmul.f32 %v3191, %v3210
        %v3215 = vmul.f32 %v3193, %v3211
        %v3216 = vmul.f32 %v3195, %v3212
        %v3217 = vmul.f32 %v3197, %v3213
        %v3218 = vpack.c.bf16 %v3214, %v3214
        %v3219 = vpack.c.bf16 %v3215, %v3215
        %v3220 = vpack.c.bf16 %v3216, %v3216
        %v3221 = vpack.c.bf16 %v3217, %v3217
        %v3222 = vpack.c.bf16 %v2808, %v2808
        %v3223 = vpack.c.bf16 %v2860, %v2860
        %v3224 = vpack.c.bf16 %v2912, %v2912
        %v3225 = vpack.c.bf16 %v2964, %v2964
        %v3227 = vsel %vm1474, %v3218, 0
        %v3230 = vsel %vm1714, %v3222, 0
        %3232 = vmatprep.subr.bf16.mxu0 0
        %3233 = vmatpush1.bf16.msra.mxu0 0
        %3234 = vmatprep.subr.bf16.mxu0 0
        %3235 = vmatpush1.bf16.msra.mxu0 0
        %3236 = vmatprep.subr.bf16.mxu0 0
        %3237 = vmatpush1.bf16.msra.mxu0 0
        %3238 = vmatprep.subr.bf16.mxu0 0
        %3239 = vmatpush1.bf16.msra.mxu0 0
        %3240 = vmatprep.subr.bf16.mxu0 0
        %3241 = vmatpush1.bf16.msra.mxu0 0
        %3242 = vmatprep.subr.bf16.mxu0 0
        %3243 = vmatpush1.bf16.msra.mxu0 0
        %3244 = vmatprep.subr.bf16.mxu0 0
        %3245 = vmatpush1.bf16.msra.mxu0 0
        %3246 = vmatprep.subr.bf16.mxu0 0
        %3247 = vmatpush1.bf16.msra.mxu0 %v3230
        %3248 = vmatprep.subr.bf16.mxu0 0
        %3249 = vmatpush2.bf16.msra.mxu0 0
        %3250 = vmatprep.subr.bf16.mxu0 0
        %3251 = vmatpush2.bf16.msra.mxu0 0
        %3252 = vmatprep.subr.bf16.mxu0 0
        %3253 = vmatpush2.bf16.msra.mxu0 0
        %3254 = vmatprep.subr.bf16.mxu0 0
        %3255 = vmatpush2.bf16.msra.mxu0 0
        %3256 = vmatprep.subr.bf16.mxu0 0
        %3257 = vmatpush2.bf16.msra.mxu0 0
        %3258 = vmatprep.subr.bf16.mxu0 0
        %3259 = vmatpush2.bf16.msra.mxu0 0
        %3260 = vmatprep.subr.bf16.mxu0 0
        %3261 = vmatpush2.bf16.msra.mxu0 0
        %3262 = vmatprep.subr.bf16.mxu0 0
        %3263 = vmatpush2.bf16.msra.mxu0 0
        %3264 = vmatprep.mubr.bf16.mxu0 0
        %3265 = vmatmul.mubr.bf16.gmra.mxu0 %v3227
        %v3266 = vpop.f32.mrf.mxu0
        %v3267 = vadd.f32 0.0, %v3266
        %v3268 = vpop.f32.mrf.mxu0
        %v3269 = vpop.f32.mrf.mxu0
        %v3270 = vpop.f32.mrf.mxu0
        %3271 = vdwg.mxu0
        %v3273 = vsel %vm1474, %v3219, 0
        %v3276 = vsel %vm1714, %v3223, 0
        %3278 = vmatprep.subr.bf16.mxu0 0
        %3279 = vmatpush1.bf16.msra.mxu0 0
        %3280 = vmatprep.subr.bf16.mxu0 0
        %3281 = vmatpush1.bf16.msra.mxu0 0
        %3282 = vmatprep.subr.bf16.mxu0 0
        %3283 = vmatpush1.bf16.msra.mxu0 0
        %3284 = vmatprep.subr.bf16.mxu0 0
        %3285 = vmatpush1.bf16.msra.mxu0 0
        %3286 = vmatprep.subr.bf16.mxu0 0
        %3287 = vmatpush1.bf16.msra.mxu0 0
        %3288 = vmatprep.subr.bf16.mxu0 0
        %3289 = vmatpush1.bf16.msra.mxu0 0
        %3290 = vmatprep.subr.bf16.mxu0 0
        %3291 = vmatpush1.bf16.msra.mxu0 0
        %3292 = vmatprep.subr.bf16.mxu0 0
        %3293 = vmatpush1.bf16.msra.mxu0 %v3276
        %3294 = vmatprep.subr.bf16.mxu0 0
        %3295 = vmatpush2.bf16.msra.mxu0 0
        %3296 = vmatprep.subr.bf16.mxu0 0
        %3297 = vmatpush2.bf16.msra.mxu0 0
        %3298 = vmatprep.subr.bf16.mxu0 0
        %3299 = vmatpush2.bf16.msra.mxu0 0
        %3300 = vmatprep.subr.bf16.mxu0 0
        %3301 = vmatpush2.bf16.msra.mxu0 0
        %3302 = vmatprep.subr.bf16.mxu0 0
        %3303 = vmatpush2.bf16.msra.mxu0 0
        %3304 = vmatprep.subr.bf16.mxu0 0
        %3305 = vmatpush2.bf16.msra.mxu0 0
        %3306 = vmatprep.subr.bf16.mxu0 0
        %3307 = vmatpush2.bf16.msra.mxu0 0
        %3308 = vmatprep.subr.bf16.mxu0 0
        %3309 = vmatpush2.bf16.msra.mxu0 0
        %3310 = vmatprep.mubr.bf16.mxu0 0
        %3311 = vmatmul.mubr.bf16.gmra.mxu0 %v3273
        %v3312 = vpop.f32.mrf.mxu0
        %v3313 = vadd.f32 0.0, %v3312
        %v3314 = vpop.f32.mrf.mxu0
        %v3315 = vpop.f32.mrf.mxu0
        %v3316 = vpop.f32.mrf.mxu0
        %3317 = vdwg.mxu0
        %v3319 = vsel %vm1474, %v3220, 0
        %v3322 = vsel %vm1714, %v3224, 0
        %3324 = vmatprep.subr.bf16.mxu0 0
        %3325 = vmatpush1.bf16.msra.mxu0 0
        %3326 = vmatprep.subr.bf16.mxu0 0
        %3327 = vmatpush1.bf16.msra.mxu0 0
        %3328 = vmatprep.subr.bf16.mxu0 0
        %3329 = vmatpush1.bf16.msra.mxu0 0
        %3330 = vmatprep.subr.bf16.mxu0 0
        %3331 = vmatpush1.bf16.msra.mxu0 0
        %3332 = vmatprep.subr.bf16.mxu0 0
        %3333 = vmatpush1.bf16.msra.mxu0 0
        %3334 = vmatprep.subr.bf16.mxu0 0
        %3335 = vmatpush1.bf16.msra.mxu0 0
        %3336 = vmatprep.subr.bf16.mxu0 0
        %3337 = vmatpush1.bf16.msra.mxu0 0
        %3338 = vmatprep.subr.bf16.mxu0 0
        %3339 = vmatpush1.bf16.msra.mxu0 %v3322
        %3340 = vmatprep.subr.bf16.mxu0 0
        %3341 = vmatpush2.bf16.msra.mxu0 0
        %3342 = vmatprep.subr.bf16.mxu0 0
        %3343 = vmatpush2.bf16.msra.mxu0 0
        %3344 = vmatprep.subr.bf16.mxu0 0
        %3345 = vmatpush2.bf16.msra.mxu0 0
        %3346 = vmatprep.subr.bf16.mxu0 0
        %3347 = vmatpush2.bf16.msra.mxu0 0
        %3348 = vmatprep.subr.bf16.mxu0 0
        %3349 = vmatpush2.bf16.msra.mxu0 0
        %3350 = vmatprep.subr.bf16.mxu0 0
        %3351 = vmatpush2.bf16.msra.mxu0 0
        %3352 = vmatprep.subr.bf16.mxu0 0
        %3353 = vmatpush2.bf16.msra.mxu0 0
        %3354 = vmatprep.subr.bf16.mxu0 0
        %3355 = vmatpush2.bf16.msra.mxu0 0
        %3356 = vmatprep.mubr.bf16.mxu0 0
        %3357 = vmatmul.mubr.bf16.gmra.mxu0 %v3319
        %v3358 = vpop.f32.mrf.mxu0
        %v3359 = vadd.f32 0.0, %v3358
        %v3360 = vpop.f32.mrf.mxu0
        %v3361 = vpop.f32.mrf.mxu0
        %v3362 = vpop.f32.mrf.mxu0
        %3363 = vdwg.mxu0
        %v3365 = vsel %vm1474, %v3221, 0
        %v3368 = vsel %vm1714, %v3225, 0
        %3370 = vmatprep.subr.bf16.mxu0 0
        %3371 = vmatpush1.bf16.msra.mxu0 0
        %3372 = vmatprep.subr.bf16.mxu0 0
        %3373 = vmatpush1.bf16.msra.mxu0 0
        %3374 = vmatprep.subr.bf16.mxu0 0
        %3375 = vmatpush1.bf16.msra.mxu0 0
        %3376 = vmatprep.subr.bf16.mxu0 0
        %3377 = vmatpush1.bf16.msra.mxu0 0
        %3378 = vmatprep.subr.bf16.mxu0 0
        %3379 = vmatpush1.bf16.msra.mxu0 0
        %3380 = vmatprep.subr.bf16.mxu0 0
        %3381 = vmatpush1.bf16.msra.mxu0 0
        %3382 = vmatprep.subr.bf16.mxu0 0
        %3383 = vmatpush1.bf16.msra.mxu0 0
        %3384 = vmatprep.subr.bf16.mxu0 0
        %3385 = vmatpush1.bf16.msra.mxu0 %v3368
        %3386 = vmatprep.subr.bf16.mxu0 0
        %3387 = vmatpush2.bf16.msra.mxu0 0
        %3388 = vmatprep.subr.bf16.mxu0 0
        %3389 = vmatpush2.bf16.msra.mxu0 0
        %3390 = vmatprep.subr.bf16.mxu0 0
        %3391 = vmatpush2.bf16.msra.mxu0 0
        %3392 = vmatprep.subr.bf16.mxu0 0
        %3393 = vmatpush2.bf16.msra.mxu0 0
        %3394 = vmatprep.subr.bf16.mxu0 0
        %3395 = vmatpush2.bf16.msra.mxu0 0
        %3396 = vmatprep.subr.bf16.mxu0 0
        %3397 = vmatpush2.bf16.msra.mxu0 0
        %3398 = vmatprep.subr.bf16.mxu0 0
        %3399 = vmatpush2.bf16.msra.mxu0 0
        %3400 = vmatprep.subr.bf16.mxu0 0
        %3401 = vmatpush2.bf16.msra.mxu0 0
        %3402 = vmatprep.mubr.bf16.mxu0 0
        %3403 = vmatmul.mubr.bf16.gmra.mxu0 %v3365
        %v3404 = vpop.f32.mrf.mxu0
        %v3405 = vadd.f32 0.0, %v3404
        %v3406 = vpop.f32.mrf.mxu0
        %v3407 = vpop.f32.mrf.mxu0
        %v3408 = vpop.f32.mrf.mxu0
        %3409 = vdwg.mxu0
        %v3410 = vpack.c.bf16 %v3267, %v3267
        %v3411 = vpack.c.bf16 %v3313, %v3313
        %v3412 = vpack.c.bf16 %v3359, %v3359
        %v3413 = vpack.c.bf16 %v3405, %v3405
        %v3415 = vsel %vm1474, %v3410, 0
        %v3418 = vsel %vm1714, %v2337, 0
        %3420 = vmatprep.subr.bf16.mxu0 0
        %3421 = vmatpush1.bf16.msra.mxu0 0
        %3422 = vmatprep.subr.bf16.mxu0 0
        %3423 = vmatpush1.bf16.msra.mxu0 0
        %3424 = vmatprep.subr.bf16.mxu0 0
        %3425 = vmatpush1.bf16.msra.mxu0 0
        %3426 = vmatprep.subr.bf16.mxu0 0
        %3427 = vmatpush1.bf16.msra.mxu0 0
        %3428 = vmatprep.subr.bf16.mxu0 0
        %3429 = vmatpush1.bf16.msra.mxu0 0
        %3430 = vmatprep.subr.bf16.mxu0 0
        %3431 = vmatpush1.bf16.msra.mxu0 0
        %3432 = vmatprep.subr.bf16.mxu0 0
        %3433 = vmatpush1.bf16.msra.mxu0 0
        %3434 = vmatprep.subr.bf16.mxu0 0
        %3435 = vmatpush1.bf16.msra.mxu0 %v3418
        %3436 = vmatprep.subr.bf16.mxu0 0
        %3437 = vmatpush2.bf16.msra.mxu0 0
        %3438 = vmatprep.subr.bf16.mxu0 0
        %3439 = vmatpush2.bf16.msra.mxu0 0
        %3440 = vmatprep.subr.bf16.mxu0 0
        %3441 = vmatpush2.bf16.msra.mxu0 0
        %3442 = vmatprep.subr.bf16.mxu0 0
        %3443 = vmatpush2.bf16.msra.mxu0 0
        %3444 = vmatprep.subr.bf16.mxu0 0
        %3445 = vmatpush2.bf16.msra.mxu0 0
        %3446 = vmatprep.subr.bf16.mxu0 0
        %3447 = vmatpush2.bf16.msra.mxu0 0
        %3448 = vmatprep.subr.bf16.mxu0 0
        %3449 = vmatpush2.bf16.msra.mxu0 0
        %3450 = vmatprep.subr.bf16.mxu0 0
        %3451 = vmatpush2.bf16.msra.mxu0 0
        %3452 = vmatprep.mubr.bf16.mxu0 0
        %3453 = vmatmul.mubr.bf16.gmra.mxu0 %v3415
        %v3454 = vpop.f32.mrf.mxu0
        %v3455 = vadd.f32 0.0, %v3454
        %v3456 = vpop.f32.mrf.mxu0
        %v3457 = vpop.f32.mrf.mxu0
        %v3458 = vpop.f32.mrf.mxu0
        %3459 = vdwg.mxu0
        %v3461 = vsel %vm1474, %v3411, 0
        %v3464 = vsel %vm1714, %v2338, 0
        %3466 = vmatprep.subr.bf16.mxu0 0
        %3467 = vmatpush1.bf16.msra.mxu0 0
        %3468 = vmatprep.subr.bf16.mxu0 0
        %3469 = vmatpush1.bf16.msra.mxu0 0
        %3470 = vmatprep.subr.bf16.mxu0 0
        %3471 = vmatpush1.bf16.msra.mxu0 0
        %3472 = vmatprep.subr.bf16.mxu0 0
        %3473 = vmatpush1.bf16.msra.mxu0 0
        %3474 = vmatprep.subr.bf16.mxu0 0
        %3475 = vmatpush1.bf16.msra.mxu0 0
        %3476 = vmatprep.subr.bf16.mxu0 0
        %3477 = vmatpush1.bf16.msra.mxu0 0
        %3478 = vmatprep.subr.bf16.mxu0 0
        %3479 = vmatpush1.bf16.msra.mxu0 0
        %3480 = vmatprep.subr.bf16.mxu0 0
        %3481 = vmatpush1.bf16.msra.mxu0 %v3464
        %3482 = vmatprep.subr.bf16.mxu0 0
        %3483 = vmatpush2.bf16.msra.mxu0 0
        %3484 = vmatprep.subr.bf16.mxu0 0
        %3485 = vmatpush2.bf16.msra.mxu0 0
        %3486 = vmatprep.subr.bf16.mxu0 0
        %3487 = vmatpush2.bf16.msra.mxu0 0
        %3488 = vmatprep.subr.bf16.mxu0 0
        %3489 = vmatpush2.bf16.msra.mxu0 0
        %3490 = vmatprep.subr.bf16.mxu0 0
        %3491 = vmatpush2.bf16.msra.mxu0 0
        %3492 = vmatprep.subr.bf16.mxu0 0
        %3493 = vmatpush2.bf16.msra.mxu0 0
        %3494 = vmatprep.subr.bf16.mxu0 0
        %3495 = vmatpush2.bf16.msra.mxu0 0
        %3496 = vmatprep.subr.bf16.mxu0 0
        %3497 = vmatpush2.bf16.msra.mxu0 0
        %3498 = vmatprep.mubr.bf16.mxu0 0
        %3499 = vmatmul.mubr.bf16.gmra.mxu0 %v3461
        %v3500 = vpop.f32.mrf.mxu0
        %v3501 = vadd.f32 0.0, %v3500
        %v3502 = vpop.f32.mrf.mxu0
        %v3503 = vpop.f32.mrf.mxu0
        %v3504 = vpop.f32.mrf.mxu0
        %3505 = vdwg.mxu0
        %v3507 = vsel %vm1474, %v3412, 0
        %v3510 = vsel %vm1714, %v2339, 0
        %3512 = vmatprep.subr.bf16.mxu0 0
        %3513 = vmatpush1.bf16.msra.mxu0 0
        %3514 = vmatprep.subr.bf16.mxu0 0
        %3515 = vmatpush1.bf16.msra.mxu0 0
        %3516 = vmatprep.subr.bf16.mxu0 0
        %3517 = vmatpush1.bf16.msra.mxu0 0
        %3518 = vmatprep.subr.bf16.mxu0 0
        %3519 = vmatpush1.bf16.msra.mxu0 0
        %3520 = vmatprep.subr.bf16.mxu0 0
        %3521 = vmatpush1.bf16.msra.mxu0 0
        %3522 = vmatprep.subr.bf16.mxu0 0
        %3523 = vmatpush1.bf16.msra.mxu0 0
        %3524 = vmatprep.subr.bf16.mxu0 0
        %3525 = vmatpush1.bf16.msra.mxu0 0
        %3526 = vmatprep.subr.bf16.mxu0 0
        %3527 = vmatpush1.bf16.msra.mxu0 %v3510
        %3528 = vmatprep.subr.bf16.mxu0 0
        %3529 = vmatpush2.bf16.msra.mxu0 0
        %3530 = vmatprep.subr.bf16.mxu0 0
        %3531 = vmatpush2.bf16.msra.mxu0 0
        %3532 = vmatprep.subr.bf16.mxu0 0
        %3533 = vmatpush2.bf16.msra.mxu0 0
        %3534 = vmatprep.subr.bf16.mxu0 0
        %3535 = vmatpush2.bf16.msra.mxu0 0
        %3536 = vmatprep.subr.bf16.mxu0 0
        %3537 = vmatpush2.bf16.msra.mxu0 0
        %3538 = vmatprep.subr.bf16.mxu0 0
        %3539 = vmatpush2.bf16.msra.mxu0 0
        %3540 = vmatprep.subr.bf16.mxu0 0
        %3541 = vmatpush2.bf16.msra.mxu0 0
        %3542 = vmatprep.subr.bf16.mxu0 0
        %3543 = vmatpush2.bf16.msra.mxu0 0
        %3544 = vmatprep.mubr.bf16.mxu0 0
        %3545 = vmatmul.mubr.bf16.gmra.mxu0 %v3507
        %v3546 = vpop.f32.mrf.mxu0
        %v3547 = vadd.f32 0.0, %v3546
        %v3548 = vpop.f32.mrf.mxu0
        %v3549 = vpop.f32.mrf.mxu0
        %v3550 = vpop.f32.mrf.mxu0
        %3551 = vdwg.mxu0
        %v3553 = vsel %vm1474, %v3413, 0
        %v3556 = vsel %vm1714, %v2340, 0
        %3558 = vmatprep.subr.bf16.mxu0 0
        %3559 = vmatpush1.bf16.msra.mxu0 0
        %3560 = vmatprep.subr.bf16.mxu0 0
        %3561 = vmatpush1.bf16.msra.mxu0 0
        %3562 = vmatprep.subr.bf16.mxu0 0
        %3563 = vmatpush1.bf16.msra.mxu0 0
        %3564 = vmatprep.subr.bf16.mxu0 0
        %3565 = vmatpush1.bf16.msra.mxu0 0
        %3566 = vmatprep.subr.bf16.mxu0 0
        %3567 = vmatpush1.bf16.msra.mxu0 0
        %3568 = vmatprep.subr.bf16.mxu0 0
        %3569 = vmatpush1.bf16.msra.mxu0 0
        %3570 = vmatprep.subr.bf16.mxu0 0
        %3571 = vmatpush1.bf16.msra.mxu0 0
        %3572 = vmatprep.subr.bf16.mxu0 0
        %3573 = vmatpush1.bf16.msra.mxu0 %v3556
        %3574 = vmatprep.subr.bf16.mxu0 0
        %3575 = vmatpush2.bf16.msra.mxu0 0
        %3576 = vmatprep.subr.bf16.mxu0 0
        %3577 = vmatpush2.bf16.msra.mxu0 0
        %3578 = vmatprep.subr.bf16.mxu0 0
        %3579 = vmatpush2.bf16.msra.mxu0 0
        %3580 = vmatprep.subr.bf16.mxu0 0
        %3581 = vmatpush2.bf16.msra.mxu0 0
        %3582 = vmatprep.subr.bf16.mxu0 0
        %3583 = vmatpush2.bf16.msra.mxu0 0
        %3584 = vmatprep.subr.bf16.mxu0 0
        %3585 = vmatpush2.bf16.msra.mxu0 0
        %3586 = vmatprep.subr.bf16.mxu0 0
        %3587 = vmatpush2.bf16.msra.mxu0 0
        %3588 = vmatprep.subr.bf16.mxu0 0
        %3589 = vmatpush2.bf16.msra.mxu0 0
        %3590 = vmatprep.mubr.bf16.mxu0 0
        %3591 = vmatmul.mubr.bf16.gmra.mxu0 %v3553
        %v3592 = vpop.f32.mrf.mxu0
        %v3593 = vadd.f32 0.0, %v3592
        %v3594 = vpop.f32.mrf.mxu0
        %v3595 = vpop.f32.mrf.mxu0
        %v3596 = vpop.f32.mrf.mxu0
        %3597 = vdwg.mxu0
        %v3598 = vsel %vm846, %v3455, 0.0
        %v3599 = vsel %vm846, %v3501, 0.0
        %v3600 = vadd.f32 %v3598, %v3599
        %v3601 = vsel %vm846, %v3547, 0.0
        %v3602 = vadd.f32 %v3600, %v3601
        %v3603 = vsel %vm846, %v3593, 0.0
        %v3604 = vadd.f32 %v3602, %v3603
        %v3605 = vadd.f32 %v3604, %v2288
        %v3606 = vsel %vm846, %v3605, 0.0
        %3607 = vadd.xlane.f32.xlu0 %v3606
        %v3608 = vpop.xlane.xlu0 %3607
        %v3609 = vmul.f32 %v3608, %v2095
        %v3610 = vsub.f32 %v3605, %v3609
        %v3611 = vmul.f32 %v3610, %v3610
        %v3612 = vsel %vm846, %v3611, 0.0
        %3613 = vadd.xlane.f32.xlu0 %v3612
        %v3614 = vpop.xlane.xlu0 %3613
        %v3615 = vmul.f32 %v3614, %v2095
        %v3616 = vadd.f32 %v3615, 1e-05
        %v3617 = vrsqrt.pop %v3616
        %v3618 = vmul.f32 %v3610, %v3617
        %v3619 = vmul.f32 %v3618, %v2110
        %v3620 = vadd.f32 %v3619, %v2117
        %v3621 = vld [vmem:[%s10] sm:$0xf]
        %v3622 = vld [vmem:[%s10 + $0x4] sm:$0xf]
        %v3623 = vld [vmem:[%s10 + $0x8] sm:$0xf]
        %v3624 = vld [vmem:[%s10 + $0xc] sm:$0xf]
        %v3625 = vld [vmem:[%s10 + $0x10] sm:$0xf]
        %v3626 = vld [vmem:[%s10 + $0x14] sm:$0xf]
        %v3627 = vld [vmem:[%s10 + $0x18] sm:$0xf]
        %v3628 = vld [vmem:[%s10 + $0x1c] sm:$0xf]
        %v3629 = vld [vmem:[%s10 + $0x20] sm:$0xf]
        %v3630 = vld [vmem:[%s10 + $0x24] sm:$0xf]
        %v3631 = vld [vmem:[%s10 + $0x28] sm:$0xf]
        %v3632 = vld [vmem:[%s10 + $0x2c] sm:$0xf]
        %v3633 = vld [vmem:[%s10 + $0x30] sm:$0xf]
        %v3634 = vld [vmem:[%s10 + $0x34] sm:$0xf]
        %v3635 = vld [vmem:[%s10 + $0x38] sm:$0xf]
        %v3636 = vld [vmem:[%s10 + $0x3c] sm:$0xf]
        %v3637 = vld [vmem:[%s11] sm:$0xf]
        %v3638 = vld [vmem:[%s11 + $0x4] sm:$0xf]
        %v3639 = vld [vmem:[%s11 + $0x8] sm:$0xf]
        %v3640 = vld [vmem:[%s11 + $0xc] sm:$0xf]
        %v3641 = vld [vmem:[%s11 + $0x10] sm:$0xf]
        %v3642 = vld [vmem:[%s11 + $0x14] sm:$0xf]
        %v3643 = vld [vmem:[%s11 + $0x18] sm:$0xf]
        %v3644 = vld [vmem:[%s11 + $0x1c] sm:$0xf]
        %v3645 = vld [vmem:[%s11 + $0x20] sm:$0xf]
        %v3646 = vld [vmem:[%s11 + $0x24] sm:$0xf]
        %v3647 = vld [vmem:[%s11 + $0x28] sm:$0xf]
        %v3648 = vld [vmem:[%s11 + $0x2c] sm:$0xf]
        %v3649 = vld [vmem:[%s11 + $0x30] sm:$0xf]
        %v3650 = vld [vmem:[%s11 + $0x34] sm:$0xf]
        %v3651 = vld [vmem:[%s11 + $0x38] sm:$0xf]
        %v3652 = vld [vmem:[%s11 + $0x3c] sm:$0xf]
        %v3653 = vld [vmem:[%s12] sm:$0xf]
        %v3654 = vld [vmem:[%s12 + $0x4] sm:$0xf]
        %v3655 = vld [vmem:[%s12 + $0x8] sm:$0xf]
        %v3656 = vld [vmem:[%s12 + $0xc] sm:$0xf]
        %v3657 = vld [vmem:[%s12 + $0x10] sm:$0xf]
        %v3658 = vld [vmem:[%s12 + $0x14] sm:$0xf]
        %v3659 = vld [vmem:[%s12 + $0x18] sm:$0xf]
        %v3660 = vld [vmem:[%s12 + $0x1c] sm:$0xf]
        %v3661 = vld [vmem:[%s12 + $0x20] sm:$0xf]
        %v3662 = vld [vmem:[%s12 + $0x24] sm:$0xf]
        %v3663 = vld [vmem:[%s12 + $0x28] sm:$0xf]
        %v3664 = vld [vmem:[%s12 + $0x2c] sm:$0xf]
        %v3665 = vld [vmem:[%s12 + $0x30] sm:$0xf]
        %v3666 = vld [vmem:[%s12 + $0x34] sm:$0xf]
        %v3667 = vld [vmem:[%s12 + $0x38] sm:$0xf]
        %v3668 = vld [vmem:[%s12 + $0x3c] sm:$0xf]
        %v3669 = vld [vmem:[%s13] sm:$0xf]
        %v3670 = vld [vmem:[%s13 + $0x4] sm:$0xf]
        %v3671 = vld [vmem:[%s13 + $0x8] sm:$0xf]
        %v3672 = vld [vmem:[%s13 + $0xc] sm:$0xf]
        %v3673 = vpack.c.bf16 %v2287, %v2287
        %v3674 = vpack.c.bf16 %v3620, %v3620
        %v3679 = vunpack.c.l.b16 %v3621
        %v3680 = vunpack.c.l.b16 %v3622
        %v3681 = vunpack.c.l.b16 %v3623
        %v3682 = vunpack.c.l.b16 %v3624
        %v3683 = vpack.c.b16 %v3680, %v3679
        %v3684 = vpack.c.b16 %v3682, %v3681
        %v3688 = vsel %vm846, %v3674, 0
        %3690 = vmatprep.subr.bf16.mxu0 0
        %3691 = vmatpush1.bf16.msra.mxu0 0
        %3692 = vmatprep.subr.bf16.mxu0 0
        %3693 = vmatpush1.bf16.msra.mxu0 0
        %3694 = vmatprep.subr.bf16.mxu0 0
        %3695 = vmatpush1.bf16.msra.mxu0 0
        %3696 = vmatprep.subr.bf16.mxu0 0
        %3697 = vmatpush1.bf16.msra.mxu0 0
        %3698 = vmatprep.subr.bf16.mxu0 0
        %3699 = vmatpush1.bf16.msra.mxu0 0
        %3700 = vmatprep.subr.bf16.mxu0 0
        %3701 = vmatpush1.bf16.msra.mxu0 0
        %3702 = vmatprep.subr.bf16.mxu0 0
        %3703 = vmatpush1.bf16.msra.mxu0 %v3684
        %3704 = vmatprep.subr.bf16.mxu0 0
        %3705 = vmatpush1.bf16.msra.mxu0 %v3683
        %3706 = vmatprep.subr.bf16.mxu0 0
        %3707 = vmatpush2.bf16.msra.mxu0 0
        %3708 = vmatprep.subr.bf16.mxu0 0
        %3709 = vmatpush2.bf16.msra.mxu0 0
        %3710 = vmatprep.subr.bf16.mxu0 0
        %3711 = vmatpush2.bf16.msra.mxu0 0
        %3712 = vmatprep.subr.bf16.mxu0 0
        %3713 = vmatpush2.bf16.msra.mxu0 0
        %3714 = vmatprep.subr.bf16.mxu0 0
        %3715 = vmatpush2.bf16.msra.mxu0 0
        %3716 = vmatprep.subr.bf16.mxu0 0
        %3717 = vmatpush2.bf16.msra.mxu0 0
        %3718 = vmatprep.subr.bf16.mxu0 0
        %3719 = vmatpush2.bf16.msra.mxu0 0
        %3720 = vmatprep.subr.bf16.mxu0 0
        %3721 = vmatpush2.bf16.msra.mxu0 0
        %3722 = vmatprep.mubr.bf16.mxu0 0
        %3723 = vmatmul.mubr.bf16.gmra.mxu0 %v3688
        %v3724 = vpop.f32.mrf.mxu0
        %v3725 = vadd.f32 0.0, %v3724
        %v3726 = vpop.f32.mrf.mxu0
        %v3727 = vpop.f32.mrf.mxu0
        %v3728 = vpop.f32.mrf.mxu0
        %3729 = vdwg.mxu0
        %v3734 = vunpack.c.l.b16 %v3625
        %v3735 = vunpack.c.l.b16 %v3626
        %v3736 = vunpack.c.l.b16 %v3627
        %v3737 = vunpack.c.l.b16 %v3628
        %v3738 = vpack.c.b16 %v3735, %v3734
        %v3739 = vpack.c.b16 %v3737, %v3736
        %3742 = vmatprep.subr.bf16.mxu0 0
        %3743 = vmatpush1.bf16.msra.mxu0 0
        %3744 = vmatprep.subr.bf16.mxu0 0
        %3745 = vmatpush1.bf16.msra.mxu0 0
        %3746 = vmatprep.subr.bf16.mxu0 0
        %3747 = vmatpush1.bf16.msra.mxu0 0
        %3748 = vmatprep.subr.bf16.mxu0 0
        %3749 = vmatpush1.bf16.msra.mxu0 0
        %3750 = vmatprep.subr.bf16.mxu0 0
        %3751 = vmatpush1.bf16.msra.mxu0 0
        %3752 = vmatprep.subr.bf16.mxu0 0
        %3753 = vmatpush1.bf16.msra.mxu0 0
        %3754 = vmatprep.subr.bf16.mxu0 0
        %3755 = vmatpush1.bf16.msra.mxu0 %v3739
        %3756 = vmatprep.subr.bf16.mxu0 0
        %3757 = vmatpush1.bf16.msra.mxu0 %v3738
        %3758 = vmatprep.subr.bf16.mxu0 0
        %3759 = vmatpush2.bf16.msra.mxu0 0
        %3760 = vmatprep.subr.bf16.mxu0 0
        %3761 = vmatpush2.bf16.msra.mxu0 0
        %3762 = vmatprep.subr.bf16.mxu0 0
        %3763 = vmatpush2.bf16.msra.mxu0 0
        %3764 = vmatprep.subr.bf16.mxu0 0
        %3765 = vmatpush2.bf16.msra.mxu0 0
        %3766 = vmatprep.subr.bf16.mxu0 0
        %3767 = vmatpush2.bf16.msra.mxu0 0
        %3768 = vmatprep.subr.bf16.mxu0 0
        %3769 = vmatpush2.bf16.msra.mxu0 0
        %3770 = vmatprep.subr.bf16.mxu0 0
        %3771 = vmatpush2.bf16.msra.mxu0 0
        %3772 = vmatprep.subr.bf16.mxu0 0
        %3773 = vmatpush2.bf16.msra.mxu0 0
        %3774 = vmatprep.mubr.bf16.mxu0 0
        %3775 = vmatmul.mubr.bf16.gmra.mxu0 %v3688
        %v3776 = vpop.f32.mrf.mxu0
        %v3777 = vadd.f32 0.0, %v3776
        %v3778 = vpop.f32.mrf.mxu0
        %v3779 = vpop.f32.mrf.mxu0
        %v3780 = vpop.f32.mrf.mxu0
        %3781 = vdwg.mxu0
        %v3786 = vunpack.c.l.b16 %v3629
        %v3787 = vunpack.c.l.b16 %v3630
        %v3788 = vunpack.c.l.b16 %v3631
        %v3789 = vunpack.c.l.b16 %v3632
        %v3790 = vpack.c.b16 %v3787, %v3786
        %v3791 = vpack.c.b16 %v3789, %v3788
        %3794 = vmatprep.subr.bf16.mxu0 0
        %3795 = vmatpush1.bf16.msra.mxu0 0
        %3796 = vmatprep.subr.bf16.mxu0 0
        %3797 = vmatpush1.bf16.msra.mxu0 0
        %3798 = vmatprep.subr.bf16.mxu0 0
        %3799 = vmatpush1.bf16.msra.mxu0 0
        %3800 = vmatprep.subr.bf16.mxu0 0
        %3801 = vmatpush1.bf16.msra.mxu0 0
        %3802 = vmatprep.subr.bf16.mxu0 0
        %3803 = vmatpush1.bf16.msra.mxu0 0
        %3804 = vmatprep.subr.bf16.mxu0 0
        %3805 = vmatpush1.bf16.msra.mxu0 0
        %3806 = vmatprep.subr.bf16.mxu0 0
        %3807 = vmatpush1.bf16.msra.mxu0 %v3791
        %3808 = vmatprep.subr.bf16.mxu0 0
        %3809 = vmatpush1.bf16.msra.mxu0 %v3790
        %3810 = vmatprep.subr.bf16.mxu0 0
        %3811 = vmatpush2.bf16.msra.mxu0 0
        %3812 = vmatprep.subr.bf16.mxu0 0
        %3813 = vmatpush2.bf16.msra.mxu0 0
        %3814 = vmatprep.subr.bf16.mxu0 0
        %3815 = vmatpush2.bf16.msra.mxu0 0
        %3816 = vmatprep.subr.bf16.mxu0 0
        %3817 = vmatpush2.bf16.msra.mxu0 0
        %3818 = vmatprep.subr.bf16.mxu0 0
        %3819 = vmatpush2.bf16.msra.mxu0 0
        %3820 = vmatprep.subr.bf16.mxu0 0
        %3821 = vmatpush2.bf16.msra.mxu0 0
        %3822 = vmatprep.subr.bf16.mxu0 0
        %3823 = vmatpush2.bf16.msra.mxu0 0
        %3824 = vmatprep.subr.bf16.mxu0 0
        %3825 = vmatpush2.bf16.msra.mxu0 0
        %3826 = vmatprep.mubr.bf16.mxu0 0
        %3827 = vmatmul.mubr.bf16.gmra.mxu0 %v3688
        %v3828 = vpop.f32.mrf.mxu0
        %v3829 = vadd.f32 0.0, %v3828
        %v3830 = vpop.f32.mrf.mxu0
        %v3831 = vpop.f32.mrf.mxu0
        %v3832 = vpop.f32.mrf.mxu0
        %3833 = vdwg.mxu0
        %v3838 = vunpack.c.l.b16 %v3633
        %v3839 = vunpack.c.l.b16 %v3634
        %v3840 = vunpack.c.l.b16 %v3635
        %v3841 = vunpack.c.l.b16 %v3636
        %v3842 = vpack.c.b16 %v3839, %v3838
        %v3843 = vpack.c.b16 %v3841, %v3840
        %3846 = vmatprep.subr.bf16.mxu0 0
        %3847 = vmatpush1.bf16.msra.mxu0 0
        %3848 = vmatprep.subr.bf16.mxu0 0
        %3849 = vmatpush1.bf16.msra.mxu0 0
        %3850 = vmatprep.subr.bf16.mxu0 0
        %3851 = vmatpush1.bf16.msra.mxu0 0
        %3852 = vmatprep.subr.bf16.mxu0 0
        %3853 = vmatpush1.bf16.msra.mxu0 0
        %3854 = vmatprep.subr.bf16.mxu0 0
        %3855 = vmatpush1.bf16.msra.mxu0 0
        %3856 = vmatprep.subr.bf16.mxu0 0
        %3857 = vmatpush1.bf16.msra.mxu0 0
        %3858 = vmatprep.subr.bf16.mxu0 0
        %3859 = vmatpush1.bf16.msra.mxu0 %v3843
        %3860 = vmatprep.subr.bf16.mxu0 0
        %3861 = vmatpush1.bf16.msra.mxu0 %v3842
        %3862 = vmatprep.subr.bf16.mxu0 0
        %3863 = vmatpush2.bf16.msra.mxu0 0
        %3864 = vmatprep.subr.bf16.mxu0 0
        %3865 = vmatpush2.bf16.msra.mxu0 0
        %3866 = vmatprep.subr.bf16.mxu0 0
        %3867 = vmatpush2.bf16.msra.mxu0 0
        %3868 = vmatprep.subr.bf16.mxu0 0
        %3869 = vmatpush2.bf16.msra.mxu0 0
        %3870 = vmatprep.subr.bf16.mxu0 0
        %3871 = vmatpush2.bf16.msra.mxu0 0
        %3872 = vmatprep.subr.bf16.mxu0 0
        %3873 = vmatpush2.bf16.msra.mxu0 0
        %3874 = vmatprep.subr.bf16.mxu0 0
        %3875 = vmatpush2.bf16.msra.mxu0 0
        %3876 = vmatprep.subr.bf16.mxu0 0
        %3877 = vmatpush2.bf16.msra.mxu0 0
        %3878 = vmatprep.mubr.bf16.mxu0 0
        %3879 = vmatmul.mubr.bf16.gmra.mxu0 %v3688
        %v3880 = vpop.f32.mrf.mxu0
        %v3881 = vadd.f32 0.0, %v3880
        %v3882 = vpop.f32.mrf.mxu0
        %v3883 = vpop.f32.mrf.mxu0
        %v3884 = vpop.f32.mrf.mxu0
        %3885 = vdwg.mxu0
        %v3890 = vunpack.c.l.b16 %v3637
        %v3891 = vunpack.c.l.b16 %v3638
        %v3892 = vunpack.c.l.b16 %v3639
        %v3893 = vunpack.c.l.b16 %v3640
        %v3894 = vpack.c.b16 %v3891, %v3890
        %v3895 = vpack.c.b16 %v3893, %v3892
        %v3899 = vsel %vm846, %v3673, 0
        %3901 = vmatprep.subr.bf16.mxu0 0
        %3902 = vmatpush1.bf16.msra.mxu0 0
        %3903 = vmatprep.subr.bf16.mxu0 0
        %3904 = vmatpush1.bf16.msra.mxu0 0
        %3905 = vmatprep.subr.bf16.mxu0 0
        %3906 = vmatpush1.bf16.msra.mxu0 0
        %3907 = vmatprep.subr.bf16.mxu0 0
        %3908 = vmatpush1.bf16.msra.mxu0 0
        %3909 = vmatprep.subr.bf16.mxu0 0
        %3910 = vmatpush1.bf16.msra.mxu0 0
        %3911 = vmatprep.subr.bf16.mxu0 0
        %3912 = vmatpush1.bf16.msra.mxu0 0
        %3913 = vmatprep.subr.bf16.mxu0 0
        %3914 = vmatpush1.bf16.msra.mxu0 %v3895
        %3915 = vmatprep.subr.bf16.mxu0 0
        %3916 = vmatpush1.bf16.msra.mxu0 %v3894
        %3917 = vmatprep.subr.bf16.mxu0 0
        %3918 = vmatpush2.bf16.msra.mxu0 0
        %3919 = vmatprep.subr.bf16.mxu0 0
        %3920 = vmatpush2.bf16.msra.mxu0 0
        %3921 = vmatprep.subr.bf16.mxu0 0
        %3922 = vmatpush2.bf16.msra.mxu0 0
        %3923 = vmatprep.subr.bf16.mxu0 0
        %3924 = vmatpush2.bf16.msra.mxu0 0
        %3925 = vmatprep.subr.bf16.mxu0 0
        %3926 = vmatpush2.bf16.msra.mxu0 0
        %3927 = vmatprep.subr.bf16.mxu0 0
        %3928 = vmatpush2.bf16.msra.mxu0 0
        %3929 = vmatprep.subr.bf16.mxu0 0
        %3930 = vmatpush2.bf16.msra.mxu0 0
        %3931 = vmatprep.subr.bf16.mxu0 0
        %3932 = vmatpush2.bf16.msra.mxu0 0
        %3933 = vmatprep.mubr.bf16.mxu0 0
        %3934 = vmatmul.mubr.bf16.gmra.mxu0 %v3899
        %v3935 = vpop.f32.mrf.mxu0
        %v3936 = vadd.f32 0.0, %v3935
        %v3937 = vpop.f32.mrf.mxu0
        %v3938 = vpop.f32.mrf.mxu0
        %v3939 = vpop.f32.mrf.mxu0
        %3940 = vdwg.mxu0
        %v3945 = vunpack.c.l.b16 %v3641
        %v3946 = vunpack.c.l.b16 %v3642
        %v3947 = vunpack.c.l.b16 %v3643
        %v3948 = vunpack.c.l.b16 %v3644
        %v3949 = vpack.c.b16 %v3946, %v3945
        %v3950 = vpack.c.b16 %v3948, %v3947
        %3953 = vmatprep.subr.bf16.mxu0 0
        %3954 = vmatpush1.bf16.msra.mxu0 0
        %3955 = vmatprep.subr.bf16.mxu0 0
        %3956 = vmatpush1.bf16.msra.mxu0 0
        %3957 = vmatprep.subr.bf16.mxu0 0
        %3958 = vmatpush1.bf16.msra.mxu0 0
        %3959 = vmatprep.subr.bf16.mxu0 0
        %3960 = vmatpush1.bf16.msra.mxu0 0
        %3961 = vmatprep.subr.bf16.mxu0 0
        %3962 = vmatpush1.bf16.msra.mxu0 0
        %3963 = vmatprep.subr.bf16.mxu0 0
        %3964 = vmatpush1.bf16.msra.mxu0 0
        %3965 = vmatprep.subr.bf16.mxu0 0
        %3966 = vmatpush1.bf16.msra.mxu0 %v3950
        %3967 = vmatprep.subr.bf16.mxu0 0
        %3968 = vmatpush1.bf16.msra.mxu0 %v3949
        %3969 = vmatprep.subr.bf16.mxu0 0
        %3970 = vmatpush2.bf16.msra.mxu0 0
        %3971 = vmatprep.subr.bf16.mxu0 0
        %3972 = vmatpush2.bf16.msra.mxu0 0
        %3973 = vmatprep.subr.bf16.mxu0 0
        %3974 = vmatpush2.bf16.msra.mxu0 0
        %3975 = vmatprep.subr.bf16.mxu0 0
        %3976 = vmatpush2.bf16.msra.mxu0 0
        %3977 = vmatprep.subr.bf16.mxu0 0
        %3978 = vmatpush2.bf16.msra.mxu0 0
        %3979 = vmatprep.subr.bf16.mxu0 0
        %3980 = vmatpush2.bf16.msra.mxu0 0
        %3981 = vmatprep.subr.bf16.mxu0 0
        %3982 = vmatpush2.bf16.msra.mxu0 0
        %3983 = vmatprep.subr.bf16.mxu0 0
        %3984 = vmatpush2.bf16.msra.mxu0 0
        %3985 = vmatprep.mubr.bf16.mxu0 0
        %3986 = vmatmul.mubr.bf16.gmra.mxu0 %v3899
        %v3987 = vpop.f32.mrf.mxu0
        %v3988 = vadd.f32 0.0, %v3987
        %v3989 = vpop.f32.mrf.mxu0
        %v3990 = vpop.f32.mrf.mxu0
        %v3991 = vpop.f32.mrf.mxu0
        %3992 = vdwg.mxu0
        %v3997 = vunpack.c.l.b16 %v3645
        %v3998 = vunpack.c.l.b16 %v3646
        %v3999 = vunpack.c.l.b16 %v3647
        %v4000 = vunpack.c.l.b16 %v3648
        %v4001 = vpack.c.b16 %v3998, %v3997
        %v4002 = vpack.c.b16 %v4000, %v3999
        %4005 = vmatprep.subr.bf16.mxu0 0
        %4006 = vmatpush1.bf16.msra.mxu0 0
        %4007 = vmatprep.subr.bf16.mxu0 0
        %4008 = vmatpush1.bf16.msra.mxu0 0
        %4009 = vmatprep.subr.bf16.mxu0 0
        %4010 = vmatpush1.bf16.msra.mxu0 0
        %4011 = vmatprep.subr.bf16.mxu0 0
        %4012 = vmatpush1.bf16.msra.mxu0 0
        %4013 = vmatprep.subr.bf16.mxu0 0
        %4014 = vmatpush1.bf16.msra.mxu0 0
        %4015 = vmatprep.subr.bf16.mxu0 0
        %4016 = vmatpush1.bf16.msra.mxu0 0
        %4017 = vmatprep.subr.bf16.mxu0 0
        %4018 = vmatpush1.bf16.msra.mxu0 %v4002
        %4019 = vmatprep.subr.bf16.mxu0 0
        %4020 = vmatpush1.bf16.msra.mxu0 %v4001
        %4021 = vmatprep.subr.bf16.mxu0 0
        %4022 = vmatpush2.bf16.msra.mxu0 0
        %4023 = vmatprep.subr.bf16.mxu0 0
        %4024 = vmatpush2.bf16.msra.mxu0 0
        %4025 = vmatprep.subr.bf16.mxu0 0
        %4026 = vmatpush2.bf16.msra.mxu0 0
        %4027 = vmatprep.subr.bf16.mxu0 0
        %4028 = vmatpush2.bf16.msra.mxu0 0
        %4029 = vmatprep.subr.bf16.mxu0 0
        %4030 = vmatpush2.bf16.msra.mxu0 0
        %4031 = vmatprep.subr.bf16.mxu0 0
        %4032 = vmatpush2.bf16.msra.mxu0 0
        %4033 = vmatprep.subr.bf16.mxu0 0
        %4034 = vmatpush2.bf16.msra.mxu0 0
        %4035 = vmatprep.subr.bf16.mxu0 0
        %4036 = vmatpush2.bf16.msra.mxu0 0
        %4037 = vmatprep.mubr.bf16.mxu0 0
        %4038 = vmatmul.mubr.bf16.gmra.mxu0 %v3899
        %v4039 = vpop.f32.mrf.mxu0
        %v4040 = vadd.f32 0.0, %v4039
        %v4041 = vpop.f32.mrf.mxu0
        %v4042 = vpop.f32.mrf.mxu0
        %v4043 = vpop.f32.mrf.mxu0
        %4044 = vdwg.mxu0
        %v4049 = vunpack.c.l.b16 %v3649
        %v4050 = vunpack.c.l.b16 %v3650
        %v4051 = vunpack.c.l.b16 %v3651
        %v4052 = vunpack.c.l.b16 %v3652
        %v4053 = vpack.c.b16 %v4050, %v4049
        %v4054 = vpack.c.b16 %v4052, %v4051
        %4057 = vmatprep.subr.bf16.mxu0 0
        %4058 = vmatpush1.bf16.msra.mxu0 0
        %4059 = vmatprep.subr.bf16.mxu0 0
        %4060 = vmatpush1.bf16.msra.mxu0 0
        %4061 = vmatprep.subr.bf16.mxu0 0
        %4062 = vmatpush1.bf16.msra.mxu0 0
        %4063 = vmatprep.subr.bf16.mxu0 0
        %4064 = vmatpush1.bf16.msra.mxu0 0
        %4065 = vmatprep.subr.bf16.mxu0 0
        %4066 = vmatpush1.bf16.msra.mxu0 0
        %4067 = vmatprep.subr.bf16.mxu0 0
        %4068 = vmatpush1.bf16.msra.mxu0 0
        %4069 = vmatprep.subr.bf16.mxu0 0
        %4070 = vmatpush1.bf16.msra.mxu0 %v4054
        %4071 = vmatprep.subr.bf16.mxu0 0
        %4072 = vmatpush1.bf16.msra.mxu0 %v4053
        %4073 = vmatprep.subr.bf16.mxu0 0
        %4074 = vmatpush2.bf16.msra.mxu0 0
        %4075 = vmatprep.subr.bf16.mxu0 0
        %4076 = vmatpush2.bf16.msra.mxu0 0
        %4077 = vmatprep.subr.bf16.mxu0 0
        %4078 = vmatpush2.bf16.msra.mxu0 0
        %4079 = vmatprep.subr.bf16.mxu0 0
        %4080 = vmatpush2.bf16.msra.mxu0 0
        %4081 = vmatprep.subr.bf16.mxu0 0
        %4082 = vmatpush2.bf16.msra.mxu0 0
        %4083 = vmatprep.subr.bf16.mxu0 0
        %4084 = vmatpush2.bf16.msra.mxu0 0
        %4085 = vmatprep.subr.bf16.mxu0 0
        %4086 = vmatpush2.bf16.msra.mxu0 0
        %4087 = vmatprep.subr.bf16.mxu0 0
        %4088 = vmatpush2.bf16.msra.mxu0 0
        %4089 = vmatprep.mubr.bf16.mxu0 0
        %4090 = vmatmul.mubr.bf16.gmra.mxu0 %v3899
        %v4091 = vpop.f32.mrf.mxu0
        %v4092 = vadd.f32 0.0, %v4091
        %v4093 = vpop.f32.mrf.mxu0
        %v4094 = vpop.f32.mrf.mxu0
        %v4095 = vpop.f32.mrf.mxu0
        %4096 = vdwg.mxu0
        %v4101 = vunpack.c.l.b16 %v3653
        %v4102 = vunpack.c.l.b16 %v3654
        %v4103 = vunpack.c.l.b16 %v3655
        %v4104 = vunpack.c.l.b16 %v3656
        %v4105 = vpack.c.b16 %v4102, %v4101
        %v4106 = vpack.c.b16 %v4104, %v4103
        %4109 = vmatprep.subr.bf16.mxu0 0
        %4110 = vmatpush1.bf16.msra.mxu0 0
        %4111 = vmatprep.subr.bf16.mxu0 0
        %4112 = vmatpush1.bf16.msra.mxu0 0
        %4113 = vmatprep.subr.bf16.mxu0 0
        %4114 = vmatpush1.bf16.msra.mxu0 0
        %4115 = vmatprep.subr.bf16.mxu0 0
        %4116 = vmatpush1.bf16.msra.mxu0 0
        %4117 = vmatprep.subr.bf16.mxu0 0
        %4118 = vmatpush1.bf16.msra.mxu0 0
        %4119 = vmatprep.subr.bf16.mxu0 0
        %4120 = vmatpush1.bf16.msra.mxu0 0
        %4121 = vmatprep.subr.bf16.mxu0 0
        %4122 = vmatpush1.bf16.msra.mxu0 %v4106
        %4123 = vmatprep.subr.bf16.mxu0 0
        %4124 = vmatpush1.bf16.msra.mxu0 %v4105
        %4125 = vmatprep.subr.bf16.mxu0 0
        %4126 = vmatpush2.bf16.msra.mxu0 0
        %4127 = vmatprep.subr.bf16.mxu0 0
        %4128 = vmatpush2.bf16.msra.mxu0 0
        %4129 = vmatprep.subr.bf16.mxu0 0
        %4130 = vmatpush2.bf16.msra.mxu0 0
        %4131 = vmatprep.subr.bf16.mxu0 0
        %4132 = vmatpush2.bf16.msra.mxu0 0
        %4133 = vmatprep.subr.bf16.mxu0 0
        %4134 = vmatpush2.bf16.msra.mxu0 0
        %4135 = vmatprep.subr.bf16.mxu0 0
        %4136 = vmatpush2.bf16.msra.mxu0 0
        %4137 = vmatprep.subr.bf16.mxu0 0
        %4138 = vmatpush2.bf16.msra.mxu0 0
        %4139 = vmatprep.subr.bf16.mxu0 0
        %4140 = vmatpush2.bf16.msra.mxu0 0
        %4141 = vmatprep.mubr.bf16.mxu0 0
        %4142 = vmatmul.mubr.bf16.gmra.mxu0 %v3899
        %v4143 = vpop.f32.mrf.mxu0
        %v4144 = vadd.f32 0.0, %v4143
        %v4145 = vpop.f32.mrf.mxu0
        %v4146 = vpop.f32.mrf.mxu0
        %v4147 = vpop.f32.mrf.mxu0
        %4148 = vdwg.mxu0
        %v4153 = vunpack.c.l.b16 %v3657
        %v4154 = vunpack.c.l.b16 %v3658
        %v4155 = vunpack.c.l.b16 %v3659
        %v4156 = vunpack.c.l.b16 %v3660
        %v4157 = vpack.c.b16 %v4154, %v4153
        %v4158 = vpack.c.b16 %v4156, %v4155
        %4161 = vmatprep.subr.bf16.mxu0 0
        %4162 = vmatpush1.bf16.msra.mxu0 0
        %4163 = vmatprep.subr.bf16.mxu0 0
        %4164 = vmatpush1.bf16.msra.mxu0 0
        %4165 = vmatprep.subr.bf16.mxu0 0
        %4166 = vmatpush1.bf16.msra.mxu0 0
        %4167 = vmatprep.subr.bf16.mxu0 0
        %4168 = vmatpush1.bf16.msra.mxu0 0
        %4169 = vmatprep.subr.bf16.mxu0 0
        %4170 = vmatpush1.bf16.msra.mxu0 0
        %4171 = vmatprep.subr.bf16.mxu0 0
        %4172 = vmatpush1.bf16.msra.mxu0 0
        %4173 = vmatprep.subr.bf16.mxu0 0
        %4174 = vmatpush1.bf16.msra.mxu0 %v4158
        %4175 = vmatprep.subr.bf16.mxu0 0
        %4176 = vmatpush1.bf16.msra.mxu0 %v4157
        %4177 = vmatprep.subr.bf16.mxu0 0
        %4178 = vmatpush2.bf16.msra.mxu0 0
        %4179 = vmatprep.subr.bf16.mxu0 0
        %4180 = vmatpush2.bf16.msra.mxu0 0
        %4181 = vmatprep.subr.bf16.mxu0 0
        %4182 = vmatpush2.bf16.msra.mxu0 0
        %4183 = vmatprep.subr.bf16.mxu0 0
        %4184 = vmatpush2.bf16.msra.mxu0 0
        %4185 = vmatprep.subr.bf16.mxu0 0
        %4186 = vmatpush2.bf16.msra.mxu0 0
        %4187 = vmatprep.subr.bf16.mxu0 0
        %4188 = vmatpush2.bf16.msra.mxu0 0
        %4189 = vmatprep.subr.bf16.mxu0 0
        %4190 = vmatpush2.bf16.msra.mxu0 0
        %4191 = vmatprep.subr.bf16.mxu0 0
        %4192 = vmatpush2.bf16.msra.mxu0 0
        %4193 = vmatprep.mubr.bf16.mxu0 0
        %4194 = vmatmul.mubr.bf16.gmra.mxu0 %v3899
        %v4195 = vpop.f32.mrf.mxu0
        %v4196 = vadd.f32 0.0, %v4195
        %v4197 = vpop.f32.mrf.mxu0
        %v4198 = vpop.f32.mrf.mxu0
        %v4199 = vpop.f32.mrf.mxu0
        %4200 = vdwg.mxu0
        %v4205 = vunpack.c.l.b16 %v3661
        %v4206 = vunpack.c.l.b16 %v3662
        %v4207 = vunpack.c.l.b16 %v3663
        %v4208 = vunpack.c.l.b16 %v3664
        %v4209 = vpack.c.b16 %v4206, %v4205
        %v4210 = vpack.c.b16 %v4208, %v4207
        %4213 = vmatprep.subr.bf16.mxu0 0
        %4214 = vmatpush1.bf16.msra.mxu0 0
        %4215 = vmatprep.subr.bf16.mxu0 0
        %4216 = vmatpush1.bf16.msra.mxu0 0
        %4217 = vmatprep.subr.bf16.mxu0 0
        %4218 = vmatpush1.bf16.msra.mxu0 0
        %4219 = vmatprep.subr.bf16.mxu0 0
        %4220 = vmatpush1.bf16.msra.mxu0 0
        %4221 = vmatprep.subr.bf16.mxu0 0
        %4222 = vmatpush1.bf16.msra.mxu0 0
        %4223 = vmatprep.subr.bf16.mxu0 0
        %4224 = vmatpush1.bf16.msra.mxu0 0
        %4225 = vmatprep.subr.bf16.mxu0 0
        %4226 = vmatpush1.bf16.msra.mxu0 %v4210
        %4227 = vmatprep.subr.bf16.mxu0 0
        %4228 = vmatpush1.bf16.msra.mxu0 %v4209
        %4229 = vmatprep.subr.bf16.mxu0 0
        %4230 = vmatpush2.bf16.msra.mxu0 0
        %4231 = vmatprep.subr.bf16.mxu0 0
        %4232 = vmatpush2.bf16.msra.mxu0 0
        %4233 = vmatprep.subr.bf16.mxu0 0
        %4234 = vmatpush2.bf16.msra.mxu0 0
        %4235 = vmatprep.subr.bf16.mxu0 0
        %4236 = vmatpush2.bf16.msra.mxu0 0
        %4237 = vmatprep.subr.bf16.mxu0 0
        %4238 = vmatpush2.bf16.msra.mxu0 0
        %4239 = vmatprep.subr.bf16.mxu0 0
        %4240 = vmatpush2.bf16.msra.mxu0 0
        %4241 = vmatprep.subr.bf16.mxu0 0
        %4242 = vmatpush2.bf16.msra.mxu0 0
        %4243 = vmatprep.subr.bf16.mxu0 0
        %4244 = vmatpush2.bf16.msra.mxu0 0
        %4245 = vmatprep.mubr.bf16.mxu0 0
        %4246 = vmatmul.mubr.bf16.gmra.mxu0 %v3899
        %v4247 = vpop.f32.mrf.mxu0
        %v4248 = vadd.f32 0.0, %v4247
        %v4249 = vpop.f32.mrf.mxu0
        %v4250 = vpop.f32.mrf.mxu0
        %v4251 = vpop.f32.mrf.mxu0
        %4252 = vdwg.mxu0
        %v4257 = vunpack.c.l.b16 %v3665
        %v4258 = vunpack.c.l.b16 %v3666
        %v4259 = vunpack.c.l.b16 %v3667
        %v4260 = vunpack.c.l.b16 %v3668
        %v4261 = vpack.c.b16 %v4258, %v4257
        %v4262 = vpack.c.b16 %v4260, %v4259
        %4265 = vmatprep.subr.bf16.mxu0 0
        %4266 = vmatpush1.bf16.msra.mxu0 0
        %4267 = vmatprep.subr.bf16.mxu0 0
        %4268 = vmatpush1.bf16.msra.mxu0 0
        %4269 = vmatprep.subr.bf16.mxu0 0
        %4270 = vmatpush1.bf16.msra.mxu0 0
        %4271 = vmatprep.subr.bf16.mxu0 0
        %4272 = vmatpush1.bf16.msra.mxu0 0
        %4273 = vmatprep.subr.bf16.mxu0 0
        %4274 = vmatpush1.bf16.msra.mxu0 0
        %4275 = vmatprep.subr.bf16.mxu0 0
        %4276 = vmatpush1.bf16.msra.mxu0 0
        %4277 = vmatprep.subr.bf16.mxu0 0
        %4278 = vmatpush1.bf16.msra.mxu0 %v4262
        %4279 = vmatprep.subr.bf16.mxu0 0
        %4280 = vmatpush1.bf16.msra.mxu0 %v4261
        %4281 = vmatprep.subr.bf16.mxu0 0
        %4282 = vmatpush2.bf16.msra.mxu0 0
        %4283 = vmatprep.subr.bf16.mxu0 0
        %4284 = vmatpush2.bf16.msra.mxu0 0
        %4285 = vmatprep.subr.bf16.mxu0 0
        %4286 = vmatpush2.bf16.msra.mxu0 0
        %4287 = vmatprep.subr.bf16.mxu0 0
        %4288 = vmatpush2.bf16.msra.mxu0 0
        %4289 = vmatprep.subr.bf16.mxu0 0
        %4290 = vmatpush2.bf16.msra.mxu0 0
        %4291 = vmatprep.subr.bf16.mxu0 0
        %4292 = vmatpush2.bf16.msra.mxu0 0
        %4293 = vmatprep.subr.bf16.mxu0 0
        %4294 = vmatpush2.bf16.msra.mxu0 0
        %4295 = vmatprep.subr.bf16.mxu0 0
        %4296 = vmatpush2.bf16.msra.mxu0 0
        %4297 = vmatprep.mubr.bf16.mxu0 0
        %4298 = vmatmul.mubr.bf16.gmra.mxu0 %v3899
        %v4299 = vpop.f32.mrf.mxu0
        %v4300 = vadd.f32 0.0, %v4299
        %v4301 = vpop.f32.mrf.mxu0
        %v4302 = vpop.f32.mrf.mxu0
        %v4303 = vpop.f32.mrf.mxu0
        %4304 = vdwg.mxu0
        %v4305 = vmul.f32 %v3725, 0.35355338
        %v4306 = vmul.f32 %v3777, 0.35355338
        %v4307 = vmul.f32 %v3829, 0.35355338
        %v4308 = vmul.f32 %v3881, 0.35355338
        %v4309 = vpack.c.bf16 %v4305, %v4305
        %v4310 = vpack.c.bf16 %v4306, %v4306
        %v4311 = vpack.c.bf16 %v4307, %v4307
        %v4312 = vpack.c.bf16 %v4308, %v4308
        %v4313 = vpack.c.bf16 %v3936, %v3936
        %v4314 = vpack.c.bf16 %v3988, %v3988
        %v4315 = vpack.c.bf16 %v4040, %v4040
        %v4316 = vpack.c.bf16 %v4092, %v4092
        %v4318 = vsel %vm1474, %v4309, 0
        %v4321 = vsel %vm1474, %v4313, 0
        %4323 = vmatprep.subr.bf16.mxu0 0
        %4324 = vmatpush1.bf16.xpose.msra.mxu0 0
        %4325 = vmatprep.subr.bf16.mxu0 0
        %4326 = vmatpush1.bf16.xpose.msra.mxu0 0
        %4327 = vmatprep.subr.bf16.mxu0 0
        %4328 = vmatpush1.bf16.xpose.msra.mxu0 0
        %4329 = vmatprep.subr.bf16.mxu0 0
        %4330 = vmatpush1.bf16.xpose.msra.mxu0 0
        %4331 = vmatprep.subr.bf16.mxu0 0
        %4332 = vmatpush1.bf16.xpose.msra.mxu0 0
        %4333 = vmatprep.subr.bf16.mxu0 0
        %4334 = vmatpush1.bf16.xpose.msra.mxu0 0
        %4335 = vmatprep.subr.bf16.mxu0 0
        %4336 = vmatpush1.bf16.xpose.msra.mxu0 0
        %4337 = vmatprep.subr.bf16.mxu0 0
        %4338 = vmatpush1.bf16.xpose.msra.mxu0 %v4321
        %4339 = vmatprep.subr.bf16.mxu0 0
        %4340 = vmatpush2.bf16.xpose.msra.mxu0 0
        %4341 = vmatprep.subr.bf16.mxu0 0
        %4342 = vmatpush2.bf16.xpose.msra.mxu0 0
        %4343 = vmatprep.subr.bf16.mxu0 0
        %4344 = vmatpush2.bf16.xpose.msra.mxu0 0
        %4345 = vmatprep.subr.bf16.mxu0 0
        %4346 = vmatpush2.bf16.xpose.msra.mxu0 0
        %4347 = vmatprep.subr.bf16.mxu0 0
        %4348 = vmatpush2.bf16.xpose.msra.mxu0 0
        %4349 = vmatprep.subr.bf16.mxu0 0
        %4350 = vmatpush2.bf16.xpose.msra.mxu0 0
        %4351 = vmatprep.subr.bf16.mxu0 0
        %4352 = vmatpush2.bf16.xpose.msra.mxu0 0
        %4353 = vmatprep.subr.bf16.mxu0 0
        %4354 = vmatpush2.bf16.xpose.msra.mxu0 0
        %4355 = vmatprep.mubr.bf16.mxu0 0
        %4356 = vmatmul.mubr.bf16.gmra.mxu0 %v4318
        %v4357 = vpop.f32.mrf.mxu0
        %v4358 = vadd.f32 0.0, %v4357
        %v4359 = vpop.f32.mrf.mxu0
        %v4360 = vpop.f32.mrf.mxu0
        %v4361 = vpop.f32.mrf.mxu0
        %4362 = vdwg.mxu0
        %v4364 = vsel %vm1474, %v4310, 0
        %v4367 = vsel %vm1474, %v4314, 0
        %4369 = vmatprep.subr.bf16.mxu0 0
        %4370 = vmatpush1.bf16.xpose.msra.mxu0 0
        %4371 = vmatprep.subr.bf16.mxu0 0
        %4372 = vmatpush1.bf16.xpose.msra.mxu0 0
        %4373 = vmatprep.subr.bf16.mxu0 0
        %4374 = vmatpush1.bf16.xpose.msra.mxu0 0
        %4375 = vmatprep.subr.bf16.mxu0 0
        %4376 = vmatpush1.bf16.xpose.msra.mxu0 0
        %4377 = vmatprep.subr.bf16.mxu0 0
        %4378 = vmatpush1.bf16.xpose.msra.mxu0 0
        %4379 = vmatprep.subr.bf16.mxu0 0
        %4380 = vmatpush1.bf16.xpose.msra.mxu0 0
        %4381 = vmatprep.subr.bf16.mxu0 0
        %4382 = vmatpush1.bf16.xpose.msra.mxu0 0
        %4383 = vmatprep.subr.bf16.mxu0 0
        %4384 = vmatpush1.bf16.xpose.msra.mxu0 %v4367
        %4385 = vmatprep.subr.bf16.mxu0 0
        %4386 = vmatpush2.bf16.xpose.msra.mxu0 0
        %4387 = vmatprep.subr.bf16.mxu0 0
        %4388 = vmatpush2.bf16.xpose.msra.mxu0 0
        %4389 = vmatprep.subr.bf16.mxu0 0
        %4390 = vmatpush2.bf16.xpose.msra.mxu0 0
        %4391 = vmatprep.subr.bf16.mxu0 0
        %4392 = vmatpush2.bf16.xpose.msra.mxu0 0
        %4393 = vmatprep.subr.bf16.mxu0 0
        %4394 = vmatpush2.bf16.xpose.msra.mxu0 0
        %4395 = vmatprep.subr.bf16.mxu0 0
        %4396 = vmatpush2.bf16.xpose.msra.mxu0 0
        %4397 = vmatprep.subr.bf16.mxu0 0
        %4398 = vmatpush2.bf16.xpose.msra.mxu0 0
        %4399 = vmatprep.subr.bf16.mxu0 0
        %4400 = vmatpush2.bf16.xpose.msra.mxu0 0
        %4401 = vmatprep.mubr.bf16.mxu0 0
        %4402 = vmatmul.mubr.bf16.gmra.mxu0 %v4364
        %v4403 = vpop.f32.mrf.mxu0
        %v4404 = vadd.f32 0.0, %v4403
        %v4405 = vpop.f32.mrf.mxu0
        %v4406 = vpop.f32.mrf.mxu0
        %v4407 = vpop.f32.mrf.mxu0
        %4408 = vdwg.mxu0
        %v4410 = vsel %vm1474, %v4311, 0
        %v4413 = vsel %vm1474, %v4315, 0
        %4415 = vmatprep.subr.bf16.mxu0 0
        %4416 = vmatpush1.bf16.xpose.msra.mxu0 0
        %4417 = vmatprep.subr.bf16.mxu0 0
        %4418 = vmatpush1.bf16.xpose.msra.mxu0 0
        %4419 = vmatprep.subr.bf16.mxu0 0
        %4420 = vmatpush1.bf16.xpose.msra.mxu0 0
        %4421 = vmatprep.subr.bf16.mxu0 0
        %4422 = vmatpush1.bf16.xpose.msra.mxu0 0
        %4423 = vmatprep.subr.bf16.mxu0 0
        %4424 = vmatpush1.bf16.xpose.msra.mxu0 0
        %4425 = vmatprep.subr.bf16.mxu0 0
        %4426 = vmatpush1.bf16.xpose.msra.mxu0 0
        %4427 = vmatprep.subr.bf16.mxu0 0
        %4428 = vmatpush1.bf16.xpose.msra.mxu0 0
        %4429 = vmatprep.subr.bf16.mxu0 0
        %4430 = vmatpush1.bf16.xpose.msra.mxu0 %v4413
        %4431 = vmatprep.subr.bf16.mxu0 0
        %4432 = vmatpush2.bf16.xpose.msra.mxu0 0
        %4433 = vmatprep.subr.bf16.mxu0 0
        %4434 = vmatpush2.bf16.xpose.msra.mxu0 0
        %4435 = vmatprep.subr.bf16.mxu0 0
        %4436 = vmatpush2.bf16.xpose.msra.mxu0 0
        %4437 = vmatprep.subr.bf16.mxu0 0
        %4438 = vmatpush2.bf16.xpose.msra.mxu0 0
        %4439 = vmatprep.subr.bf16.mxu0 0
        %4440 = vmatpush2.bf16.xpose.msra.mxu0 0
        %4441 = vmatprep.subr.bf16.mxu0 0
        %4442 = vmatpush2.bf16.xpose.msra.mxu0 0
        %4443 = vmatprep.subr.bf16.mxu0 0
        %4444 = vmatpush2.bf16.xpose.msra.mxu0 0
        %4445 = vmatprep.subr.bf16.mxu0 0
        %4446 = vmatpush2.bf16.xpose.msra.mxu0 0
        %4447 = vmatprep.mubr.bf16.mxu0 0
        %4448 = vmatmul.mubr.bf16.gmra.mxu0 %v4410
        %v4449 = vpop.f32.mrf.mxu0
        %v4450 = vadd.f32 0.0, %v4449
        %v4451 = vpop.f32.mrf.mxu0
        %v4452 = vpop.f32.mrf.mxu0
        %v4453 = vpop.f32.mrf.mxu0
        %4454 = vdwg.mxu0
        %v4456 = vsel %vm1474, %v4312, 0
        %v4459 = vsel %vm1474, %v4316, 0
        %4461 = vmatprep.subr.bf16.mxu0 0
        %4462 = vmatpush1.bf16.xpose.msra.mxu0 0
        %4463 = vmatprep.subr.bf16.mxu0 0
        %4464 = vmatpush1.bf16.xpose.msra.mxu0 0
        %4465 = vmatprep.subr.bf16.mxu0 0
        %4466 = vmatpush1.bf16.xpose.msra.mxu0 0
        %4467 = vmatprep.subr.bf16.mxu0 0
        %4468 = vmatpush1.bf16.xpose.msra.mxu0 0
        %4469 = vmatprep.subr.bf16.mxu0 0
        %4470 = vmatpush1.bf16.xpose.msra.mxu0 0
        %4471 = vmatprep.subr.bf16.mxu0 0
        %4472 = vmatpush1.bf16.xpose.msra.mxu0 0
        %4473 = vmatprep.subr.bf16.mxu0 0
        %4474 = vmatpush1.bf16.xpose.msra.mxu0 0
        %4475 = vmatprep.subr.bf16.mxu0 0
        %4476 = vmatpush1.bf16.xpose.msra.mxu0 %v4459
        %4477 = vmatprep.subr.bf16.mxu0 0
        %4478 = vmatpush2.bf16.xpose.msra.mxu0 0
        %4479 = vmatprep.subr.bf16.mxu0 0
        %4480 = vmatpush2.bf16.xpose.msra.mxu0 0
        %4481 = vmatprep.subr.bf16.mxu0 0
        %4482 = vmatpush2.bf16.xpose.msra.mxu0 0
        %4483 = vmatprep.subr.bf16.mxu0 0
        %4484 = vmatpush2.bf16.xpose.msra.mxu0 0
        %4485 = vmatprep.subr.bf16.mxu0 0
        %4486 = vmatpush2.bf16.xpose.msra.mxu0 0
        %4487 = vmatprep.subr.bf16.mxu0 0
        %4488 = vmatpush2.bf16.xpose.msra.mxu0 0
        %4489 = vmatprep.subr.bf16.mxu0 0
        %4490 = vmatpush2.bf16.xpose.msra.mxu0 0
        %4491 = vmatprep.subr.bf16.mxu0 0
        %4492 = vmatpush2.bf16.xpose.msra.mxu0 0
        %4493 = vmatprep.mubr.bf16.mxu0 0
        %4494 = vmatmul.mubr.bf16.gmra.mxu0 %v4456
        %v4495 = vpop.f32.mrf.mxu0
        %v4496 = vadd.f32 0.0, %v4495
        %v4497 = vpop.f32.mrf.mxu0
        %v4498 = vpop.f32.mrf.mxu0
        %v4499 = vpop.f32.mrf.mxu0
        %4500 = vdwg.mxu0
        %v4501 = vsel %vm1474, %v4358, -inf
        %4502 = vmax.xlane.f32.xlu0 %v4501
        %v4503 = vpop.xlane.xlu0 %4502
        %v4504 = vsel %vm1474, %v4404, -inf
        %4505 = vmax.xlane.f32.xlu0 %v4504
        %v4506 = vpop.xlane.xlu0 %4505
        %v4507 = vsel %vm1474, %v4450, -inf
        %4508 = vmax.xlane.f32.xlu0 %v4507
        %v4509 = vpop.xlane.xlu0 %4508
        %v4510 = vsel %vm1474, %v4496, -inf
        %4511 = vmax.xlane.f32.xlu0 %v4510
        %v4512 = vpop.xlane.xlu0 %4511
        %v4513 = vsub.f32 %v4358, %v4503
        %v4514 = vsub.f32 %v4404, %v4506
        %v4515 = vsub.f32 %v4450, %v4509
        %v4516 = vsub.f32 %v4496, %v4512
        %v4517 = vmul.f32 %v4513, 1.442695
        %v4518 = vpow.pop %v4517
        %v4519 = vmul.f32 %v4514, 1.442695
        %v4520 = vpow.pop %v4519
        %v4521 = vmul.f32 %v4515, 1.442695
        %v4522 = vpow.pop %v4521
        %v4523 = vmul.f32 %v4516, 1.442695
        %v4524 = vpow.pop %v4523
        %v4525 = vsel %vm1474, %v4518, 0.0
        %4526 = vadd.xlane.f32.xlu0 %v4525
        %v4527 = vpop.xlane.xlu0 %4526
        %v4528 = vsel %vm1474, %v4520, 0.0
        %4529 = vadd.xlane.f32.xlu0 %v4528
        %v4530 = vpop.xlane.xlu0 %4529
        %v4531 = vsel %vm1474, %v4522, 0.0
        %4532 = vadd.xlane.f32.xlu0 %v4531
        %v4533 = vpop.xlane.xlu0 %4532
        %v4534 = vsel %vm1474, %v4524, 0.0
        %4535 = vadd.xlane.f32.xlu0 %v4534
        %v4536 = vpop.xlane.xlu0 %4535
        %v4537 = vrcp.pop %v4527
        %v4538 = vrcp.pop %v4530
        %v4539 = vrcp.pop %v4533
        %v4540 = vrcp.pop %v4536
        %v4541 = vmul.f32 %v4518, %v4537
        %v4542 = vmul.f32 %v4520, %v4538
        %v4543 = vmul.f32 %v4522, %v4539
        %v4544 = vmul.f32 %v4524, %v4540
        %v4545 = vpack.c.bf16 %v4541, %v4541
        %v4546 = vpack.c.bf16 %v4542, %v4542
        %v4547 = vpack.c.bf16 %v4543, %v4543
        %v4548 = vpack.c.bf16 %v4544, %v4544
        %v4549 = vpack.c.bf16 %v4144, %v4144
        %v4550 = vpack.c.bf16 %v4196, %v4196
        %v4551 = vpack.c.bf16 %v4248, %v4248
        %v4552 = vpack.c.bf16 %v4300, %v4300
        %v4554 = vsel %vm1474, %v4545, 0
        %v4557 = vsel %vm1714, %v4549, 0
        %4559 = vmatprep.subr.bf16.mxu0 0
        %4560 = vmatpush1.bf16.msra.mxu0 0
        %4561 = vmatprep.subr.bf16.mxu0 0
        %4562 = vmatpush1.bf16.msra.mxu0 0
        %4563 = vmatprep.subr.bf16.mxu0 0
        %4564 = vmatpush1.bf16.msra.mxu0 0
        %4565 = vmatprep.subr.bf16.mxu0 0
        %4566 = vmatpush1.bf16.msra.mxu0 0
        %4567 = vmatprep.subr.bf16.mxu0 0
        %4568 = vmatpush1.bf16.msra.mxu0 0
        %4569 = vmatprep.subr.bf16.mxu0 0
        %4570 = vmatpush1.bf16.msra.mxu0 0
        %4571 = vmatprep.subr.bf16.mxu0 0
        %4572 = vmatpush1.bf16.msra.mxu0 0
        %4573 = vmatprep.subr.bf16.mxu0 0
        %4574 = vmatpush1.bf16.msra.mxu0 %v4557
        %4575 = vmatprep.subr.bf16.mxu0 0
        %4576 = vmatpush2.bf16.msra.mxu0 0
        %4577 = vmatprep.subr.bf16.mxu0 0
        %4578 = vmatpush2.bf16.msra.mxu0 0
        %4579 = vmatprep.subr.bf16.mxu0 0
        %4580 = vmatpush2.bf16.msra.mxu0 0
        %4581 = vmatprep.subr.bf16.mxu0 0
        %4582 = vmatpush2.bf16.msra.mxu0 0
        %4583 = vmatprep.subr.bf16.mxu0 0
        %4584 = vmatpush2.bf16.msra.mxu0 0
        %4585 = vmatprep.subr.bf16.mxu0 0
        %4586 = vmatpush2.bf16.msra.mxu0 0
        %4587 = vmatprep.subr.bf16.mxu0 0
        %4588 = vmatpush2.bf16.msra.mxu0 0
        %4589 = vmatprep.subr.bf16.mxu0 0
        %4590 = vmatpush2.bf16.msra.mxu0 0
        %4591 = vmatprep.mubr.bf16.mxu0 0
        %4592 = vmatmul.mubr.bf16.gmra.mxu0 %v4554
        %v4593 = vpop.f32.mrf.mxu0
        %v4594 = vadd.f32 0.0, %v4593
        %v4595 = vpop.f32.mrf.mxu0
        %v4596 = vpop.f32.mrf.mxu0
        %v4597 = vpop.f32.mrf.mxu0
        %4598 = vdwg.mxu0
        %v4600 = vsel %vm1474, %v4546, 0
        %v4603 = vsel %vm1714, %v4550, 0
        %4605 = vmatprep.subr.bf16.mxu0 0
        %4606 = vmatpush1.bf16.msra.mxu0 0
        %4607 = vmatprep.subr.bf16.mxu0 0
        %4608 = vmatpush1.bf16.msra.mxu0 0
        %4609 = vmatprep.subr.bf16.mxu0 0
        %4610 = vmatpush1.bf16.msra.mxu0 0
        %4611 = vmatprep.subr.bf16.mxu0 0
        %4612 = vmatpush1.bf16.msra.mxu0 0
        %4613 = vmatprep.subr.bf16.mxu0 0
        %4614 = vmatpush1.bf16.msra.mxu0 0
        %4615 = vmatprep.subr.bf16.mxu0 0
        %4616 = vmatpush1.bf16.msra.mxu0 0
        %4617 = vmatprep.subr.bf16.mxu0 0
        %4618 = vmatpush1.bf16.msra.mxu0 0
        %4619 = vmatprep.subr.bf16.mxu0 0
        %4620 = vmatpush1.bf16.msra.mxu0 %v4603
        %4621 = vmatprep.subr.bf16.mxu0 0
        %4622 = vmatpush2.bf16.msra.mxu0 0
        %4623 = vmatprep.subr.bf16.mxu0 0
        %4624 = vmatpush2.bf16.msra.mxu0 0
        %4625 = vmatprep.subr.bf16.mxu0 0
        %4626 = vmatpush2.bf16.msra.mxu0 0
        %4627 = vmatprep.subr.bf16.mxu0 0
        %4628 = vmatpush2.bf16.msra.mxu0 0
        %4629 = vmatprep.subr.bf16.mxu0 0
        %4630 = vmatpush2.bf16.msra.mxu0 0
        %4631 = vmatprep.subr.bf16.mxu0 0
        %4632 = vmatpush2.bf16.msra.mxu0 0
        %4633 = vmatprep.subr.bf16.mxu0 0
        %4634 = vmatpush2.bf16.msra.mxu0 0
        %4635 = vmatprep.subr.bf16.mxu0 0
        %4636 = vmatpush2.bf16.msra.mxu0 0
        %4637 = vmatprep.mubr.bf16.mxu0 0
        %4638 = vmatmul.mubr.bf16.gmra.mxu0 %v4600
        %v4639 = vpop.f32.mrf.mxu0
        %v4640 = vadd.f32 0.0, %v4639
        %v4641 = vpop.f32.mrf.mxu0
        %v4642 = vpop.f32.mrf.mxu0
        %v4643 = vpop.f32.mrf.mxu0
        %4644 = vdwg.mxu0
        %v4646 = vsel %vm1474, %v4547, 0
        %v4649 = vsel %vm1714, %v4551, 0
        %4651 = vmatprep.subr.bf16.mxu0 0
        %4652 = vmatpush1.bf16.msra.mxu0 0
        %4653 = vmatprep.subr.bf16.mxu0 0
        %4654 = vmatpush1.bf16.msra.mxu0 0
        %4655 = vmatprep.subr.bf16.mxu0 0
        %4656 = vmatpush1.bf16.msra.mxu0 0
        %4657 = vmatprep.subr.bf16.mxu0 0
        %4658 = vmatpush1.bf16.msra.mxu0 0
        %4659 = vmatprep.subr.bf16.mxu0 0
        %4660 = vmatpush1.bf16.msra.mxu0 0
        %4661 = vmatprep.subr.bf16.mxu0 0
        %4662 = vmatpush1.bf16.msra.mxu0 0
        %4663 = vmatprep.subr.bf16.mxu0 0
        %4664 = vmatpush1.bf16.msra.mxu0 0
        %4665 = vmatprep.subr.bf16.mxu0 0
        %4666 = vmatpush1.bf16.msra.mxu0 %v4649
        %4667 = vmatprep.subr.bf16.mxu0 0
        %4668 = vmatpush2.bf16.msra.mxu0 0
        %4669 = vmatprep.subr.bf16.mxu0 0
        %4670 = vmatpush2.bf16.msra.mxu0 0
        %4671 = vmatprep.subr.bf16.mxu0 0
        %4672 = vmatpush2.bf16.msra.mxu0 0
        %4673 = vmatprep.subr.bf16.mxu0 0
        %4674 = vmatpush2.bf16.msra.mxu0 0
        %4675 = vmatprep.subr.bf16.mxu0 0
        %4676 = vmatpush2.bf16.msra.mxu0 0
        %4677 = vmatprep.subr.bf16.mxu0 0
        %4678 = vmatpush2.bf16.msra.mxu0 0
        %4679 = vmatprep.subr.bf16.mxu0 0
        %4680 = vmatpush2.bf16.msra.mxu0 0
        %4681 = vmatprep.subr.bf16.mxu0 0
        %4682 = vmatpush2.bf16.msra.mxu0 0
        %4683 = vmatprep.mubr.bf16.mxu0 0
        %4684 = vmatmul.mubr.bf16.gmra.mxu0 %v4646
        %v4685 = vpop.f32.mrf.mxu0
        %v4686 = vadd.f32 0.0, %v4685
        %v4687 = vpop.f32.mrf.mxu0
        %v4688 = vpop.f32.mrf.mxu0
        %v4689 = vpop.f32.mrf.mxu0
        %4690 = vdwg.mxu0
        %v4692 = vsel %vm1474, %v4548, 0
        %v4695 = vsel %vm1714, %v4552, 0
        %4697 = vmatprep.subr.bf16.mxu0 0
        %4698 = vmatpush1.bf16.msra.mxu0 0
        %4699 = vmatprep.subr.bf16.mxu0 0
        %4700 = vmatpush1.bf16.msra.mxu0 0
        %4701 = vmatprep.subr.bf16.mxu0 0
        %4702 = vmatpush1.bf16.msra.mxu0 0
        %4703 = vmatprep.subr.bf16.mxu0 0
        %4704 = vmatpush1.bf16.msra.mxu0 0
        %4705 = vmatprep.subr.bf16.mxu0 0
        %4706 = vmatpush1.bf16.msra.mxu0 0
        %4707 = vmatprep.subr.bf16.mxu0 0
        %4708 = vmatpush1.bf16.msra.mxu0 0
        %4709 = vmatprep.subr.bf16.mxu0 0
        %4710 = vmatpush1.bf16.msra.mxu0 0
        %4711 = vmatprep.subr.bf16.mxu0 0
        %4712 = vmatpush1.bf16.msra.mxu0 %v4695
        %4713 = vmatprep.subr.bf16.mxu0 0
        %4714 = vmatpush2.bf16.msra.mxu0 0
        %4715 = vmatprep.subr.bf16.mxu0 0
        %4716 = vmatpush2.bf16.msra.mxu0 0
        %4717 = vmatprep.subr.bf16.mxu0 0
        %4718 = vmatpush2.bf16.msra.mxu0 0
        %4719 = vmatprep.subr.bf16.mxu0 0
        %4720 = vmatpush2.bf16.msra.mxu0 0
        %4721 = vmatprep.subr.bf16.mxu0 0
        %4722 = vmatpush2.bf16.msra.mxu0 0
        %4723 = vmatprep.subr.bf16.mxu0 0
        %4724 = vmatpush2.bf16.msra.mxu0 0
        %4725 = vmatprep.subr.bf16.mxu0 0
        %4726 = vmatpush2.bf16.msra.mxu0 0
        %4727 = vmatprep.subr.bf16.mxu0 0
        %4728 = vmatpush2.bf16.msra.mxu0 0
        %4729 = vmatprep.mubr.bf16.mxu0 0
        %4730 = vmatmul.mubr.bf16.gmra.mxu0 %v4692
        %v4731 = vpop.f32.mrf.mxu0
        %v4732 = vadd.f32 0.0, %v4731
        %v4733 = vpop.f32.mrf.mxu0
        %v4734 = vpop.f32.mrf.mxu0
        %v4735 = vpop.f32.mrf.mxu0
        %4736 = vdwg.mxu0
        %v4737 = vpack.c.bf16 %v4594, %v4594
        %v4738 = vpack.c.bf16 %v4640, %v4640
        %v4739 = vpack.c.bf16 %v4686, %v4686
        %v4740 = vpack.c.bf16 %v4732, %v4732
        %v4742 = vsel %vm1474, %v4737, 0
        %v4745 = vsel %vm1714, %v3669, 0
        %4747 = vmatprep.subr.bf16.mxu0 0
        %4748 = vmatpush1.bf16.msra.mxu0 0
        %4749 = vmatprep.subr.bf16.mxu0 0
        %4750 = vmatpush1.bf16.msra.mxu0 0
        %4751 = vmatprep.subr.bf16.mxu0 0
        %4752 = vmatpush1.bf16.msra.mxu0 0
        %4753 = vmatprep.subr.bf16.mxu0 0
        %4754 = vmatpush1.bf16.msra.mxu0 0
        %4755 = vmatprep.subr.bf16.mxu0 0
        %4756 = vmatpush1.bf16.msra.mxu0 0
        %4757 = vmatprep.subr.bf16.mxu0 0
        %4758 = vmatpush1.bf16.msra.mxu0 0
        %4759 = vmatprep.subr.bf16.mxu0 0
        %4760 = vmatpush1.bf16.msra.mxu0 0
        %4761 = vmatprep.subr.bf16.mxu0 0
        %4762 = vmatpush1.bf16.msra.mxu0 %v4745
        %4763 = vmatprep.subr.bf16.mxu0 0
        %4764 = vmatpush2.bf16.msra.mxu0 0
        %4765 = vmatprep.subr.bf16.mxu0 0
        %4766 = vmatpush2.bf16.msra.mxu0 0
        %4767 = vmatprep.subr.bf16.mxu0 0
        %4768 = vmatpush2.bf16.msra.mxu0 0
        %4769 = vmatprep.subr.bf16.mxu0 0
        %4770 = vmatpush2.bf16.msra.mxu0 0
        %4771 = vmatprep.subr.bf16.mxu0 0
        %4772 = vmatpush2.bf16.msra.mxu0 0
        %4773 = vmatprep.subr.bf16.mxu0 0
        %4774 = vmatpush2.bf16.msra.mxu0 0
        %4775 = vmatprep.subr.bf16.mxu0 0
        %4776 = vmatpush2.bf16.msra.mxu0 0
        %4777 = vmatprep.subr.bf16.mxu0 0
        %4778 = vmatpush2.bf16.msra.mxu0 0
        %4779 = vmatprep.mubr.bf16.mxu0 0
        %4780 = vmatmul.mubr.bf16.gmra.mxu0 %v4742
        %v4781 = vpop.f32.mrf.mxu0
        %v4782 = vadd.f32 0.0, %v4781
        %v4783 = vpop.f32.mrf.mxu0
        %v4784 = vpop.f32.mrf.mxu0
        %v4785 = vpop.f32.mrf.mxu0
        %4786 = vdwg.mxu0
        %v4788 = vsel %vm1474, %v4738, 0
        %v4791 = vsel %vm1714, %v3670, 0
        %4793 = vmatprep.subr.bf16.mxu0 0
        %4794 = vmatpush1.bf16.msra.mxu0 0
        %4795 = vmatprep.subr.bf16.mxu0 0
        %4796 = vmatpush1.bf16.msra.mxu0 0
        %4797 = vmatprep.subr.bf16.mxu0 0
        %4798 = vmatpush1.bf16.msra.mxu0 0
        %4799 = vmatprep.subr.bf16.mxu0 0
        %4800 = vmatpush1.bf16.msra.mxu0 0
        %4801 = vmatprep.subr.bf16.mxu0 0
        %4802 = vmatpush1.bf16.msra.mxu0 0
        %4803 = vmatprep.subr.bf16.mxu0 0
        %4804 = vmatpush1.bf16.msra.mxu0 0
        %4805 = vmatprep.subr.bf16.mxu0 0
        %4806 = vmatpush1.bf16.msra.mxu0 0
        %4807 = vmatprep.subr.bf16.mxu0 0
        %4808 = vmatpush1.bf16.msra.mxu0 %v4791
        %4809 = vmatprep.subr.bf16.mxu0 0
        %4810 = vmatpush2.bf16.msra.mxu0 0
        %4811 = vmatprep.subr.bf16.mxu0 0
        %4812 = vmatpush2.bf16.msra.mxu0 0
        %4813 = vmatprep.subr.bf16.mxu0 0
        %4814 = vmatpush2.bf16.msra.mxu0 0
        %4815 = vmatprep.subr.bf16.mxu0 0
        %4816 = vmatpush2.bf16.msra.mxu0 0
        %4817 = vmatprep.subr.bf16.mxu0 0
        %4818 = vmatpush2.bf16.msra.mxu0 0
        %4819 = vmatprep.subr.bf16.mxu0 0
        %4820 = vmatpush2.bf16.msra.mxu0 0
        %4821 = vmatprep.subr.bf16.mxu0 0
        %4822 = vmatpush2.bf16.msra.mxu0 0
        %4823 = vmatprep.subr.bf16.mxu0 0
        %4824 = vmatpush2.bf16.msra.mxu0 0
        %4825 = vmatprep.mubr.bf16.mxu0 0
        %4826 = vmatmul.mubr.bf16.gmra.mxu0 %v4788
        %v4827 = vpop.f32.mrf.mxu0
        %v4828 = vadd.f32 0.0, %v4827
        %v4829 = vpop.f32.mrf.mxu0
        %v4830 = vpop.f32.mrf.mxu0
        %v4831 = vpop.f32.mrf.mxu0
        %4832 = vdwg.mxu0
        %v4834 = vsel %vm1474, %v4739, 0
        %v4837 = vsel %vm1714, %v3671, 0
        %4839 = vmatprep.subr.bf16.mxu0 0
        %4840 = vmatpush1.bf16.msra.mxu0 0
        %4841 = vmatprep.subr.bf16.mxu0 0
        %4842 = vmatpush1.bf16.msra.mxu0 0
        %4843 = vmatprep.subr.bf16.mxu0 0
        %4844 = vmatpush1.bf16.msra.mxu0 0
        %4845 = vmatprep.subr.bf16.mxu0 0
        %4846 = vmatpush1.bf16.msra.mxu0 0
        %4847 = vmatprep.subr.bf16.mxu0 0
        %4848 = vmatpush1.bf16.msra.mxu0 0
        %4849 = vmatprep.subr.bf16.mxu0 0
        %4850 = vmatpush1.bf16.msra.mxu0 0
        %4851 = vmatprep.subr.bf16.mxu0 0
        %4852 = vmatpush1.bf16.msra.mxu0 0
        %4853 = vmatprep.subr.bf16.mxu0 0
        %4854 = vmatpush1.bf16.msra.mxu0 %v4837
        %4855 = vmatprep.subr.bf16.mxu0 0
        %4856 = vmatpush2.bf16.msra.mxu0 0
        %4857 = vmatprep.subr.bf16.mxu0 0
        %4858 = vmatpush2.bf16.msra.mxu0 0
        %4859 = vmatprep.subr.bf16.mxu0 0
        %4860 = vmatpush2.bf16.msra.mxu0 0
        %4861 = vmatprep.subr.bf16.mxu0 0
        %4862 = vmatpush2.bf16.msra.mxu0 0
        %4863 = vmatprep.subr.bf16.mxu0 0
        %4864 = vmatpush2.bf16.msra.mxu0 0
        %4865 = vmatprep.subr.bf16.mxu0 0
        %4866 = vmatpush2.bf16.msra.mxu0 0
        %4867 = vmatprep.subr.bf16.mxu0 0
        %4868 = vmatpush2.bf16.msra.mxu0 0
        %4869 = vmatprep.subr.bf16.mxu0 0
        %4870 = vmatpush2.bf16.msra.mxu0 0
        %4871 = vmatprep.mubr.bf16.mxu0 0
        %4872 = vmatmul.mubr.bf16.gmra.mxu0 %v4834
        %v4873 = vpop.f32.mrf.mxu0
        %v4874 = vadd.f32 0.0, %v4873
        %v4875 = vpop.f32.mrf.mxu0
        %v4876 = vpop.f32.mrf.mxu0
        %v4877 = vpop.f32.mrf.mxu0
        %4878 = vdwg.mxu0
        %v4880 = vsel %vm1474, %v4740, 0
        %v4883 = vsel %vm1714, %v3672, 0
        %4885 = vmatprep.subr.bf16.mxu0 0
        %4886 = vmatpush1.bf16.msra.mxu0 0
        %4887 = vmatprep.subr.bf16.mxu0 0
        %4888 = vmatpush1.bf16.msra.mxu0 0
        %4889 = vmatprep.subr.bf16.mxu0 0
        %4890 = vmatpush1.bf16.msra.mxu0 0
        %4891 = vmatprep.subr.bf16.mxu0 0
        %4892 = vmatpush1.bf16.msra.mxu0 0
        %4893 = vmatprep.subr.bf16.mxu0 0
        %4894 = vmatpush1.bf16.msra.mxu0 0
        %4895 = vmatprep.subr.bf16.mxu0 0
        %4896 = vmatpush1.bf16.msra.mxu0 0
        %4897 = vmatprep.subr.bf16.mxu0 0
        %4898 = vmatpush1.bf16.msra.mxu0 0
        %4899 = vmatprep.subr.bf16.mxu0 0
        %4900 = vmatpush1.bf16.msra.mxu0 %v4883
        %4901 = vmatprep.subr.bf16.mxu0 0
        %4902 = vmatpush2.bf16.msra.mxu0 0
        %4903 = vmatprep.subr.bf16.mxu0 0
        %4904 = vmatpush2.bf16.msra.mxu0 0
        %4905 = vmatprep.subr.bf16.mxu0 0
        %4906 = vmatpush2.bf16.msra.mxu0 0
        %4907 = vmatprep.subr.bf16.mxu0 0
        %4908 = vmatpush2.bf16.msra.mxu0 0
        %4909 = vmatprep.subr.bf16.mxu0 0
        %4910 = vmatpush2.bf16.msra.mxu0 0
        %4911 = vmatprep.subr.bf16.mxu0 0
        %4912 = vmatpush2.bf16.msra.mxu0 0
        %4913 = vmatprep.subr.bf16.mxu0 0
        %4914 = vmatpush2.bf16.msra.mxu0 0
        %4915 = vmatprep.subr.bf16.mxu0 0
        %4916 = vmatpush2.bf16.msra.mxu0 0
        %4917 = vmatprep.mubr.bf16.mxu0 0
        %4918 = vmatmul.mubr.bf16.gmra.mxu0 %v4880
        %v4919 = vpop.f32.mrf.mxu0
        %v4920 = vadd.f32 0.0, %v4919
        %v4921 = vpop.f32.mrf.mxu0
        %v4922 = vpop.f32.mrf.mxu0
        %v4923 = vpop.f32.mrf.mxu0
        %4924 = vdwg.mxu0
        %v4925 = vsel %vm846, %v4782, 0.0
        %v4926 = vsel %vm846, %v4828, 0.0
        %v4927 = vadd.f32 %v4925, %v4926
        %v4928 = vsel %vm846, %v4874, 0.0
        %v4929 = vadd.f32 %v4927, %v4928
        %v4930 = vsel %vm846, %v4920, 0.0
        %v4931 = vadd.f32 %v4929, %v4930
        %v4932 = vadd.f32 %v4931, %v3620
        %v4933 = vsel %vm846, %v4932, 0.0
        %4934 = vadd.xlane.f32.xlu0 %v4933
        %v4935 = vpop.xlane.xlu0 %4934
        %v4936 = vmul.f32 %v4935, %v2095
        %v4937 = vsub.f32 %v4932, %v4936
        %v4938 = vmul.f32 %v4937, %v4937
        %v4939 = vsel %vm846, %v4938, 0.0
        %4940 = vadd.xlane.f32.xlu0 %v4939
        %v4941 = vpop.xlane.xlu0 %4940
        %v4942 = vmul.f32 %v4941, %v2095
        %v4943 = vadd.f32 %v4942, 1e-05
        %v4944 = vrsqrt.pop %v4943
        %v4945 = vmul.f32 %v4937, %v4944
        %v4946 = vmul.f32 %v4945, %v2110
        %v4947 = vadd.f32 %v4946, %v2117
        %v4948 = vld [vmem:[%s18] sm:$0xf]
        %v4949 = vld [vmem:[%s18 + $0x4] sm:$0xf]
        %v4950 = vld [vmem:[%s18 + $0x8] sm:$0xf]
        %v4951 = vld [vmem:[%s18 + $0xc] sm:$0xf]
        %v4952 = vld [vmem:[%s19] sm:$0x1]
        %v4953 = vld [vmem:[%s20] sm:$0xf]
        %v4954 = vld [vmem:[%s20 + $0x4] sm:$0xf]
        %v4955 = vld [vmem:[%s20 + $0x8] sm:$0xf]
        %v4956 = vld [vmem:[%s20 + $0xc] sm:$0xf]
        %v4957 = vld [vmem:[%s20 + $0x10] sm:$0xf]
        %v4958 = vld [vmem:[%s20 + $0x14] sm:$0xf]
        %v4959 = vld [vmem:[%s20 + $0x18] sm:$0xf]
        %v4960 = vld [vmem:[%s20 + $0x1c] sm:$0xf]
        %v4961 = vld [vmem:[%s21] sm:$0x1]
        %v4962 = vpack.c.bf16 %v4947, %v4947
        %v4964 = vlaneseq
        %v4965 = vshrl.u32 %v4964, 7
        %v4966 = vsub.s32 0, %v4965
        %v4967 = vrot.slane %v4952, %v4966
        %v4973 = vunpack.c.l.b16 %v4948
        %v4974 = vunpack.c.l.b16 %v4949
        %v4975 = vunpack.c.l.b16 %v4950
        %v4976 = vunpack.c.l.b16 %v4951
        %v4977 = vpack.c.b16 %v4974, %v4973
        %v4978 = vpack.c.b16 %v4976, %v4975
        %v4982 = vsel %vm846, %v4962, 0
        %4984 = vmatprep.subr.bf16.mxu0 0
        %4985 = vmatpush1.bf16.msra.mxu0 0
        %4986 = vmatprep.subr.bf16.mxu0 0
        %4987 = vmatpush1.bf16.msra.mxu0 0
        %4988 = vmatprep.subr.bf16.mxu0 0
        %4989 = vmatpush1.bf16.msra.mxu0 0
        %4990 = vmatprep.subr.bf16.mxu0 0
        %4991 = vmatpush1.bf16.msra.mxu0 0
        %4992 = vmatprep.subr.bf16.mxu0 0
        %4993 = vmatpush1.bf16.msra.mxu0 0
        %4994 = vmatprep.subr.bf16.mxu0 0
        %4995 = vmatpush1.bf16.msra.mxu0 0
        %4996 = vmatprep.subr.bf16.mxu0 0
        %4997 = vmatpush1.bf16.msra.mxu0 %v4978
        %4998 = vmatprep.subr.bf16.mxu0 0
        %4999 = vmatpush1.bf16.msra.mxu0 %v4977
        %5000 = vmatprep.subr.bf16.mxu0 0
        %5001 = vmatpush2.bf16.msra.mxu0 0
        %5002 = vmatprep.subr.bf16.mxu0 0
        %5003 = vmatpush2.bf16.msra.mxu0 0
        %5004 = vmatprep.subr.bf16.mxu0 0
        %5005 = vmatpush2.bf16.msra.mxu0 0
        %5006 = vmatprep.subr.bf16.mxu0 0
        %5007 = vmatpush2.bf16.msra.mxu0 0
        %5008 = vmatprep.subr.bf16.mxu0 0
        %5009 = vmatpush2.bf16.msra.mxu0 0
        %5010 = vmatprep.subr.bf16.mxu0 0
        %5011 = vmatpush2.bf16.msra.mxu0 0
        %5012 = vmatprep.subr.bf16.mxu0 0
        %5013 = vmatpush2.bf16.msra.mxu0 0
        %5014 = vmatprep.subr.bf16.mxu0 0
        %5015 = vmatpush2.bf16.msra.mxu0 0
        %5016 = vmatprep.mubr.bf16.mxu0 0
        %5017 = vmatmul.mubr.bf16.gmra.mxu0 %v4982
        %v5018 = vpop.f32.mrf.mxu0
        %v5019 = vadd.f32 %v4967, %v5018
        %v5020 = vpop.f32.mrf.mxu0
        %v5021 = vpop.f32.mrf.mxu0
        %v5022 = vpop.f32.mrf.mxu0
        %5023 = vdwg.mxu0
        %v5024 = vmax.f32 %v5019, 0.0
        %v5025 = vpack.c.bf16 %v5024, %v5024
        %v5027 = vlaneseq
        %v5028 = vshrl.u32 %v5027, 7
        %v5029 = vsub.s32 0, %v5028
        %v5030 = vrot.slane %v4961, %v5029
        %v5040 = vunpack.c.l.b16 %v4953
        %v5041 = vunpack.c.l.b16 %v4954
        %v5042 = vunpack.c.l.b16 %v4955
        %v5043 = vunpack.c.l.b16 %v4956
        %v5044 = vunpack.c.l.b16 %v4957
        %v5045 = vunpack.c.l.b16 %v4958
        %v5046 = vunpack.c.l.b16 %v4959
        %v5047 = vunpack.c.l.b16 %v4960
        %v5048 = vpack.c.b16 %v5041, %v5040
        %v5049 = vpack.c.b16 %v5043, %v5042
        %v5050 = vpack.c.b16 %v5045, %v5044
        %v5051 = vpack.c.b16 %v5047, %v5046
        %v5057 = vsel %vm2228, %v5025, 0
        %5059 = vmatprep.subr.bf16.mxu0 0
        %5060 = vmatpush1.bf16.msra.mxu0 0
        %5061 = vmatprep.subr.bf16.mxu0 0
        %5062 = vmatpush1.bf16.msra.mxu0 0
        %5063 = vmatprep.subr.bf16.mxu0 0
        %5064 = vmatpush1.bf16.msra.mxu0 0
        %5065 = vmatprep.subr.bf16.mxu0 0
        %5066 = vmatpush1.bf16.msra.mxu0 0
        %5067 = vmatprep.subr.bf16.mxu0 0
        %5068 = vmatpush1.bf16.msra.mxu0 %v5051
        %5069 = vmatprep.subr.bf16.mxu0 0
        %5070 = vmatpush1.bf16.msra.mxu0 %v5050
        %5071 = vmatprep.subr.bf16.mxu0 0
        %5072 = vmatpush1.bf16.msra.mxu0 %v5049
        %5073 = vmatprep.subr.bf16.mxu0 0
        %5074 = vmatpush1.bf16.msra.mxu0 %v5048
        %5075 = vmatprep.subr.bf16.mxu0 0
        %5076 = vmatpush2.bf16.msra.mxu0 0
        %5077 = vmatprep.subr.bf16.mxu0 0
        %5078 = vmatpush2.bf16.msra.mxu0 0
        %5079 = vmatprep.subr.bf16.mxu0 0
        %5080 = vmatpush2.bf16.msra.mxu0 0
        %5081 = vmatprep.subr.bf16.mxu0 0
        %5082 = vmatpush2.bf16.msra.mxu0 0
        %5083 = vmatprep.subr.bf16.mxu0 0
        %5084 = vmatpush2.bf16.msra.mxu0 0
        %5085 = vmatprep.subr.bf16.mxu0 0
        %5086 = vmatpush2.bf16.msra.mxu0 0
        %5087 = vmatprep.subr.bf16.mxu0 0
        %5088 = vmatpush2.bf16.msra.mxu0 0
        %5089 = vmatprep.subr.bf16.mxu0 0
        %5090 = vmatpush2.bf16.msra.mxu0 0
        %5091 = vmatprep.mubr.bf16.mxu0 0
        %5092 = vmatmul.mubr.bf16.gmra.mxu0 %v5057
        %v5093 = vpop.f32.mrf.mxu0
        %v5094 = vadd.f32 %v5030, %v5093
        %v5095 = vpop.f32.mrf.mxu0
        %v5096 = vpop.f32.mrf.mxu0
        %v5097 = vpop.f32.mrf.mxu0
        %5098 = vdwg.mxu0
        %v5099 = vadd.f32 %v5094, %v4947
        %v5100 = vsel %vm846, %v5099, 0.0
        %5101 = vadd.xlane.f32.xlu0 %v5100
        %v5102 = vpop.xlane.xlu0 %5101
        %v5103 = vmul.f32 %v5102, %v2095
        %v5104 = vsub.f32 %v5099, %v5103
        %v5105 = vmul.f32 %v5104, %v5104
        %v5106 = vsel %vm846, %v5105, 0.0
        %5107 = vadd.xlane.f32.xlu0 %v5106
        %v5108 = vpop.xlane.xlu0 %5107
        %v5109 = vmul.f32 %v5108, %v2095
        %v5110 = vadd.f32 %v5109, 1e-05
        %v5111 = vrsqrt.pop %v5110
        %v5112 = vmul.f32 %v5104, %v5111
        %v5113 = vmul.f32 %v5112, %v2110
        %v5114 = vadd.f32 %v5113, %v2117
        %v5115 = vpack.c.bf16 %v5114, %v5114
        %v5116 = vld [vmem:[%s24] sm:$0xf]
        %v5117 = vld [vmem:[%s24 + $0x4] sm:$0xf]
        %v5118 = vld [vmem:[%s24 + $0x8] sm:$0xf]
        %v5119 = vld [vmem:[%s24 + $0xc] sm:$0xf]
        %v5124 = vunpack.c.l.b16 %v5116
        %v5125 = vunpack.c.l.b16 %v5117
        %v5126 = vunpack.c.l.b16 %v5118
        %v5127 = vunpack.c.l.b16 %v5119
        %v5128 = vpack.c.b16 %v5125, %v5124
        %v5129 = vpack.c.b16 %v5127, %v5126
        %v5133 = vsel %vm846, %v5115, 0
        %5135 = vmatprep.subr.bf16.mxu0 0
        %5136 = vmatpush1.bf16.msra.mxu0 0
        %5137 = vmatprep.subr.bf16.mxu0 0
        %5138 = vmatpush1.bf16.msra.mxu0 0
        %5139 = vmatprep.subr.bf16.mxu0 0
        %5140 = vmatpush1.bf16.msra.mxu0 0
        %5141 = vmatprep.subr.bf16.mxu0 0
        %5142 = vmatpush1.bf16.msra.mxu0 0
        %5143 = vmatprep.subr.bf16.mxu0 0
        %5144 = vmatpush1.bf16.msra.mxu0 0
        %5145 = vmatprep.subr.bf16.mxu0 0
        %5146 = vmatpush1.bf16.msra.mxu0 0
        %5147 = vmatprep.subr.bf16.mxu0 0
        %5148 = vmatpush1.bf16.msra.mxu0 %v5129
        %5149 = vmatprep.subr.bf16.mxu0 0
        %5150 = vmatpush1.bf16.msra.mxu0 %v5128
        %5151 = vmatprep.subr.bf16.mxu0 0
        %5152 = vmatpush2.bf16.msra.mxu0 0
        %5153 = vmatprep.subr.bf16.mxu0 0
        %5154 = vmatpush2.bf16.msra.mxu0 0
        %5155 = vmatprep.subr.bf16.mxu0 0
        %5156 = vmatpush2.bf16.msra.mxu0 0
        %5157 = vmatprep.subr.bf16.mxu0 0
        %5158 = vmatpush2.bf16.msra.mxu0 0
        %5159 = vmatprep.subr.bf16.mxu0 0
        %5160 = vmatpush2.bf16.msra.mxu0 0
        %5161 = vmatprep.subr.bf16.mxu0 0
        %5162 = vmatpush2.bf16.msra.mxu0 0
        %5163 = vmatprep.subr.bf16.mxu0 0
        %5164 = vmatpush2.bf16.msra.mxu0 0
        %5165 = vmatprep.subr.bf16.mxu0 0
        %5166 = vmatpush2.bf16.msra.mxu0 0
        %5167 = vmatprep.mubr.bf16.mxu0 0
        %5168 = vmatmul.mubr.bf16.gmra.mxu0 %v5133
        %v5169 = vpop.f32.mrf.mxu0
        %v5170 = vadd.f32 0.0, %v5169
        %v5171 = vpop.f32.mrf.mxu0
        %v5172 = vpop.f32.mrf.mxu0
        %v5173 = vpop.f32.mrf.mxu0
        %5174 = vdwg.mxu0
        %5175 = vst [vmem:[%s768] sm:$0xff] %v5170
        %s5176 = sand.u32 %s582, 1
        %s5177 = scalar_lea.sflag [#allocation3], %s5176
        %s5178 = sand.u32 %s582, 1
        %s5179 = smul.addr %s5178, 8
        %s5180 = scalar_lea.vmem [#allocation2], %s5179
        // Predicated region
        $region121: #{transformer_forward.1} parent=119 // pred_check
          %p5181 = pneg %p592
        $region122: #{transformer_forward.1} parent=119 // pred_check_branch
          %5183 = sbr.rel (%p5181) target = $region124
        $region123: #{transformer_forward.1} parent=119 // pred_region
          %s5185 = ssub.s32 128, 128
          %5186 = vsyncadd %s5177, %s5185
          %s5187 = smul.addr %s39, 128
          %s5188 = scalar_lea.hbm %s25, %s5187
          %s5190 = sshll.u32 %s5180, 4
          %s5191 = int_to_ptr.vmem [resolvable:$true] %s5190
          %5193 = dma.vmem_to_hbm [thread:$0]  %s5191, 128, %s5188, %s5177
        $region124: #{transformer_forward.1} parent=119 // pred_fallthru
          _
      $region120: #{transformer_forward.1} parent=5 // pred_fallthru
        _
      %p5194 = scmp.le.s32.totalorder 2, %s34
      // Predicated region
      $region125: #{transformer_forward.1} parent=5 // pred_check
        %p5195 = pneg %p5194
      $region126: #{transformer_forward.1} parent=5 // pred_check_branch
        %5197 = sbr.rel (%p5195) target = $region128
      $region127: #{transformer_forward.1} parent=5 // pred_region
        %s5198 = ssub.s32 %s34, 2
        // Predicated region
        $region129: #{transformer_forward.1} parent=127 // pred_check
          %p5199 = pneg %p598
        $region130: #{transformer_forward.1} parent=127 // pred_check_branch
          %5201 = sbr.rel (%p5199) target = $region132
        $region131: #{transformer_forward.1} parent=127 // pred_region
          %s5202 = sand.u32 %s583, 1
          %s5203 = scalar_lea.sflag [#allocation3], %s5202
          %s5204 = sand.u32 %s583, 1
          %s5205 = smul.addr %s5204, 8
          %s5206 = scalar_lea.vmem [#allocation2], %s5205
          %5207 = dma.done %s5203, 128
        $region132: #{transformer_forward.1} parent=127 // pred_fallthru
          _
      $region128: #{transformer_forward.1} parent=5 // pred_fallthru
        _
    $region6: #{transformer_forward.1} parent=1 // loop_footer
      %s38 = sadd.s32 1, %s34
    $region7: #{transformer_forward.1} parent=1 // loop_footer_branch
      %33 = sbr.rel target = $region3
    $region8: #{transformer_forward.1} parent=1 // loop_exit
      _
    %5208 = vsyncpa [#allocation3], 1
    %s5209 = scalar_lea.sflag [#allocation3], 1
    %5210 = vsyncpa %s5209, 1

</llo_original>
